<compile_context>
chip_gen: v6e
topology: v6e:2x2x1
jax: 0.10.0
libtpu: 0.0.40
codegen_flags: <defaults>
</compile_context>

<pallas_src>
import functools

import jax
import jax.numpy as jnp
from jax.experimental import pallas as pl
from jax.experimental.pallas import tpu as pltpu

# ----------------------------- model dims ------------------------------------
PATCH = 14          # CLIP-L/14 patch size
D_CLIP = 256        # synthetic internal embed dim (real CLIP-L uses 1024)
D_FEAT = 768        # CLIP-L projection_dim == linear1 input
D_HID = 768         # linear1 output
D_OUT = 512         # linear2 output

_LANE = 128
_SUBLANE = 8
_TM_MAX = 256       # row tile; sized so bf16 tiles + resident weights fit v7x VMEM


def _round_up(x, m):
    return (x + m - 1) // m * m


# ------------------------------ Pallas kernel --------------------------------
def _encoder_kernel(feat_ref, w_embed_ref, w_proj_ref,
                    w1_ref, b1_ref, w2_ref, b2_ref, out_ref):
    # synthetic backbone: pooled patch features -> embed -> visual projection
    emb = jnp.dot(feat_ref[...], w_embed_ref[...],
                  preferred_element_type=jnp.float32)                # (TM, D_CLIP)
    clip_feat = jnp.dot(emb.astype(jnp.bfloat16), w_proj_ref[...],
                        preferred_element_type=jnp.float32)          # (TM, 768)
    # head: linear1 -> ReLU -> linear2 (bias adds in f32 epilogue)
    h = jnp.dot(clip_feat.astype(jnp.bfloat16), w1_ref[...],
                preferred_element_type=jnp.float32)
    h = jnp.maximum(h + b1_ref[...], 0.0)                            # (TM, 768)
    out = jnp.dot(h.astype(jnp.bfloat16), w2_ref[...],
                  preferred_element_type=jnp.float32) + b2_ref[...]  # (TM, 512)
    out_ref[...] = out.astype(out_ref.dtype)


def _const_spec(shape):
    # whole-array block, constant block index -> fetched once, stays resident
    return pl.BlockSpec(shape, lambda i: (0,) * len(shape))


# ------------------------------- forward -------------------------------------
@functools.partial(jax.jit, static_argnames=("patch",))
def image_encoder_forward(x, params, patch=PATCH):
    """x: (B, 3, H, W) float32 NCHW pixel values."""
    w_embed, w_proj, w1, b1, w2, b2 = params
    B, C, H, W = x.shape
    gh, gw = H // patch, W // patch
    if gh == 0 or gw == 0:
        raise ValueError("image smaller than one patch")

    # Per-image mean over the patch grid, computed without materializing the
    # (B*N, C*p*p) im2col matrix or its transpose.  Trailing pixels beyond a
    # patch multiple are dropped (matches a stride=kernel conv).
    xp = x[:, :, :gh * patch, :gw * patch].reshape(B, C, gh, patch, gw, patch)
    feat = xp.mean(axis=(2, 4)).reshape(B, C * patch * patch)        # (B, 588) f32

    # 128-align the contraction dim (588 -> 640, matches padded w_embed) and
    # 8-align / tile the batch rows.
    cpp = C * patch * patch
    cpp_pad = w_embed.shape[0]                                       # padded in init
    tm = min(_TM_MAX, _round_up(B, _SUBLANE))
    rows = _round_up(B, tm)
    feat = jnp.pad(feat, ((0, rows - B), (0, cpp_pad - cpp))).astype(jnp.bfloat16)

    out = pl.pallas_call(
        _encoder_kernel,
        out_shape=jax.ShapeDtypeStruct((rows, D_OUT), jnp.float32),
        grid=(rows // tm,),
        in_specs=[
            pl.BlockSpec((tm, cpp_pad), lambda i: (i, 0)),   # row-tiled features
            _const_spec(w_embed.shape),                      # resident bf16 weights
            _const_spec(w_proj.shape),
            _const_spec(w1.shape),
            _const_spec(b1.shape),                           # f32 biases
            _const_spec(w2.shape),
            _const_spec(b2.shape),
        ],
        out_specs=pl.BlockSpec((tm, D_OUT), lambda i: (i, 0)),
        compiler_params=pltpu.CompilerParams(
            dimension_semantics=("parallel",),               # shards batch on v7x 2-TC
            vmem_limit_bytes=32 * 1024 * 1024),
    )(feat, w_embed, w_proj, w1, b1, w2, b2)
    return out[:B]


# --------------------------- parameter initialization ------------------------
def init_params(key, c=3, patch=PATCH):
    ks = jax.random.split(key, 6)
    cpp = c * patch * patch
    cpp_pad = _round_up(cpp, _LANE)
    w_embed = jax.random.normal(ks[0], (cpp, D_CLIP), jnp.float32) * (cpp ** -0.5)
    w_embed = jnp.pad(w_embed, ((0, cpp_pad - cpp), (0, 0)))         # zero-pad rows
    w_proj = jax.random.normal(ks[1], (D_CLIP, D_FEAT), jnp.float32) * (D_CLIP ** -0.5)
    w1 = jax.random.normal(ks[2], (D_FEAT, D_HID), jnp.float32) * (D_FEAT ** -0.5)
    b1 = jax.random.normal(ks[3], (1, D_HID), jnp.float32) * 0.01
    w2 = jax.random.normal(ks[4], (D_HID, D_OUT), jnp.float32) * (D_HID ** -0.5)
    b2 = jax.random.normal(ks[5], (1, D_OUT), jnp.float32) * 0.01
    # bf16 weights halve HBM/DMA traffic (the binding roofline); biases stay f32.
    bf16 = jnp.bfloat16
    return (w_embed.astype(bf16), w_proj.astype(bf16),
            w1.astype(bf16), b1, w2.astype(bf16), b2)


# ---------------------------------- main --------------------------------------
if __name__ == "__main__":
    key = jax.random.PRNGKey(0)
    k_x, k_p = jax.random.split(key)

    # small image: 28x28 with patch 14 -> 2x2 = 4 patches per image
    B, C, H, W = 2, 3, 28, 28
    x = jax.random.normal(k_x, (B, C, H, W), jnp.float32)
    params = init_params(k_p, c=C, patch=PATCH)

    out = jax.block_until_ready(image_encoder_forward(x, params))

    assert out.shape == (B, D_OUT), out.shape
    assert out.dtype == jnp.float32
    assert bool(jnp.all(jnp.isfinite(out)))

    print("KERNEL_OK")
</pallas_src>

<mosaic_0001>
module attributes {stable_mosaic.version = 11 : i64} {
  func.func @_encoder_kernel(%arg0: i32, %arg1: memref<8x640xbf16, #tpu.memory_space<vmem>>, %arg2: memref<640x256xbf16, #tpu.memory_space<vmem>>, %arg3: memref<256x768xbf16, #tpu.memory_space<vmem>>, %arg4: memref<768x768xbf16, #tpu.memory_space<vmem>>, %arg5: memref<1x768xf32, #tpu.memory_space<vmem>>, %arg6: memref<768x512xbf16, #tpu.memory_space<vmem>>, %arg7: memref<1x512xf32, #tpu.memory_space<vmem>>, %arg8: memref<8x512xf32, #tpu.memory_space<vmem>>) attributes {dimension_semantics = [#tpu.dimension_semantics<parallel>], iteration_bounds = array<i64: 1>, scalar_prefetch = 0 : i64, scratch_operands = 0 : i64, tpu.core_type = #tpu.core_type<tc>, window_params = [{transform_indices = @transform_0, window_bounds = array<i64: 8, 640>}, {pipeline_mode = #tpu.pipeline_mode<synchronous>, transform_indices = @transform_1, window_bounds = array<i64: 640, 256>}, {pipeline_mode = #tpu.pipeline_mode<synchronous>, transform_indices = @transform_2, window_bounds = array<i64: 256, 768>}, {pipeline_mode = #tpu.pipeline_mode<synchronous>, transform_indices = @transform_3, window_bounds = array<i64: 768, 768>}, {pipeline_mode = #tpu.pipeline_mode<synchronous>, transform_indices = @transform_4, window_bounds = array<i64: 1, 768>}, {pipeline_mode = #tpu.pipeline_mode<synchronous>, transform_indices = @transform_5, window_bounds = array<i64: 768, 512>}, {pipeline_mode = #tpu.pipeline_mode<synchronous>, transform_indices = @transform_6, window_bounds = array<i64: 1, 512>}, {transform_indices = @transform_7, window_bounds = array<i64: 8, 512>}]} {
    %c0 = arith.constant 0 : index
    %c0_0 = arith.constant 0 : index
    %0 = vector.load %arg1[%c0, %c0_0] : memref<8x640xbf16, #tpu.memory_space<vmem>>, vector<8x640xbf16>
    %c0_1 = arith.constant 0 : index
    %c0_2 = arith.constant 0 : index
    %1 = vector.load %arg2[%c0_1, %c0_2] : memref<640x256xbf16, #tpu.memory_space<vmem>>, vector<640x256xbf16>
    %cst = arith.constant dense<0.000000e+00> : vector<8x256xf32>
    %2 = tpu.matmul %0, %1, %cst {dimension_numbers = #tpu.dot_dimension_numbers<[1], [0], [0], [1], [0, 0, 1, 1], [], []>} : vector<8x640xbf16>, vector<640x256xbf16>, vector<8x256xf32> -> vector<8x256xf32>
    %3 = arith.truncf %2 : vector<8x256xf32> to vector<8x256xbf16>
    %c0_3 = arith.constant 0 : index
    %c0_4 = arith.constant 0 : index
    %4 = vector.load %arg3[%c0_3, %c0_4] : memref<256x768xbf16, #tpu.memory_space<vmem>>, vector<256x768xbf16>
    %cst_5 = arith.constant dense<0.000000e+00> : vector<8x768xf32>
    %5 = tpu.matmul %3, %4, %cst_5 {dimension_numbers = #tpu.dot_dimension_numbers<[1], [0], [0], [1], [0, 0, 1, 1], [], []>} : vector<8x256xbf16>, vector<256x768xbf16>, vector<8x768xf32> -> vector<8x768xf32>
    %6 = arith.truncf %5 : vector<8x768xf32> to vector<8x768xbf16>
    %c0_6 = arith.constant 0 : index
    %c0_7 = arith.constant 0 : index
    %7 = vector.load %arg4[%c0_6, %c0_7] : memref<768x768xbf16, #tpu.memory_space<vmem>>, vector<768x768xbf16>
    %cst_8 = arith.constant dense<0.000000e+00> : vector<8x768xf32>
    %8 = tpu.matmul %6, %7, %cst_8 {dimension_numbers = #tpu.dot_dimension_numbers<[1], [0], [0], [1], [0, 0, 1, 1], [], []>} : vector<8x768xbf16>, vector<768x768xbf16>, vector<8x768xf32> -> vector<8x768xf32>
    %c0_9 = arith.constant 0 : index
    %c0_10 = arith.constant 0 : index
    %9 = vector.load %arg5[%c0_9, %c0_10] : memref<1x768xf32, #tpu.memory_space<vmem>>, vector<1x768xf32>
    %10 = vector.broadcast %9 : vector<1x768xf32> to vector<8x768xf32>
    %11 = arith.addf %8, %10 : vector<8x768xf32>
    %cst_11 = arith.constant 0.000000e+00 : f32
    %12 = vector.broadcast %cst_11 : f32 to vector<8x768xf32>
    %13 = arith.maximumf %11, %12 : vector<8x768xf32>
    %14 = arith.truncf %13 : vector<8x768xf32> to vector<8x768xbf16>
    %c0_12 = arith.constant 0 : index
    %c0_13 = arith.constant 0 : index
    %15 = vector.load %arg6[%c0_12, %c0_13] : memref<768x512xbf16, #tpu.memory_space<vmem>>, vector<768x512xbf16>
    %cst_14 = arith.constant dense<0.000000e+00> : vector<8x512xf32>
    %16 = tpu.matmul %14, %15, %cst_14 {dimension_numbers = #tpu.dot_dimension_numbers<[1], [0], [0], [1], [0, 0, 1, 1], [], []>} : vector<8x768xbf16>, vector<768x512xbf16>, vector<8x512xf32> -> vector<8x512xf32>
    %c0_15 = arith.constant 0 : index
    %c0_16 = arith.constant 0 : index
    %17 = vector.load %arg7[%c0_15, %c0_16] : memref<1x512xf32, #tpu.memory_space<vmem>>, vector<1x512xf32>
    %18 = vector.broadcast %17 : vector<1x512xf32> to vector<8x512xf32>
    %19 = arith.addf %16, %18 : vector<8x512xf32>
    %c0_17 = arith.constant 0 : index
    %c0_18 = arith.constant 0 : index
    %20 = vector.load %arg8[%c0_17, %c0_18] : memref<8x512xf32, #tpu.memory_space<vmem>>, vector<8x512xf32>
    tpu.vector_store %arg8[%c0_17, %c0_18], %19 {strides = array<i32>} : memref<8x512xf32, #tpu.memory_space<vmem>>, vector<8x512xf32>,
    return
  }
  func.func @transform_0(%arg0: i32) -> (i32, i32) {
    %c0_i32 = arith.constant 0 : i32
    %c0_i32_0 = arith.constant 0 : i32
    return %arg0, %c0_i32 : i32, i32
  }
  func.func @transform_1(%arg0: i32) -> (i32, i32) {
    %c0_i32 = arith.constant 0 : i32
    %c0_i32_0 = arith.constant 0 : i32
    %c0_i32_1 = arith.constant 0 : i32
    return %c0_i32, %c0_i32_0 : i32, i32
  }
  func.func @transform_2(%arg0: i32) -> (i32, i32) {
    %c0_i32 = arith.constant 0 : i32
    %c0_i32_0 = arith.constant 0 : i32
    %c0_i32_1 = arith.constant 0 : i32
    return %c0_i32, %c0_i32_0 : i32, i32
  }
  func.func @transform_3(%arg0: i32) -> (i32, i32) {
    %c0_i32 = arith.constant 0 : i32
    %c0_i32_0 = arith.constant 0 : i32
    %c0_i32_1 = arith.constant 0 : i32
    return %c0_i32, %c0_i32_0 : i32, i32
  }
  func.func @transform_4(%arg0: i32) -> (i32, i32) {
    %c0_i32 = arith.constant 0 : i32
    %c0_i32_0 = arith.constant 0 : i32
    %c0_i32_1 = arith.constant 0 : i32
    return %c0_i32, %c0_i32_0 : i32, i32
  }
  func.func @transform_5(%arg0: i32) -> (i32, i32) {
    %c0_i32 = arith.constant 0 : i32
    %c0_i32_0 = arith.constant 0 : i32
    %c0_i32_1 = arith.constant 0 : i32
    return %c0_i32, %c0_i32_0 : i32, i32
  }
  func.func @transform_6(%arg0: i32) -> (i32, i32) {
    %c0_i32 = arith.constant 0 : i32
    %c0_i32_0 = arith.constant 0 : i32
    %c0_i32_1 = arith.constant 0 : i32
    return %c0_i32, %c0_i32_0 : i32, i32
  }
  func.func @transform_7(%arg0: i32) -> (i32, i32) {
    %c0_i32 = arith.constant 0 : i32
    %c0_i32_0 = arith.constant 0 : i32
    return %arg0, %c0_i32 : i32, i32
  }
}

</mosaic_0001>

<llo_original>
// kernel: image_encoder_forward.1
$region0: #{image_encoder_forward.1}
  #allocation0 [shape = 'u32[]', space=smem, size = 0x4, offset = 0x4, fixed_abs, tag = 'smem constant byte address 0x4 - core index']
  #allocation1 [shape = 'u32[144,128]{1,0:T(1,128)}', space=vmem, size = 0x12000, scoped, tag = 'internal scratch']
  %s0 = inlined_call_operand.vmem [shape: bf16[8,640], index: 0, kind: input, shape index: {}]
  %s1 = inlined_call_operand.hbm [shape: bf16[640,256], index: 1, kind: input, shape index: {}]
  %s2 = inlined_call_operand.hbm [shape: bf16[256,768], index: 2, kind: input, shape index: {}]
  %s3 = inlined_call_operand.hbm [shape: bf16[768,768], index: 3, kind: input, shape index: {}]
  %s4 = inlined_call_operand.hbm [shape: f32[1,768], index: 4, kind: input, shape index: {}]
  %s5 = inlined_call_operand.hbm [shape: bf16[768,512], index: 5, kind: input, shape index: {}]
  %s6 = inlined_call_operand.hbm [shape: f32[1,512], index: 6, kind: input, shape index: {}]
  %s7 = inlined_call_operand.vmem [shape: f32[8,512], index: 7, kind: output, shape index: {}]
  %s8 = sld [smem:[#allocation0]]
  $region62: #{image_encoder_forward.1} parent=0
    _
  %s10 = ssub.s32 1, %s8
  %s11 = scalar_select 0, %s10, %s8
  $region1: #{image_encoder_forward.1} parent=0
    #allocation2 [shape = 'u8[327680]{0}', space=vmem, size = 0x50000, scoped, tag = 'input window, operand 1, single buffered']
    #allocation3 [shape = 's32[1]{0}', space=sflag, size = 0x4, scoped, tag = 'scoped memory for image_encoder_forward.1']
    #allocation4 [shape = 'u8[393216]{0}', space=vmem, size = 0x60000, scoped, tag = 'input window, operand 2, single buffered']
    #allocation5 [shape = 's32[1]{0}', space=sflag, size = 0x4, scoped, tag = 'scoped memory for image_encoder_forward.1']
    #allocation6 [shape = 'u8[1179648]{0}', space=vmem, size = 0x120000, scoped, tag = 'input window, operand 3, single buffered']
    #allocation7 [shape = 'u8[3072]{0}', space=vmem, size = 0xc00, scoped, tag = 'input window, operand 4, single buffered']
    #allocation8 [shape = 's32[1]{0}', space=sflag, size = 0x4, scoped, tag = 'scoped memory for image_encoder_forward.1']
    #allocation9 [shape = 'u8[786432]{0}', space=vmem, size = 0xc0000, scoped, tag = 'input window, operand 5, single buffered']
    #allocation10 [shape = 'u8[2048]{0}', space=vmem, size = 0x800, scoped, tag = 'input window, operand 6, single buffered']
    #allocation11 [shape = 's32[1]{0}', space=sflag, size = 0x4, scoped, tag = 'scoped memory for image_encoder_forward.1']
    %12 = vsyncpa [#allocation3], 0
    %13 = vsyncpa [#allocation5], 0
    %14 = vsyncpa [#allocation8], 0
    %15 = vsyncpa [#allocation11], 0
    // Predicated region
    $region2: #{image_encoder_forward.1} parent=1 // pred_check
      _
    $region3: #{image_encoder_forward.1} parent=1 // pred_check_branch
      %17 = sbr.rel (0) target = $region5
    $region4: #{image_encoder_forward.1} parent=1 // pred_region
      _
    $region5: #{image_encoder_forward.1} parent=1 // pred_fallthru
      _
    // Predicated region
    $region6: #{image_encoder_forward.1} parent=1 // pred_check
      _
    $region7: #{image_encoder_forward.1} parent=1 // pred_check_branch
      %19 = sbr.rel (0) target = $region9
    $region8: #{image_encoder_forward.1} parent=1 // pred_region
      %s21 = ssub.s32 10240, 10240
      %22 = vsyncadd [#allocation3], %s21
      %s23 = sshll.u32 [#allocation2], 4
      %s24 = int_to_ptr.vmem [resolvable:$true] %s23
      %29 = dma.hbm_to_vmem [thread:$0]  %s1, 10240, %s24, [#allocation3], 128, 128, 8
    $region9: #{image_encoder_forward.1} parent=1 // pred_fallthru
      _
    // Predicated region
    $region10: #{image_encoder_forward.1} parent=1 // pred_check
      _
    $region11: #{image_encoder_forward.1} parent=1 // pred_check_branch
      %31 = sbr.rel (0) target = $region13
    $region12: #{image_encoder_forward.1} parent=1 // pred_region
      %s33 = ssub.s32 12288, 12288
      %34 = vsyncadd [#allocation5], %s33
      %s35 = sshll.u32 [#allocation4], 4
      %s36 = int_to_ptr.vmem [resolvable:$true] %s35
      %41 = dma.hbm_to_vmem [thread:$0]  %s2, 12288, %s36, [#allocation5], 384, 384, 24
    $region13: #{image_encoder_forward.1} parent=1 // pred_fallthru
      _
    // Predicated region
    $region14: #{image_encoder_forward.1} parent=1 // pred_check
      _
    $region15: #{image_encoder_forward.1} parent=1 // pred_check_branch
      %43 = sbr.rel (0) target = $region17
    $region16: #{image_encoder_forward.1} parent=1 // pred_region
      %s45 = ssub.s32 36864, 36864
      %46 = vsyncadd [#allocation5], %s45
      %s47 = sshll.u32 [#allocation6], 4
      %s48 = int_to_ptr.vmem [resolvable:$true] %s47
      %53 = dma.hbm_to_vmem [thread:$0]  %s3, 36864, %s48, [#allocation5], 384, 384, 24
    $region17: #{image_encoder_forward.1} parent=1 // pred_fallthru
      _
    // Predicated region
    $region18: #{image_encoder_forward.1} parent=1 // pred_check
      _
    $region19: #{image_encoder_forward.1} parent=1 // pred_check_branch
      %55 = sbr.rel (0) target = $region21
    $region20: #{image_encoder_forward.1} parent=1 // pred_region
      %s57 = ssub.s32 96, 96
      %58 = vsyncadd [#allocation8], %s57
      %s60 = sshll.u32 [#allocation7], 4
      %s61 = int_to_ptr.vmem [resolvable:$true] %s60
      %63 = dma.hbm_to_vmem [thread:$0]  %s4, 96, %s61, [#allocation8]
    $region21: #{image_encoder_forward.1} parent=1 // pred_fallthru
      _
    // Predicated region
    $region22: #{image_encoder_forward.1} parent=1 // pred_check
      _
    $region23: #{image_encoder_forward.1} parent=1 // pred_check_branch
      %65 = sbr.rel (0) target = $region25
    $region24: #{image_encoder_forward.1} parent=1 // pred_region
      %s67 = ssub.s32 24576, 24576
      %68 = vsyncadd [#allocation8], %s67
      %s69 = sshll.u32 [#allocation9], 4
      %s70 = int_to_ptr.vmem [resolvable:$true] %s69
      %75 = dma.hbm_to_vmem [thread:$0]  %s5, 24576, %s70, [#allocation8], 256, 256, 16
    $region25: #{image_encoder_forward.1} parent=1 // pred_fallthru
      _
    // Predicated region
    $region26: #{image_encoder_forward.1} parent=1 // pred_check
      _
    $region27: #{image_encoder_forward.1} parent=1 // pred_check_branch
      %77 = sbr.rel (0) target = $region29
    $region28: #{image_encoder_forward.1} parent=1 // pred_region
      %s79 = ssub.s32 64, 64
      %80 = vsyncadd [#allocation11], %s79
      %s82 = sshll.u32 [#allocation10], 4
      %s83 = int_to_ptr.vmem [resolvable:$true] %s82
      %85 = dma.hbm_to_vmem [thread:$0]  %s6, 64, %s83, [#allocation11]
    $region29: #{image_encoder_forward.1} parent=1 // pred_fallthru
      _
    // Predicated region
    $region30: #{image_encoder_forward.1} parent=1 // pred_check
      _
    $region31: #{image_encoder_forward.1} parent=1 // pred_check_branch
      %87 = sbr.rel (0) target = $region33
    $region32: #{image_encoder_forward.1} parent=1 // pred_region
      %88 = dma.done [#allocation3], 10240
    $region33: #{image_encoder_forward.1} parent=1 // pred_fallthru
      _
    // Predicated region
    $region34: #{image_encoder_forward.1} parent=1 // pred_check
      _
    $region35: #{image_encoder_forward.1} parent=1 // pred_check_branch
      %90 = sbr.rel (0) target = $region37
    $region36: #{image_encoder_forward.1} parent=1 // pred_region
      %91 = dma.done [#allocation5], 12288
    $region37: #{image_encoder_forward.1} parent=1 // pred_fallthru
      _
    // Predicated region
    $region38: #{image_encoder_forward.1} parent=1 // pred_check
      _
    $region39: #{image_encoder_forward.1} parent=1 // pred_check_branch
      %93 = sbr.rel (0) target = $region41
    $region40: #{image_encoder_forward.1} parent=1 // pred_region
      %94 = dma.done [#allocation5], 36864
    $region41: #{image_encoder_forward.1} parent=1 // pred_fallthru
      _
    // Predicated region
    $region42: #{image_encoder_forward.1} parent=1 // pred_check
      _
    $region43: #{image_encoder_forward.1} parent=1 // pred_check_branch
      %96 = sbr.rel (0) target = $region45
    $region44: #{image_encoder_forward.1} parent=1 // pred_region
      %97 = dma.done [#allocation8], 96
    $region45: #{image_encoder_forward.1} parent=1 // pred_fallthru
      _
    // Predicated region
    $region46: #{image_encoder_forward.1} parent=1 // pred_check
      _
    $region47: #{image_encoder_forward.1} parent=1 // pred_check_branch
      %99 = sbr.rel (0) target = $region49
    $region48: #{image_encoder_forward.1} parent=1 // pred_region
      %100 = dma.done [#allocation8], 24576
    $region49: #{image_encoder_forward.1} parent=1 // pred_fallthru
      _
    // Predicated region
    $region50: #{image_encoder_forward.1} parent=1 // pred_check
      _
    $region51: #{image_encoder_forward.1} parent=1 // pred_check_branch
      %102 = sbr.rel (0) target = $region53
    $region52: #{image_encoder_forward.1} parent=1 // pred_region
      %103 = dma.done [#allocation11], 64
    $region53: #{image_encoder_forward.1} parent=1 // pred_fallthru
      _
    %v105 = vld [vmem:[%s0] sm:$0xff]
    %v106 = vld [vmem:[%s0 + $0x8] sm:$0xff]
    %v107 = vld [vmem:[%s0 + $0x10] sm:$0xf]
    %v108 = vld [vmem:[#allocation2] sm:$0xff]
    %v109 = vld [vmem:[#allocation2 + $0x8] sm:$0xff]
    %v110 = vld [vmem:[#allocation2 + $0x10] sm:$0xff]
    %v111 = vld [vmem:[#allocation2 + $0x18] sm:$0xff]
    %v112 = vld [vmem:[#allocation2 + $0x20] sm:$0xff]
    %v113 = vld [vmem:[#allocation2 + $0x28] sm:$0xff]
    %v114 = vld [vmem:[#allocation2 + $0x30] sm:$0xff]
    %v115 = vld [vmem:[#allocation2 + $0x38] sm:$0xff]
    %v116 = vld [vmem:[#allocation2 + $0x40] sm:$0xff]
    %v117 = vld [vmem:[#allocation2 + $0x48] sm:$0xff]
    %v118 = vld [vmem:[#allocation2 + $0x50] sm:$0xff]
    %v119 = vld [vmem:[#allocation2 + $0x58] sm:$0xff]
    %v120 = vld [vmem:[#allocation2 + $0x60] sm:$0xff]
    %v121 = vld [vmem:[#allocation2 + $0x68] sm:$0xff]
    %v122 = vld [vmem:[#allocation2 + $0x70] sm:$0xff]
    %v123 = vld [vmem:[#allocation2 + $0x78] sm:$0xff]
    %v124 = vld [vmem:[#allocation2 + $0x80] sm:$0xff]
    %v125 = vld [vmem:[#allocation2 + $0x88] sm:$0xff]
    %v126 = vld [vmem:[#allocation2 + $0x90] sm:$0xff]
    %v127 = vld [vmem:[#allocation2 + $0x98] sm:$0xff]
    %v128 = vld [vmem:[#allocation2 + $0xa0] sm:$0xff]
    %v129 = vld [vmem:[#allocation2 + $0xa8] sm:$0xff]
    %v130 = vld [vmem:[#allocation2 + $0xb0] sm:$0xff]
    %v131 = vld [vmem:[#allocation2 + $0xb8] sm:$0xff]
    %v132 = vld [vmem:[#allocation2 + $0xc0] sm:$0xff]
    %v133 = vld [vmem:[#allocation2 + $0xc8] sm:$0xff]
    %v134 = vld [vmem:[#allocation2 + $0xd0] sm:$0xff]
    %v135 = vld [vmem:[#allocation2 + $0xd8] sm:$0xff]
    %v136 = vld [vmem:[#allocation2 + $0xe0] sm:$0xff]
    %v137 = vld [vmem:[#allocation2 + $0xe8] sm:$0xff]
    %v138 = vld [vmem:[#allocation2 + $0xf0] sm:$0xff]
    %v139 = vld [vmem:[#allocation2 + $0xf8] sm:$0xff]
    %v140 = vld [vmem:[#allocation2 + $0x100] sm:$0xff]
    %v141 = vld [vmem:[#allocation2 + $0x108] sm:$0xff]
    %v142 = vld [vmem:[#allocation2 + $0x110] sm:$0xff]
    %v143 = vld [vmem:[#allocation2 + $0x118] sm:$0xff]
    %v144 = vld [vmem:[#allocation2 + $0x120] sm:$0xff]
    %v145 = vld [vmem:[#allocation2 + $0x128] sm:$0xff]
    %v146 = vld [vmem:[#allocation2 + $0x130] sm:$0xff]
    %v147 = vld [vmem:[#allocation2 + $0x138] sm:$0xff]
    %v148 = vld [vmem:[#allocation2 + $0x140] sm:$0xff]
    %v149 = vld [vmem:[#allocation2 + $0x148] sm:$0xff]
    %v150 = vld [vmem:[#allocation2 + $0x150] sm:$0xff]
    %v151 = vld [vmem:[#allocation2 + $0x158] sm:$0xff]
    %v152 = vld [vmem:[#allocation2 + $0x160] sm:$0xff]
    %v153 = vld [vmem:[#allocation2 + $0x168] sm:$0xff]
    %v154 = vld [vmem:[#allocation2 + $0x170] sm:$0xff]
    %v155 = vld [vmem:[#allocation2 + $0x178] sm:$0xff]
    %v156 = vld [vmem:[#allocation2 + $0x180] sm:$0xff]
    %v157 = vld [vmem:[#allocation2 + $0x188] sm:$0xff]
    %v158 = vld [vmem:[#allocation2 + $0x190] sm:$0xff]
    %v159 = vld [vmem:[#allocation2 + $0x198] sm:$0xff]
    %v160 = vld [vmem:[#allocation2 + $0x1a0] sm:$0xff]
    %v161 = vld [vmem:[#allocation2 + $0x1a8] sm:$0xff]
    %v162 = vld [vmem:[#allocation2 + $0x1b0] sm:$0xff]
    %v163 = vld [vmem:[#allocation2 + $0x1b8] sm:$0xff]
    %v164 = vld [vmem:[#allocation2 + $0x1c0] sm:$0xff]
    %v165 = vld [vmem:[#allocation2 + $0x1c8] sm:$0xff]
    %v166 = vld [vmem:[#allocation2 + $0x1d0] sm:$0xff]
    %v167 = vld [vmem:[#allocation2 + $0x1d8] sm:$0xff]
    %v168 = vld [vmem:[#allocation2 + $0x1e0] sm:$0xff]
    %v169 = vld [vmem:[#allocation2 + $0x1e8] sm:$0xff]
    %v170 = vld [vmem:[#allocation2 + $0x1f0] sm:$0xff]
    %v171 = vld [vmem:[#allocation2 + $0x1f8] sm:$0xff]
    %v172 = vld [vmem:[#allocation2 + $0x200] sm:$0xff]
    %v173 = vld [vmem:[#allocation2 + $0x208] sm:$0xff]
    %v174 = vld [vmem:[#allocation2 + $0x210] sm:$0xff]
    %v175 = vld [vmem:[#allocation2 + $0x218] sm:$0xff]
    %v176 = vld [vmem:[#allocation2 + $0x220] sm:$0xff]
    %v177 = vld [vmem:[#allocation2 + $0x228] sm:$0xff]
    %v178 = vld [vmem:[#allocation2 + $0x230] sm:$0xff]
    %v179 = vld [vmem:[#allocation2 + $0x238] sm:$0xff]
    %v180 = vld [vmem:[#allocation2 + $0x240] sm:$0xff]
    %v181 = vld [vmem:[#allocation2 + $0x248] sm:$0xff]
    %v182 = vld [vmem:[#allocation2 + $0x250] sm:$0xff]
    %v183 = vld [vmem:[#allocation2 + $0x258] sm:$0xff]
    %v184 = vld [vmem:[#allocation2 + $0x260] sm:$0xff]
    %v185 = vld [vmem:[#allocation2 + $0x268] sm:$0xff]
    %v186 = vld [vmem:[#allocation2 + $0x270] sm:$0xff]
    %v187 = vld [vmem:[#allocation2 + $0x278] sm:$0xff]
    %v191 = vunpack.c.l.b16 %v105
    %v192 = vunpack.c.h.b16 %v105
    %v193 = vunpack.c.l.b16 %v106
    %v194 = vunpack.c.h.b16 %v106
    %v195 = vunpack.c.l.b16 %v107
    %v196 = vpack.c.b16 %v191, %v191
    %v197 = vpack.c.b16 %v192, %v192
    %v198 = vpack.c.b16 %v193, %v193
    %v199 = vpack.c.b16 %v194, %v194
    %v200 = vpack.c.b16 %v195, %v195
    %v286 = vunpack.c.l.b16 %v108
    %v287 = vunpack.c.h.b16 %v108
    %v288 = vunpack.c.l.b16 %v109
    %v289 = vunpack.c.h.b16 %v109
    %v290 = vunpack.c.l.b16 %v110
    %v291 = vunpack.c.h.b16 %v110
    %v292 = vunpack.c.l.b16 %v111
    %v293 = vunpack.c.h.b16 %v111
    %v294 = vunpack.c.l.b16 %v112
    %v295 = vunpack.c.h.b16 %v112
    %v296 = vunpack.c.l.b16 %v113
    %v297 = vunpack.c.h.b16 %v113
    %v298 = vunpack.c.l.b16 %v114
    %v299 = vunpack.c.h.b16 %v114
    %v300 = vunpack.c.l.b16 %v115
    %v301 = vunpack.c.h.b16 %v115
    %v302 = vunpack.c.l.b16 %v116
    %v303 = vunpack.c.h.b16 %v116
    %v304 = vunpack.c.l.b16 %v117
    %v305 = vunpack.c.h.b16 %v117
    %v306 = vunpack.c.l.b16 %v118
    %v307 = vunpack.c.h.b16 %v118
    %v308 = vunpack.c.l.b16 %v119
    %v309 = vunpack.c.h.b16 %v119
    %v310 = vunpack.c.l.b16 %v120
    %v311 = vunpack.c.h.b16 %v120
    %v312 = vunpack.c.l.b16 %v121
    %v313 = vunpack.c.h.b16 %v121
    %v314 = vunpack.c.l.b16 %v122
    %v315 = vunpack.c.h.b16 %v122
    %v316 = vunpack.c.l.b16 %v123
    %v317 = vunpack.c.h.b16 %v123
    %v318 = vunpack.c.l.b16 %v124
    %v319 = vunpack.c.h.b16 %v124
    %v320 = vunpack.c.l.b16 %v125
    %v321 = vunpack.c.h.b16 %v125
    %v322 = vunpack.c.l.b16 %v126
    %v323 = vunpack.c.h.b16 %v126
    %v324 = vunpack.c.l.b16 %v127
    %v325 = vunpack.c.h.b16 %v127
    %v326 = vunpack.c.l.b16 %v128
    %v327 = vunpack.c.h.b16 %v128
    %v328 = vunpack.c.l.b16 %v129
    %v329 = vunpack.c.h.b16 %v129
    %v330 = vunpack.c.l.b16 %v130
    %v331 = vunpack.c.h.b16 %v130
    %v332 = vunpack.c.l.b16 %v131
    %v333 = vunpack.c.h.b16 %v131
    %v334 = vunpack.c.l.b16 %v132
    %v335 = vunpack.c.h.b16 %v132
    %v336 = vunpack.c.l.b16 %v133
    %v337 = vunpack.c.h.b16 %v133
    %v338 = vunpack.c.l.b16 %v134
    %v339 = vunpack.c.h.b16 %v134
    %v340 = vunpack.c.l.b16 %v135
    %v341 = vunpack.c.h.b16 %v135
    %v342 = vunpack.c.l.b16 %v136
    %v343 = vunpack.c.h.b16 %v136
    %v344 = vunpack.c.l.b16 %v137
    %v345 = vunpack.c.h.b16 %v137
    %v346 = vunpack.c.l.b16 %v138
    %v347 = vunpack.c.h.b16 %v138
    %v348 = vunpack.c.l.b16 %v139
    %v349 = vunpack.c.h.b16 %v139
    %v350 = vunpack.c.l.b16 %v140
    %v351 = vunpack.c.h.b16 %v140
    %v352 = vunpack.c.l.b16 %v141
    %v353 = vunpack.c.h.b16 %v141
    %v354 = vunpack.c.l.b16 %v142
    %v355 = vunpack.c.h.b16 %v142
    %v356 = vunpack.c.l.b16 %v143
    %v357 = vunpack.c.h.b16 %v143
    %v358 = vunpack.c.l.b16 %v144
    %v359 = vunpack.c.h.b16 %v144
    %v360 = vunpack.c.l.b16 %v145
    %v361 = vunpack.c.h.b16 %v145
    %v362 = vunpack.c.l.b16 %v146
    %v363 = vunpack.c.h.b16 %v146
    %v364 = vunpack.c.l.b16 %v147
    %v365 = vunpack.c.h.b16 %v147
    %v366 = vunpack.c.l.b16 %v148
    %v367 = vunpack.c.h.b16 %v148
    %v368 = vunpack.c.l.b16 %v149
    %v369 = vunpack.c.h.b16 %v149
    %v370 = vunpack.c.l.b16 %v150
    %v371 = vunpack.c.h.b16 %v150
    %v372 = vunpack.c.l.b16 %v151
    %v373 = vunpack.c.h.b16 %v151
    %v374 = vunpack.c.l.b16 %v152
    %v375 = vunpack.c.h.b16 %v152
    %v376 = vunpack.c.l.b16 %v153
    %v377 = vunpack.c.h.b16 %v153
    %v378 = vunpack.c.l.b16 %v154
    %v379 = vunpack.c.h.b16 %v154
    %v380 = vunpack.c.l.b16 %v155
    %v381 = vunpack.c.h.b16 %v155
    %v382 = vunpack.c.l.b16 %v156
    %v383 = vunpack.c.h.b16 %v156
    %v384 = vunpack.c.l.b16 %v157
    %v385 = vunpack.c.h.b16 %v157
    %v386 = vunpack.c.l.b16 %v158
    %v387 = vunpack.c.h.b16 %v158
    %v388 = vunpack.c.l.b16 %v159
    %v389 = vunpack.c.h.b16 %v159
    %v390 = vunpack.c.l.b16 %v160
    %v391 = vunpack.c.h.b16 %v160
    %v392 = vunpack.c.l.b16 %v161
    %v393 = vunpack.c.h.b16 %v161
    %v394 = vunpack.c.l.b16 %v162
    %v395 = vunpack.c.h.b16 %v162
    %v396 = vunpack.c.l.b16 %v163
    %v397 = vunpack.c.h.b16 %v163
    %v398 = vunpack.c.l.b16 %v164
    %v399 = vunpack.c.h.b16 %v164
    %v400 = vunpack.c.l.b16 %v165
    %v401 = vunpack.c.h.b16 %v165
    %v402 = vunpack.c.l.b16 %v166
    %v403 = vunpack.c.h.b16 %v166
    %v404 = vunpack.c.l.b16 %v167
    %v405 = vunpack.c.h.b16 %v167
    %v406 = vunpack.c.l.b16 %v168
    %v407 = vunpack.c.h.b16 %v168
    %v408 = vunpack.c.l.b16 %v169
    %v409 = vunpack.c.h.b16 %v169
    %v410 = vunpack.c.l.b16 %v170
    %v411 = vunpack.c.h.b16 %v170
    %v412 = vunpack.c.l.b16 %v171
    %v413 = vunpack.c.h.b16 %v171
    %v414 = vunpack.c.l.b16 %v172
    %v415 = vunpack.c.h.b16 %v172
    %v416 = vunpack.c.l.b16 %v173
    %v417 = vunpack.c.h.b16 %v173
    %v418 = vunpack.c.l.b16 %v174
    %v419 = vunpack.c.h.b16 %v174
    %v420 = vunpack.c.l.b16 %v175
    %v421 = vunpack.c.h.b16 %v175
    %v422 = vunpack.c.l.b16 %v176
    %v423 = vunpack.c.h.b16 %v176
    %v424 = vunpack.c.l.b16 %v177
    %v425 = vunpack.c.h.b16 %v177
    %v426 = vunpack.c.l.b16 %v178
    %v427 = vunpack.c.h.b16 %v178
    %v428 = vunpack.c.l.b16 %v179
    %v429 = vunpack.c.h.b16 %v179
    %v430 = vunpack.c.l.b16 %v180
    %v431 = vunpack.c.h.b16 %v180
    %v432 = vunpack.c.l.b16 %v181
    %v433 = vunpack.c.h.b16 %v181
    %v434 = vunpack.c.l.b16 %v182
    %v435 = vunpack.c.h.b16 %v182
    %v436 = vunpack.c.l.b16 %v183
    %v437 = vunpack.c.h.b16 %v183
    %v438 = vunpack.c.l.b16 %v184
    %v439 = vunpack.c.h.b16 %v184
    %v440 = vunpack.c.l.b16 %v185
    %v441 = vunpack.c.h.b16 %v185
    %v442 = vunpack.c.l.b16 %v186
    %v443 = vunpack.c.h.b16 %v186
    %v444 = vunpack.c.l.b16 %v187
    %v445 = vunpack.c.h.b16 %v187
    %v446 = vpack.c.b16 %v288, %v286
    %v447 = vpack.c.b16 %v289, %v287
    %v448 = vpack.c.b16 %v292, %v290
    %v449 = vpack.c.b16 %v293, %v291
    %v450 = vpack.c.b16 %v296, %v294
    %v451 = vpack.c.b16 %v297, %v295
    %v452 = vpack.c.b16 %v300, %v298
    %v453 = vpack.c.b16 %v301, %v299
    %v454 = vpack.c.b16 %v304, %v302
    %v455 = vpack.c.b16 %v305, %v303
    %v456 = vpack.c.b16 %v308, %v306
    %v457 = vpack.c.b16 %v309, %v307
    %v458 = vpack.c.b16 %v312, %v310
    %v459 = vpack.c.b16 %v313, %v311
    %v460 = vpack.c.b16 %v316, %v314
    %v461 = vpack.c.b16 %v317, %v315
    %v462 = vpack.c.b16 %v320, %v318
    %v463 = vpack.c.b16 %v321, %v319
    %v464 = vpack.c.b16 %v324, %v322
    %v465 = vpack.c.b16 %v325, %v323
    %v466 = vpack.c.b16 %v328, %v326
    %v467 = vpack.c.b16 %v329, %v327
    %v468 = vpack.c.b16 %v332, %v330
    %v469 = vpack.c.b16 %v333, %v331
    %v470 = vpack.c.b16 %v336, %v334
    %v471 = vpack.c.b16 %v337, %v335
    %v472 = vpack.c.b16 %v340, %v338
    %v473 = vpack.c.b16 %v341, %v339
    %v474 = vpack.c.b16 %v344, %v342
    %v475 = vpack.c.b16 %v345, %v343
    %v476 = vpack.c.b16 %v348, %v346
    %v477 = vpack.c.b16 %v349, %v347
    %v478 = vpack.c.b16 %v352, %v350
    %v479 = vpack.c.b16 %v353, %v351
    %v480 = vpack.c.b16 %v356, %v354
    %v481 = vpack.c.b16 %v357, %v355
    %v482 = vpack.c.b16 %v360, %v358
    %v483 = vpack.c.b16 %v361, %v359
    %v484 = vpack.c.b16 %v364, %v362
    %v485 = vpack.c.b16 %v365, %v363
    %v486 = vpack.c.b16 %v368, %v366
    %v487 = vpack.c.b16 %v369, %v367
    %v488 = vpack.c.b16 %v372, %v370
    %v489 = vpack.c.b16 %v373, %v371
    %v490 = vpack.c.b16 %v376, %v374
    %v491 = vpack.c.b16 %v377, %v375
    %v492 = vpack.c.b16 %v380, %v378
    %v493 = vpack.c.b16 %v381, %v379
    %v494 = vpack.c.b16 %v384, %v382
    %v495 = vpack.c.b16 %v385, %v383
    %v496 = vpack.c.b16 %v388, %v386
    %v497 = vpack.c.b16 %v389, %v387
    %v498 = vpack.c.b16 %v392, %v390
    %v499 = vpack.c.b16 %v393, %v391
    %v500 = vpack.c.b16 %v396, %v394
    %v501 = vpack.c.b16 %v397, %v395
    %v502 = vpack.c.b16 %v400, %v398
    %v503 = vpack.c.b16 %v401, %v399
    %v504 = vpack.c.b16 %v404, %v402
    %v505 = vpack.c.b16 %v405, %v403
    %v506 = vpack.c.b16 %v408, %v406
    %v507 = vpack.c.b16 %v409, %v407
    %v508 = vpack.c.b16 %v412, %v410
    %v509 = vpack.c.b16 %v413, %v411
    %v510 = vpack.c.b16 %v416, %v414
    %v511 = vpack.c.b16 %v417, %v415
    %v512 = vpack.c.b16 %v420, %v418
    %v513 = vpack.c.b16 %v421, %v419
    %v514 = vpack.c.b16 %v424, %v422
    %v515 = vpack.c.b16 %v425, %v423
    %v516 = vpack.c.b16 %v428, %v426
    %v517 = vpack.c.b16 %v429, %v427
    %v518 = vpack.c.b16 %v432, %v430
    %v519 = vpack.c.b16 %v433, %v431
    %v520 = vpack.c.b16 %v436, %v434
    %v521 = vpack.c.b16 %v437, %v435
    %v522 = vpack.c.b16 %v440, %v438
    %v523 = vpack.c.b16 %v441, %v439
    %v524 = vpack.c.b16 %v444, %v442
    %v525 = vpack.c.b16 %v445, %v443
    %606 = vmatprep.subr.bf16.mxu0 %v461
    %607 = vmatpush1.bf16.msra.mxu0 %v460
    %608 = vmatprep.subr.bf16.mxu0 %v459
    %609 = vmatpush1.bf16.msra.mxu0 %v458
    %610 = vmatprep.subr.bf16.mxu0 %v457
    %611 = vmatpush1.bf16.msra.mxu0 %v456
    %612 = vmatprep.subr.bf16.mxu0 %v455
    %613 = vmatpush1.bf16.msra.mxu0 %v454
    %614 = vmatprep.subr.bf16.mxu0 %v453
    %615 = vmatpush1.bf16.msra.mxu0 %v452
    %616 = vmatprep.subr.bf16.mxu0 %v451
    %617 = vmatpush1.bf16.msra.mxu0 %v450
    %618 = vmatprep.subr.bf16.mxu0 %v449
    %619 = vmatpush1.bf16.msra.mxu0 %v448
    %620 = vmatprep.subr.bf16.mxu0 %v447
    %621 = vmatpush1.bf16.msra.mxu0 %v446
    %622 = vmatprep.subr.bf16.mxu0 %v477
    %623 = vmatpush2.bf16.msra.mxu0 %v476
    %624 = vmatprep.subr.bf16.mxu0 %v475
    %625 = vmatpush2.bf16.msra.mxu0 %v474
    %626 = vmatprep.subr.bf16.mxu0 %v473
    %627 = vmatpush2.bf16.msra.mxu0 %v472
    %628 = vmatprep.subr.bf16.mxu0 %v471
    %629 = vmatpush2.bf16.msra.mxu0 %v470
    %630 = vmatprep.subr.bf16.mxu0 %v469
    %631 = vmatpush2.bf16.msra.mxu0 %v468
    %632 = vmatprep.subr.bf16.mxu0 %v467
    %633 = vmatpush2.bf16.msra.mxu0 %v466
    %634 = vmatprep.subr.bf16.mxu0 %v465
    %635 = vmatpush2.bf16.msra.mxu0 %v464
    %636 = vmatprep.subr.bf16.mxu0 %v463
    %637 = vmatpush2.bf16.msra.mxu0 %v462
    %638 = vmatprep.mubr.bf16.mxu0 %v197
    %639 = vmatmul.mubr.bf16.gmra.mxu0 %v196
    %v640 = vpop.f32.mrf.mxu0
    %v641 = vadd.f32 0.0, %v640
    %v642 = vpop.f32.mrf.mxu0
    %v643 = vadd.f32 0.0, %v642
    %v644 = vpop.f32.mrf.mxu0
    %v645 = vpop.f32.mrf.mxu0
    %646 = vdwg.mxu0
    %647 = vmatprep.subr.bf16.mxu0 %v493
    %648 = vmatpush1.bf16.msra.mxu0 %v492
    %649 = vmatprep.subr.bf16.mxu0 %v491
    %650 = vmatpush1.bf16.msra.mxu0 %v490
    %651 = vmatprep.subr.bf16.mxu0 %v489
    %652 = vmatpush1.bf16.msra.mxu0 %v488
    %653 = vmatprep.subr.bf16.mxu0 %v487
    %654 = vmatpush1.bf16.msra.mxu0 %v486
    %655 = vmatprep.subr.bf16.mxu0 %v485
    %656 = vmatpush1.bf16.msra.mxu0 %v484
    %657 = vmatprep.subr.bf16.mxu0 %v483
    %658 = vmatpush1.bf16.msra.mxu0 %v482
    %659 = vmatprep.subr.bf16.mxu0 %v481
    %660 = vmatpush1.bf16.msra.mxu0 %v480
    %661 = vmatprep.subr.bf16.mxu0 %v479
    %662 = vmatpush1.bf16.msra.mxu0 %v478
    %663 = vmatprep.subr.bf16.mxu0 %v509
    %664 = vmatpush2.bf16.msra.mxu0 %v508
    %665 = vmatprep.subr.bf16.mxu0 %v507
    %666 = vmatpush2.bf16.msra.mxu0 %v506
    %667 = vmatprep.subr.bf16.mxu0 %v505
    %668 = vmatpush2.bf16.msra.mxu0 %v504
    %669 = vmatprep.subr.bf16.mxu0 %v503
    %670 = vmatpush2.bf16.msra.mxu0 %v502
    %671 = vmatprep.subr.bf16.mxu0 %v501
    %672 = vmatpush2.bf16.msra.mxu0 %v500
    %673 = vmatprep.subr.bf16.mxu0 %v499
    %674 = vmatpush2.bf16.msra.mxu0 %v498
    %675 = vmatprep.subr.bf16.mxu0 %v497
    %676 = vmatpush2.bf16.msra.mxu0 %v496
    %677 = vmatprep.subr.bf16.mxu0 %v495
    %678 = vmatpush2.bf16.msra.mxu0 %v494
    %679 = vmatprep.mubr.bf16.mxu0 %v199
    %680 = vmatmul.mubr.bf16.gmra.mxu0 %v198
    %v681 = vpop.f32.mrf.mxu0
    %v682 = vadd.f32 %v641, %v681
    %v683 = vpop.f32.mrf.mxu0
    %v684 = vadd.f32 %v643, %v683
    %v685 = vpop.f32.mrf.mxu0
    %v686 = vpop.f32.mrf.mxu0
    %687 = vdwg.mxu0
    %688 = vmatprep.subr.bf16.mxu0 %v525
    %689 = vmatpush1.bf16.msra.mxu0 %v524
    %690 = vmatprep.subr.bf16.mxu0 %v523
    %691 = vmatpush1.bf16.msra.mxu0 %v522
    %692 = vmatprep.subr.bf16.mxu0 %v521
    %693 = vmatpush1.bf16.msra.mxu0 %v520
    %694 = vmatprep.subr.bf16.mxu0 %v519
    %695 = vmatpush1.bf16.msra.mxu0 %v518
    %696 = vmatprep.subr.bf16.mxu0 %v517
    %697 = vmatpush1.bf16.msra.mxu0 %v516
    %698 = vmatprep.subr.bf16.mxu0 %v515
    %699 = vmatpush1.bf16.msra.mxu0 %v514
    %700 = vmatprep.subr.bf16.mxu0 %v513
    %701 = vmatpush1.bf16.msra.mxu0 %v512
    %702 = vmatprep.subr.bf16.mxu0 %v511
    %703 = vmatpush1.bf16.msra.mxu0 %v510
    %704 = vmatprep.subr.bf16.mxu0 0
    %705 = vmatpush2.bf16.msra.mxu0 0
    %706 = vmatprep.subr.bf16.mxu0 0
    %707 = vmatpush2.bf16.msra.mxu0 0
    %708 = vmatprep.subr.bf16.mxu0 0
    %709 = vmatpush2.bf16.msra.mxu0 0
    %710 = vmatprep.subr.bf16.mxu0 0
    %711 = vmatpush2.bf16.msra.mxu0 0
    %712 = vmatprep.subr.bf16.mxu0 0
    %713 = vmatpush2.bf16.msra.mxu0 0
    %714 = vmatprep.subr.bf16.mxu0 0
    %715 = vmatpush2.bf16.msra.mxu0 0
    %716 = vmatprep.subr.bf16.mxu0 0
    %717 = vmatpush2.bf16.msra.mxu0 0
    %718 = vmatprep.subr.bf16.mxu0 0
    %719 = vmatpush2.bf16.msra.mxu0 0
    %720 = vmatprep.mubr.bf16.mxu0 0
    %721 = vmatmul.mubr.bf16.gmra.mxu0 %v200
    %v722 = vpop.f32.mrf.mxu0
    %v723 = vadd.f32 %v682, %v722
    %v724 = vpop.f32.mrf.mxu0
    %v725 = vadd.f32 %v684, %v724
    %v726 = vpop.f32.mrf.mxu0
    %v727 = vpop.f32.mrf.mxu0
    %728 = vdwg.mxu0
    %v729 = vpack.c.bf16 %v723, %v723
    %v730 = vpack.c.bf16 %v725, %v725
    %v731 = vld [vmem:[#allocation4] sm:$0xff]
    %v732 = vld [vmem:[#allocation4 + $0x8] sm:$0xff]
    %v733 = vld [vmem:[#allocation4 + $0x10] sm:$0xff]
    %v734 = vld [vmem:[#allocation4 + $0x18] sm:$0xff]
    %v735 = vld [vmem:[#allocation4 + $0x20] sm:$0xff]
    %v736 = vld [vmem:[#allocation4 + $0x28] sm:$0xff]
    %v737 = vld [vmem:[#allocation4 + $0x30] sm:$0xff]
    %v738 = vld [vmem:[#allocation4 + $0x38] sm:$0xff]
    %v739 = vld [vmem:[#allocation4 + $0x40] sm:$0xff]
    %v740 = vld [vmem:[#allocation4 + $0x48] sm:$0xff]
    %v741 = vld [vmem:[#allocation4 + $0x50] sm:$0xff]
    %v742 = vld [vmem:[#allocation4 + $0x58] sm:$0xff]
    %v743 = vld [vmem:[#allocation4 + $0x60] sm:$0xff]
    %v744 = vld [vmem:[#allocation4 + $0x68] sm:$0xff]
    %v745 = vld [vmem:[#allocation4 + $0x70] sm:$0xff]
    %v746 = vld [vmem:[#allocation4 + $0x78] sm:$0xff]
    %v747 = vld [vmem:[#allocation4 + $0x80] sm:$0xff]
    %v748 = vld [vmem:[#allocation4 + $0x88] sm:$0xff]
    %v749 = vld [vmem:[#allocation4 + $0x90] sm:$0xff]
    %v750 = vld [vmem:[#allocation4 + $0x98] sm:$0xff]
    %v751 = vld [vmem:[#allocation4 + $0xa0] sm:$0xff]
    %v752 = vld [vmem:[#allocation4 + $0xa8] sm:$0xff]
    %v753 = vld [vmem:[#allocation4 + $0xb0] sm:$0xff]
    %v754 = vld [vmem:[#allocation4 + $0xb8] sm:$0xff]
    %v755 = vld [vmem:[#allocation4 + $0xc0] sm:$0xff]
    %v756 = vld [vmem:[#allocation4 + $0xc8] sm:$0xff]
    %v757 = vld [vmem:[#allocation4 + $0xd0] sm:$0xff]
    %v758 = vld [vmem:[#allocation4 + $0xd8] sm:$0xff]
    %v759 = vld [vmem:[#allocation4 + $0xe0] sm:$0xff]
    %v760 = vld [vmem:[#allocation4 + $0xe8] sm:$0xff]
    %v761 = vld [vmem:[#allocation4 + $0xf0] sm:$0xff]
    %v762 = vld [vmem:[#allocation4 + $0xf8] sm:$0xff]
    %v763 = vld [vmem:[#allocation4 + $0x100] sm:$0xff]
    %v764 = vld [vmem:[#allocation4 + $0x108] sm:$0xff]
    %v765 = vld [vmem:[#allocation4 + $0x110] sm:$0xff]
    %v766 = vld [vmem:[#allocation4 + $0x118] sm:$0xff]
    %v767 = vld [vmem:[#allocation4 + $0x120] sm:$0xff]
    %v768 = vld [vmem:[#allocation4 + $0x128] sm:$0xff]
    %v769 = vld [vmem:[#allocation4 + $0x130] sm:$0xff]
    %v770 = vld [vmem:[#allocation4 + $0x138] sm:$0xff]
    %v771 = vld [vmem:[#allocation4 + $0x140] sm:$0xff]
    %v772 = vld [vmem:[#allocation4 + $0x148] sm:$0xff]
    %v773 = vld [vmem:[#allocation4 + $0x150] sm:$0xff]
    %v774 = vld [vmem:[#allocation4 + $0x158] sm:$0xff]
    %v775 = vld [vmem:[#allocation4 + $0x160] sm:$0xff]
    %v776 = vld [vmem:[#allocation4 + $0x168] sm:$0xff]
    %v777 = vld [vmem:[#allocation4 + $0x170] sm:$0xff]
    %v778 = vld [vmem:[#allocation4 + $0x178] sm:$0xff]
    %v779 = vld [vmem:[#allocation4 + $0x180] sm:$0xff]
    %v780 = vld [vmem:[#allocation4 + $0x188] sm:$0xff]
    %v781 = vld [vmem:[#allocation4 + $0x190] sm:$0xff]
    %v782 = vld [vmem:[#allocation4 + $0x198] sm:$0xff]
    %v783 = vld [vmem:[#allocation4 + $0x1a0] sm:$0xff]
    %v784 = vld [vmem:[#allocation4 + $0x1a8] sm:$0xff]
    %v785 = vld [vmem:[#allocation4 + $0x1b0] sm:$0xff]
    %v786 = vld [vmem:[#allocation4 + $0x1b8] sm:$0xff]
    %v787 = vld [vmem:[#allocation4 + $0x1c0] sm:$0xff]
    %v788 = vld [vmem:[#allocation4 + $0x1c8] sm:$0xff]
    %v789 = vld [vmem:[#allocation4 + $0x1d0] sm:$0xff]
    %v790 = vld [vmem:[#allocation4 + $0x1d8] sm:$0xff]
    %v791 = vld [vmem:[#allocation4 + $0x1e0] sm:$0xff]
    %v792 = vld [vmem:[#allocation4 + $0x1e8] sm:$0xff]
    %v793 = vld [vmem:[#allocation4 + $0x1f0] sm:$0xff]
    %v794 = vld [vmem:[#allocation4 + $0x1f8] sm:$0xff]
    %v795 = vld [vmem:[#allocation4 + $0x200] sm:$0xff]
    %v796 = vld [vmem:[#allocation4 + $0x208] sm:$0xff]
    %v797 = vld [vmem:[#allocation4 + $0x210] sm:$0xff]
    %v798 = vld [vmem:[#allocation4 + $0x218] sm:$0xff]
    %v799 = vld [vmem:[#allocation4 + $0x220] sm:$0xff]
    %v800 = vld [vmem:[#allocation4 + $0x228] sm:$0xff]
    %v801 = vld [vmem:[#allocation4 + $0x230] sm:$0xff]
    %v802 = vld [vmem:[#allocation4 + $0x238] sm:$0xff]
    %v803 = vld [vmem:[#allocation4 + $0x240] sm:$0xff]
    %v804 = vld [vmem:[#allocation4 + $0x248] sm:$0xff]
    %v805 = vld [vmem:[#allocation4 + $0x250] sm:$0xff]
    %v806 = vld [vmem:[#allocation4 + $0x258] sm:$0xff]
    %v807 = vld [vmem:[#allocation4 + $0x260] sm:$0xff]
    %v808 = vld [vmem:[#allocation4 + $0x268] sm:$0xff]
    %v809 = vld [vmem:[#allocation4 + $0x270] sm:$0xff]
    %v810 = vld [vmem:[#allocation4 + $0x278] sm:$0xff]
    %v811 = vld [vmem:[#allocation4 + $0x280] sm:$0xff]
    %v812 = vld [vmem:[#allocation4 + $0x288] sm:$0xff]
    %v813 = vld [vmem:[#allocation4 + $0x290] sm:$0xff]
    %v814 = vld [vmem:[#allocation4 + $0x298] sm:$0xff]
    %v815 = vld [vmem:[#allocation4 + $0x2a0] sm:$0xff]
    %v816 = vld [vmem:[#allocation4 + $0x2a8] sm:$0xff]
    %v817 = vld [vmem:[#allocation4 + $0x2b0] sm:$0xff]
    %v818 = vld [vmem:[#allocation4 + $0x2b8] sm:$0xff]
    %v819 = vld [vmem:[#allocation4 + $0x2c0] sm:$0xff]
    %v820 = vld [vmem:[#allocation4 + $0x2c8] sm:$0xff]
    %v821 = vld [vmem:[#allocation4 + $0x2d0] sm:$0xff]
    %v822 = vld [vmem:[#allocation4 + $0x2d8] sm:$0xff]
    %v823 = vld [vmem:[#allocation4 + $0x2e0] sm:$0xff]
    %v824 = vld [vmem:[#allocation4 + $0x2e8] sm:$0xff]
    %v825 = vld [vmem:[#allocation4 + $0x2f0] sm:$0xff]
    %v826 = vld [vmem:[#allocation4 + $0x2f8] sm:$0xff]
    %v923 = vunpack.c.l.b16 %v731
    %v924 = vunpack.c.h.b16 %v731
    %v925 = vunpack.c.l.b16 %v732
    %v926 = vunpack.c.h.b16 %v732
    %v927 = vunpack.c.l.b16 %v733
    %v928 = vunpack.c.h.b16 %v733
    %v929 = vunpack.c.l.b16 %v734
    %v930 = vunpack.c.h.b16 %v734
    %v931 = vunpack.c.l.b16 %v735
    %v932 = vunpack.c.h.b16 %v735
    %v933 = vunpack.c.l.b16 %v736
    %v934 = vunpack.c.h.b16 %v736
    %v935 = vunpack.c.l.b16 %v737
    %v936 = vunpack.c.h.b16 %v737
    %v937 = vunpack.c.l.b16 %v738
    %v938 = vunpack.c.h.b16 %v738
    %v939 = vunpack.c.l.b16 %v739
    %v940 = vunpack.c.h.b16 %v739
    %v941 = vunpack.c.l.b16 %v740
    %v942 = vunpack.c.h.b16 %v740
    %v943 = vunpack.c.l.b16 %v741
    %v944 = vunpack.c.h.b16 %v741
    %v945 = vunpack.c.l.b16 %v742
    %v946 = vunpack.c.h.b16 %v742
    %v947 = vunpack.c.l.b16 %v743
    %v948 = vunpack.c.h.b16 %v743
    %v949 = vunpack.c.l.b16 %v744
    %v950 = vunpack.c.h.b16 %v744
    %v951 = vunpack.c.l.b16 %v745
    %v952 = vunpack.c.h.b16 %v745
    %v953 = vunpack.c.l.b16 %v746
    %v954 = vunpack.c.h.b16 %v746
    %v955 = vunpack.c.l.b16 %v747
    %v956 = vunpack.c.h.b16 %v747
    %v957 = vunpack.c.l.b16 %v748
    %v958 = vunpack.c.h.b16 %v748
    %v959 = vunpack.c.l.b16 %v749
    %v960 = vunpack.c.h.b16 %v749
    %v961 = vunpack.c.l.b16 %v750
    %v962 = vunpack.c.h.b16 %v750
    %v963 = vunpack.c.l.b16 %v751
    %v964 = vunpack.c.h.b16 %v751
    %v965 = vunpack.c.l.b16 %v752
    %v966 = vunpack.c.h.b16 %v752
    %v967 = vunpack.c.l.b16 %v753
    %v968 = vunpack.c.h.b16 %v753
    %v969 = vunpack.c.l.b16 %v754
    %v970 = vunpack.c.h.b16 %v754
    %v971 = vunpack.c.l.b16 %v755
    %v972 = vunpack.c.h.b16 %v755
    %v973 = vunpack.c.l.b16 %v756
    %v974 = vunpack.c.h.b16 %v756
    %v975 = vunpack.c.l.b16 %v757
    %v976 = vunpack.c.h.b16 %v757
    %v977 = vunpack.c.l.b16 %v758
    %v978 = vunpack.c.h.b16 %v758
    %v979 = vunpack.c.l.b16 %v759
    %v980 = vunpack.c.h.b16 %v759
    %v981 = vunpack.c.l.b16 %v760
    %v982 = vunpack.c.h.b16 %v760
    %v983 = vunpack.c.l.b16 %v761
    %v984 = vunpack.c.h.b16 %v761
    %v985 = vunpack.c.l.b16 %v762
    %v986 = vunpack.c.h.b16 %v762
    %v987 = vunpack.c.l.b16 %v763
    %v988 = vunpack.c.h.b16 %v763
    %v989 = vunpack.c.l.b16 %v764
    %v990 = vunpack.c.h.b16 %v764
    %v991 = vunpack.c.l.b16 %v765
    %v992 = vunpack.c.h.b16 %v765
    %v993 = vunpack.c.l.b16 %v766
    %v994 = vunpack.c.h.b16 %v766
    %v995 = vunpack.c.l.b16 %v767
    %v996 = vunpack.c.h.b16 %v767
    %v997 = vunpack.c.l.b16 %v768
    %v998 = vunpack.c.h.b16 %v768
    %v999 = vunpack.c.l.b16 %v769
    %v1000 = vunpack.c.h.b16 %v769
    %v1001 = vunpack.c.l.b16 %v770
    %v1002 = vunpack.c.h.b16 %v770
    %v1003 = vunpack.c.l.b16 %v771
    %v1004 = vunpack.c.h.b16 %v771
    %v1005 = vunpack.c.l.b16 %v772
    %v1006 = vunpack.c.h.b16 %v772
    %v1007 = vunpack.c.l.b16 %v773
    %v1008 = vunpack.c.h.b16 %v773
    %v1009 = vunpack.c.l.b16 %v774
    %v1010 = vunpack.c.h.b16 %v774
    %v1011 = vunpack.c.l.b16 %v775
    %v1012 = vunpack.c.h.b16 %v775
    %v1013 = vunpack.c.l.b16 %v776
    %v1014 = vunpack.c.h.b16 %v776
    %v1015 = vunpack.c.l.b16 %v777
    %v1016 = vunpack.c.h.b16 %v777
    %v1017 = vunpack.c.l.b16 %v778
    %v1018 = vunpack.c.h.b16 %v778
    %v1019 = vunpack.c.l.b16 %v779
    %v1020 = vunpack.c.h.b16 %v779
    %v1021 = vunpack.c.l.b16 %v780
    %v1022 = vunpack.c.h.b16 %v780
    %v1023 = vunpack.c.l.b16 %v781
    %v1024 = vunpack.c.h.b16 %v781
    %v1025 = vunpack.c.l.b16 %v782
    %v1026 = vunpack.c.h.b16 %v782
    %v1027 = vunpack.c.l.b16 %v783
    %v1028 = vunpack.c.h.b16 %v783
    %v1029 = vunpack.c.l.b16 %v784
    %v1030 = vunpack.c.h.b16 %v784
    %v1031 = vunpack.c.l.b16 %v785
    %v1032 = vunpack.c.h.b16 %v785
    %v1033 = vunpack.c.l.b16 %v786
    %v1034 = vunpack.c.h.b16 %v786
    %v1035 = vunpack.c.l.b16 %v787
    %v1036 = vunpack.c.h.b16 %v787
    %v1037 = vunpack.c.l.b16 %v788
    %v1038 = vunpack.c.h.b16 %v788
    %v1039 = vunpack.c.l.b16 %v789
    %v1040 = vunpack.c.h.b16 %v789
    %v1041 = vunpack.c.l.b16 %v790
    %v1042 = vunpack.c.h.b16 %v790
    %v1043 = vunpack.c.l.b16 %v791
    %v1044 = vunpack.c.h.b16 %v791
    %v1045 = vunpack.c.l.b16 %v792
    %v1046 = vunpack.c.h.b16 %v792
    %v1047 = vunpack.c.l.b16 %v793
    %v1048 = vunpack.c.h.b16 %v793
    %v1049 = vunpack.c.l.b16 %v794
    %v1050 = vunpack.c.h.b16 %v794
    %v1051 = vunpack.c.l.b16 %v795
    %v1052 = vunpack.c.h.b16 %v795
    %v1053 = vunpack.c.l.b16 %v796
    %v1054 = vunpack.c.h.b16 %v796
    %v1055 = vunpack.c.l.b16 %v797
    %v1056 = vunpack.c.h.b16 %v797
    %v1057 = vunpack.c.l.b16 %v798
    %v1058 = vunpack.c.h.b16 %v798
    %v1059 = vunpack.c.l.b16 %v799
    %v1060 = vunpack.c.h.b16 %v799
    %v1061 = vunpack.c.l.b16 %v800
    %v1062 = vunpack.c.h.b16 %v800
    %v1063 = vunpack.c.l.b16 %v801
    %v1064 = vunpack.c.h.b16 %v801
    %v1065 = vunpack.c.l.b16 %v802
    %v1066 = vunpack.c.h.b16 %v802
    %v1067 = vunpack.c.l.b16 %v803
    %v1068 = vunpack.c.h.b16 %v803
    %v1069 = vunpack.c.l.b16 %v804
    %v1070 = vunpack.c.h.b16 %v804
    %v1071 = vunpack.c.l.b16 %v805
    %v1072 = vunpack.c.h.b16 %v805
    %v1073 = vunpack.c.l.b16 %v806
    %v1074 = vunpack.c.h.b16 %v806
    %v1075 = vunpack.c.l.b16 %v807
    %v1076 = vunpack.c.h.b16 %v807
    %v1077 = vunpack.c.l.b16 %v808
    %v1078 = vunpack.c.h.b16 %v808
    %v1079 = vunpack.c.l.b16 %v809
    %v1080 = vunpack.c.h.b16 %v809
    %v1081 = vunpack.c.l.b16 %v810
    %v1082 = vunpack.c.h.b16 %v810
    %v1083 = vunpack.c.l.b16 %v811
    %v1084 = vunpack.c.h.b16 %v811
    %v1085 = vunpack.c.l.b16 %v812
    %v1086 = vunpack.c.h.b16 %v812
    %v1087 = vunpack.c.l.b16 %v813
    %v1088 = vunpack.c.h.b16 %v813
    %v1089 = vunpack.c.l.b16 %v814
    %v1090 = vunpack.c.h.b16 %v814
    %v1091 = vunpack.c.l.b16 %v815
    %v1092 = vunpack.c.h.b16 %v815
    %v1093 = vunpack.c.l.b16 %v816
    %v1094 = vunpack.c.h.b16 %v816
    %v1095 = vunpack.c.l.b16 %v817
    %v1096 = vunpack.c.h.b16 %v817
    %v1097 = vunpack.c.l.b16 %v818
    %v1098 = vunpack.c.h.b16 %v818
    %v1099 = vunpack.c.l.b16 %v819
    %v1100 = vunpack.c.h.b16 %v819
    %v1101 = vunpack.c.l.b16 %v820
    %v1102 = vunpack.c.h.b16 %v820
    %v1103 = vunpack.c.l.b16 %v821
    %v1104 = vunpack.c.h.b16 %v821
    %v1105 = vunpack.c.l.b16 %v822
    %v1106 = vunpack.c.h.b16 %v822
    %v1107 = vunpack.c.l.b16 %v823
    %v1108 = vunpack.c.h.b16 %v823
    %v1109 = vunpack.c.l.b16 %v824
    %v1110 = vunpack.c.h.b16 %v824
    %v1111 = vunpack.c.l.b16 %v825
    %v1112 = vunpack.c.h.b16 %v825
    %v1113 = vunpack.c.l.b16 %v826
    %v1114 = vunpack.c.h.b16 %v826
    %v1115 = vpack.c.b16 %v929, %v923
    %v1116 = vpack.c.b16 %v930, %v924
    %v1117 = vpack.c.b16 %v931, %v925
    %v1118 = vpack.c.b16 %v932, %v926
    %v1119 = vpack.c.b16 %v933, %v927
    %v1120 = vpack.c.b16 %v934, %v928
    %v1121 = vpack.c.b16 %v941, %v935
    %v1122 = vpack.c.b16 %v942, %v936
    %v1123 = vpack.c.b16 %v943, %v937
    %v1124 = vpack.c.b16 %v944, %v938
    %v1125 = vpack.c.b16 %v945, %v939
    %v1126 = vpack.c.b16 %v946, %v940
    %v1127 = vpack.c.b16 %v953, %v947
    %v1128 = vpack.c.b16 %v954, %v948
    %v1129 = vpack.c.b16 %v955, %v949
    %v1130 = vpack.c.b16 %v956, %v950
    %v1131 = vpack.c.b16 %v957, %v951
    %v1132 = vpack.c.b16 %v958, %v952
    %v1133 = vpack.c.b16 %v965, %v959
    %v1134 = vpack.c.b16 %v966, %v960
    %v1135 = vpack.c.b16 %v967, %v961
    %v1136 = vpack.c.b16 %v968, %v962
    %v1137 = vpack.c.b16 %v969, %v963
    %v1138 = vpack.c.b16 %v970, %v964
    %v1139 = vpack.c.b16 %v977, %v971
    %v1140 = vpack.c.b16 %v978, %v972
    %v1141 = vpack.c.b16 %v979, %v973
    %v1142 = vpack.c.b16 %v980, %v974
    %v1143 = vpack.c.b16 %v981, %v975
    %v1144 = vpack.c.b16 %v982, %v976
    %v1145 = vpack.c.b16 %v989, %v983
    %v1146 = vpack.c.b16 %v990, %v984
    %v1147 = vpack.c.b16 %v991, %v985
    %v1148 = vpack.c.b16 %v992, %v986
    %v1149 = vpack.c.b16 %v993, %v987
    %v1150 = vpack.c.b16 %v994, %v988
    %v1151 = vpack.c.b16 %v1001, %v995
    %v1152 = vpack.c.b16 %v1002, %v996
    %v1153 = vpack.c.b16 %v1003, %v997
    %v1154 = vpack.c.b16 %v1004, %v998
    %v1155 = vpack.c.b16 %v1005, %v999
    %v1156 = vpack.c.b16 %v1006, %v1000
    %v1157 = vpack.c.b16 %v1013, %v1007
    %v1158 = vpack.c.b16 %v1014, %v1008
    %v1159 = vpack.c.b16 %v1015, %v1009
    %v1160 = vpack.c.b16 %v1016, %v1010
    %v1161 = vpack.c.b16 %v1017, %v1011
    %v1162 = vpack.c.b16 %v1018, %v1012
    %v1163 = vpack.c.b16 %v1025, %v1019
    %v1164 = vpack.c.b16 %v1026, %v1020
    %v1165 = vpack.c.b16 %v1027, %v1021
    %v1166 = vpack.c.b16 %v1028, %v1022
    %v1167 = vpack.c.b16 %v1029, %v1023
    %v1168 = vpack.c.b16 %v1030, %v1024
    %v1169 = vpack.c.b16 %v1037, %v1031
    %v1170 = vpack.c.b16 %v1038, %v1032
    %v1171 = vpack.c.b16 %v1039, %v1033
    %v1172 = vpack.c.b16 %v1040, %v1034
    %v1173 = vpack.c.b16 %v1041, %v1035
    %v1174 = vpack.c.b16 %v1042, %v1036
    %v1175 = vpack.c.b16 %v1049, %v1043
    %v1176 = vpack.c.b16 %v1050, %v1044
    %v1177 = vpack.c.b16 %v1051, %v1045
    %v1178 = vpack.c.b16 %v1052, %v1046
    %v1179 = vpack.c.b16 %v1053, %v1047
    %v1180 = vpack.c.b16 %v1054, %v1048
    %v1181 = vpack.c.b16 %v1061, %v1055
    %v1182 = vpack.c.b16 %v1062, %v1056
    %v1183 = vpack.c.b16 %v1063, %v1057
    %v1184 = vpack.c.b16 %v1064, %v1058
    %v1185 = vpack.c.b16 %v1065, %v1059
    %v1186 = vpack.c.b16 %v1066, %v1060
    %v1187 = vpack.c.b16 %v1073, %v1067
    %v1188 = vpack.c.b16 %v1074, %v1068
    %v1189 = vpack.c.b16 %v1075, %v1069
    %v1190 = vpack.c.b16 %v1076, %v1070
    %v1191 = vpack.c.b16 %v1077, %v1071
    %v1192 = vpack.c.b16 %v1078, %v1072
    %v1193 = vpack.c.b16 %v1085, %v1079
    %v1194 = vpack.c.b16 %v1086, %v1080
    %v1195 = vpack.c.b16 %v1087, %v1081
    %v1196 = vpack.c.b16 %v1088, %v1082
    %v1197 = vpack.c.b16 %v1089, %v1083
    %v1198 = vpack.c.b16 %v1090, %v1084
    %v1199 = vpack.c.b16 %v1097, %v1091
    %v1200 = vpack.c.b16 %v1098, %v1092
    %v1201 = vpack.c.b16 %v1099, %v1093
    %v1202 = vpack.c.b16 %v1100, %v1094
    %v1203 = vpack.c.b16 %v1101, %v1095
    %v1204 = vpack.c.b16 %v1102, %v1096
    %v1205 = vpack.c.b16 %v1109, %v1103
    %v1206 = vpack.c.b16 %v1110, %v1104
    %v1207 = vpack.c.b16 %v1111, %v1105
    %v1208 = vpack.c.b16 %v1112, %v1106
    %v1209 = vpack.c.b16 %v1113, %v1107
    %v1210 = vpack.c.b16 %v1114, %v1108
    %1307 = vmatprep.subr.bf16.mxu0 %v1158
    %1308 = vmatpush1.bf16.msra.mxu0 %v1157
    %1309 = vmatprep.subr.bf16.mxu0 %v1152
    %1310 = vmatpush1.bf16.msra.mxu0 %v1151
    %1311 = vmatprep.subr.bf16.mxu0 %v1146
    %1312 = vmatpush1.bf16.msra.mxu0 %v1145
    %1313 = vmatprep.subr.bf16.mxu0 %v1140
    %1314 = vmatpush1.bf16.msra.mxu0 %v1139
    %1315 = vmatprep.subr.bf16.mxu0 %v1134
    %1316 = vmatpush1.bf16.msra.mxu0 %v1133
    %1317 = vmatprep.subr.bf16.mxu0 %v1128
    %1318 = vmatpush1.bf16.msra.mxu0 %v1127
    %1319 = vmatprep.subr.bf16.mxu0 %v1122
    %1320 = vmatpush1.bf16.msra.mxu0 %v1121
    %1321 = vmatprep.subr.bf16.mxu0 %v1116
    %1322 = vmatpush1.bf16.msra.mxu0 %v1115
    %1323 = vmatprep.subr.bf16.mxu0 %v1206
    %1324 = vmatpush2.bf16.msra.mxu0 %v1205
    %1325 = vmatprep.subr.bf16.mxu0 %v1200
    %1326 = vmatpush2.bf16.msra.mxu0 %v1199
    %1327 = vmatprep.subr.bf16.mxu0 %v1194
    %1328 = vmatpush2.bf16.msra.mxu0 %v1193
    %1329 = vmatprep.subr.bf16.mxu0 %v1188
    %1330 = vmatpush2.bf16.msra.mxu0 %v1187
    %1331 = vmatprep.subr.bf16.mxu0 %v1182
    %1332 = vmatpush2.bf16.msra.mxu0 %v1181
    %1333 = vmatprep.subr.bf16.mxu0 %v1176
    %1334 = vmatpush2.bf16.msra.mxu0 %v1175
    %1335 = vmatprep.subr.bf16.mxu0 %v1170
    %1336 = vmatpush2.bf16.msra.mxu0 %v1169
    %1337 = vmatprep.subr.bf16.mxu0 %v1164
    %1338 = vmatpush2.bf16.msra.mxu0 %v1163
    %1339 = vmatprep.mubr.bf16.mxu0 %v730
    %1340 = vmatmul.mubr.bf16.gmra.mxu0 %v729
    %v1341 = vpop.f32.mrf.mxu0
    %v1342 = vadd.f32 0.0, %v1341
    %v1343 = vpop.f32.mrf.mxu0
    %v1344 = vadd.f32 0.0, %v1343
    %v1345 = vpop.f32.mrf.mxu0
    %v1346 = vpop.f32.mrf.mxu0
    %1347 = vdwg.mxu0
    %1348 = vmatprep.subr.bf16.mxu0 %v1160
    %1349 = vmatpush1.bf16.msra.mxu0 %v1159
    %1350 = vmatprep.subr.bf16.mxu0 %v1154
    %1351 = vmatpush1.bf16.msra.mxu0 %v1153
    %1352 = vmatprep.subr.bf16.mxu0 %v1148
    %1353 = vmatpush1.bf16.msra.mxu0 %v1147
    %1354 = vmatprep.subr.bf16.mxu0 %v1142
    %1355 = vmatpush1.bf16.msra.mxu0 %v1141
    %1356 = vmatprep.subr.bf16.mxu0 %v1136
    %1357 = vmatpush1.bf16.msra.mxu0 %v1135
    %1358 = vmatprep.subr.bf16.mxu0 %v1130
    %1359 = vmatpush1.bf16.msra.mxu0 %v1129
    %1360 = vmatprep.subr.bf16.mxu0 %v1124
    %1361 = vmatpush1.bf16.msra.mxu0 %v1123
    %1362 = vmatprep.subr.bf16.mxu0 %v1118
    %1363 = vmatpush1.bf16.msra.mxu0 %v1117
    %1364 = vmatprep.subr.bf16.mxu0 %v1208
    %1365 = vmatpush2.bf16.msra.mxu0 %v1207
    %1366 = vmatprep.subr.bf16.mxu0 %v1202
    %1367 = vmatpush2.bf16.msra.mxu0 %v1201
    %1368 = vmatprep.subr.bf16.mxu0 %v1196
    %1369 = vmatpush2.bf16.msra.mxu0 %v1195
    %1370 = vmatprep.subr.bf16.mxu0 %v1190
    %1371 = vmatpush2.bf16.msra.mxu0 %v1189
    %1372 = vmatprep.subr.bf16.mxu0 %v1184
    %1373 = vmatpush2.bf16.msra.mxu0 %v1183
    %1374 = vmatprep.subr.bf16.mxu0 %v1178
    %1375 = vmatpush2.bf16.msra.mxu0 %v1177
    %1376 = vmatprep.subr.bf16.mxu0 %v1172
    %1377 = vmatpush2.bf16.msra.mxu0 %v1171
    %1378 = vmatprep.subr.bf16.mxu0 %v1166
    %1379 = vmatpush2.bf16.msra.mxu0 %v1165
    %1380 = vmatprep.mubr.bf16.mxu0 %v730
    %1381 = vmatmul.mubr.bf16.gmra.mxu0 %v729
    %v1382 = vpop.f32.mrf.mxu0
    %v1383 = vadd.f32 0.0, %v1382
    %v1384 = vpop.f32.mrf.mxu0
    %v1385 = vadd.f32 0.0, %v1384
    %v1386 = vpop.f32.mrf.mxu0
    %v1387 = vpop.f32.mrf.mxu0
    %1388 = vdwg.mxu0
    %1389 = vmatprep.subr.bf16.mxu0 %v1162
    %1390 = vmatpush1.bf16.msra.mxu0 %v1161
    %1391 = vmatprep.subr.bf16.mxu0 %v1156
    %1392 = vmatpush1.bf16.msra.mxu0 %v1155
    %1393 = vmatprep.subr.bf16.mxu0 %v1150
    %1394 = vmatpush1.bf16.msra.mxu0 %v1149
    %1395 = vmatprep.subr.bf16.mxu0 %v1144
    %1396 = vmatpush1.bf16.msra.mxu0 %v1143
    %1397 = vmatprep.subr.bf16.mxu0 %v1138
    %1398 = vmatpush1.bf16.msra.mxu0 %v1137
    %1399 = vmatprep.subr.bf16.mxu0 %v1132
    %1400 = vmatpush1.bf16.msra.mxu0 %v1131
    %1401 = vmatprep.subr.bf16.mxu0 %v1126
    %1402 = vmatpush1.bf16.msra.mxu0 %v1125
    %1403 = vmatprep.subr.bf16.mxu0 %v1120
    %1404 = vmatpush1.bf16.msra.mxu0 %v1119
    %1405 = vmatprep.subr.bf16.mxu0 %v1210
    %1406 = vmatpush2.bf16.msra.mxu0 %v1209
    %1407 = vmatprep.subr.bf16.mxu0 %v1204
    %1408 = vmatpush2.bf16.msra.mxu0 %v1203
    %1409 = vmatprep.subr.bf16.mxu0 %v1198
    %1410 = vmatpush2.bf16.msra.mxu0 %v1197
    %1411 = vmatprep.subr.bf16.mxu0 %v1192
    %1412 = vmatpush2.bf16.msra.mxu0 %v1191
    %1413 = vmatprep.subr.bf16.mxu0 %v1186
    %1414 = vmatpush2.bf16.msra.mxu0 %v1185
    %1415 = vmatprep.subr.bf16.mxu0 %v1180
    %1416 = vmatpush2.bf16.msra.mxu0 %v1179
    %1417 = vmatprep.subr.bf16.mxu0 %v1174
    %1418 = vmatpush2.bf16.msra.mxu0 %v1173
    %1419 = vmatprep.subr.bf16.mxu0 %v1168
    %1420 = vmatpush2.bf16.msra.mxu0 %v1167
    %1421 = vmatprep.mubr.bf16.mxu0 %v730
    %1422 = vmatmul.mubr.bf16.gmra.mxu0 %v729
    %v1423 = vpop.f32.mrf.mxu0
    %v1424 = vadd.f32 0.0, %v1423
    %v1425 = vpop.f32.mrf.mxu0
    %v1426 = vadd.f32 0.0, %v1425
    %v1427 = vpop.f32.mrf.mxu0
    %v1428 = vpop.f32.mrf.mxu0
    %1429 = vdwg.mxu0
    %v1430 = vpack.c.bf16 %v1342, %v1342
    %v1431 = vpack.c.bf16 %v1344, %v1344
    %v1432 = vpack.c.bf16 %v1383, %v1383
    %v1433 = vpack.c.bf16 %v1385, %v1385
    %v1434 = vpack.c.bf16 %v1424, %v1424
    %v1435 = vpack.c.bf16 %v1426, %v1426
    %v1436 = vld [vmem:[#allocation6] sm:$0xff]
    %v1437 = vld [vmem:[#allocation6 + $0x8] sm:$0xff]
    %v1438 = vld [vmem:[#allocation6 + $0x10] sm:$0xff]
    %v1439 = vld [vmem:[#allocation6 + $0x18] sm:$0xff]
    %v1440 = vld [vmem:[#allocation6 + $0x20] sm:$0xff]
    %v1441 = vld [vmem:[#allocation6 + $0x28] sm:$0xff]
    %v1442 = vld [vmem:[#allocation6 + $0x30] sm:$0xff]
    %v1443 = vld [vmem:[#allocation6 + $0x38] sm:$0xff]
    %v1444 = vld [vmem:[#allocation6 + $0x40] sm:$0xff]
    %v1445 = vld [vmem:[#allocation6 + $0x48] sm:$0xff]
    %v1446 = vld [vmem:[#allocation6 + $0x50] sm:$0xff]
    %v1447 = vld [vmem:[#allocation6 + $0x58] sm:$0xff]
    %v1448 = vld [vmem:[#allocation6 + $0x60] sm:$0xff]
    %v1449 = vld [vmem:[#allocation6 + $0x68] sm:$0xff]
    %v1450 = vld [vmem:[#allocation6 + $0x70] sm:$0xff]
    %v1451 = vld [vmem:[#allocation6 + $0x78] sm:$0xff]
    %v1452 = vld [vmem:[#allocation6 + $0x80] sm:$0xff]
    %v1453 = vld [vmem:[#allocation6 + $0x88] sm:$0xff]
    %v1454 = vld [vmem:[#allocation6 + $0x90] sm:$0xff]
    %v1455 = vld [vmem:[#allocation6 + $0x98] sm:$0xff]
    %v1456 = vld [vmem:[#allocation6 + $0xa0] sm:$0xff]
    %v1457 = vld [vmem:[#allocation6 + $0xa8] sm:$0xff]
    %v1458 = vld [vmem:[#allocation6 + $0xb0] sm:$0xff]
    %v1459 = vld [vmem:[#allocation6 + $0xb8] sm:$0xff]
    %v1460 = vld [vmem:[#allocation6 + $0xc0] sm:$0xff]
    %v1461 = vld [vmem:[#allocation6 + $0xc8] sm:$0xff]
    %v1462 = vld [vmem:[#allocation6 + $0xd0] sm:$0xff]
    %v1463 = vld [vmem:[#allocation6 + $0xd8] sm:$0xff]
    %v1464 = vld [vmem:[#allocation6 + $0xe0] sm:$0xff]
    %v1465 = vld [vmem:[#allocation6 + $0xe8] sm:$0xff]
    %v1466 = vld [vmem:[#allocation6 + $0xf0] sm:$0xff]
    %v1467 = vld [vmem:[#allocation6 + $0xf8] sm:$0xff]
    %v1468 = vld [vmem:[#allocation6 + $0x100] sm:$0xff]
    %v1469 = vld [vmem:[#allocation6 + $0x108] sm:$0xff]
    %v1470 = vld [vmem:[#allocation6 + $0x110] sm:$0xff]
    %v1471 = vld [vmem:[#allocation6 + $0x118] sm:$0xff]
    %v1472 = vld [vmem:[#allocation6 + $0x120] sm:$0xff]
    %v1473 = vld [vmem:[#allocation6 + $0x128] sm:$0xff]
    %v1474 = vld [vmem:[#allocation6 + $0x130] sm:$0xff]
    %v1475 = vld [vmem:[#allocation6 + $0x138] sm:$0xff]
    %v1476 = vld [vmem:[#allocation6 + $0x140] sm:$0xff]
    %v1477 = vld [vmem:[#allocation6 + $0x148] sm:$0xff]
    %v1478 = vld [vmem:[#allocation6 + $0x150] sm:$0xff]
    %v1479 = vld [vmem:[#allocation6 + $0x158] sm:$0xff]
    %v1480 = vld [vmem:[#allocation6 + $0x160] sm:$0xff]
    %v1481 = vld [vmem:[#allocation6 + $0x168] sm:$0xff]
    %v1482 = vld [vmem:[#allocation6 + $0x170] sm:$0xff]
    %v1483 = vld [vmem:[#allocation6 + $0x178] sm:$0xff]
    %v1484 = vld [vmem:[#allocation6 + $0x180] sm:$0xff]
    %v1485 = vld [vmem:[#allocation6 + $0x188] sm:$0xff]
    %v1486 = vld [vmem:[#allocation6 + $0x190] sm:$0xff]
    %v1487 = vld [vmem:[#allocation6 + $0x198] sm:$0xff]
    %v1488 = vld [vmem:[#allocation6 + $0x1a0] sm:$0xff]
    %v1489 = vld [vmem:[#allocation6 + $0x1a8] sm:$0xff]
    %v1490 = vld [vmem:[#allocation6 + $0x1b0] sm:$0xff]
    %v1491 = vld [vmem:[#allocation6 + $0x1b8] sm:$0xff]
    %v1492 = vld [vmem:[#allocation6 + $0x1c0] sm:$0xff]
    %v1493 = vld [vmem:[#allocation6 + $0x1c8] sm:$0xff]
    %v1494 = vld [vmem:[#allocation6 + $0x1d0] sm:$0xff]
    %v1495 = vld [vmem:[#allocation6 + $0x1d8] sm:$0xff]
    %v1496 = vld [vmem:[#allocation6 + $0x1e0] sm:$0xff]
    %v1497 = vld [vmem:[#allocation6 + $0x1e8] sm:$0xff]
    %v1498 = vld [vmem:[#allocation6 + $0x1f0] sm:$0xff]
    %v1499 = vld [vmem:[#allocation6 + $0x1f8] sm:$0xff]
    %v1500 = vld [vmem:[#allocation6 + $0x200] sm:$0xff]
    %v1501 = vld [vmem:[#allocation6 + $0x208] sm:$0xff]
    %v1502 = vld [vmem:[#allocation6 + $0x210] sm:$0xff]
    %v1503 = vld [vmem:[#allocation6 + $0x218] sm:$0xff]
    %v1504 = vld [vmem:[#allocation6 + $0x220] sm:$0xff]
    %v1505 = vld [vmem:[#allocation6 + $0x228] sm:$0xff]
    %v1506 = vld [vmem:[#allocation6 + $0x230] sm:$0xff]
    %v1507 = vld [vmem:[#allocation6 + $0x238] sm:$0xff]
    %v1508 = vld [vmem:[#allocation6 + $0x240] sm:$0xff]
    %v1509 = vld [vmem:[#allocation6 + $0x248] sm:$0xff]
    %v1510 = vld [vmem:[#allocation6 + $0x250] sm:$0xff]
    %v1511 = vld [vmem:[#allocation6 + $0x258] sm:$0xff]
    %v1512 = vld [vmem:[#allocation6 + $0x260] sm:$0xff]
    %v1513 = vld [vmem:[#allocation6 + $0x268] sm:$0xff]
    %v1514 = vld [vmem:[#allocation6 + $0x270] sm:$0xff]
    %v1515 = vld [vmem:[#allocation6 + $0x278] sm:$0xff]
    %v1516 = vld [vmem:[#allocation6 + $0x280] sm:$0xff]
    %v1517 = vld [vmem:[#allocation6 + $0x288] sm:$0xff]
    %v1518 = vld [vmem:[#allocation6 + $0x290] sm:$0xff]
    %v1519 = vld [vmem:[#allocation6 + $0x298] sm:$0xff]
    %v1520 = vld [vmem:[#allocation6 + $0x2a0] sm:$0xff]
    %v1521 = vld [vmem:[#allocation6 + $0x2a8] sm:$0xff]
    %v1522 = vld [vmem:[#allocation6 + $0x2b0] sm:$0xff]
    %v1523 = vld [vmem:[#allocation6 + $0x2b8] sm:$0xff]
    %v1524 = vld [vmem:[#allocation6 + $0x2c0] sm:$0xff]
    %v1525 = vld [vmem:[#allocation6 + $0x2c8] sm:$0xff]
    %v1526 = vld [vmem:[#allocation6 + $0x2d0] sm:$0xff]
    %v1527 = vld [vmem:[#allocation6 + $0x2d8] sm:$0xff]
    %v1528 = vld [vmem:[#allocation6 + $0x2e0] sm:$0xff]
    %v1529 = vld [vmem:[#allocation6 + $0x2e8] sm:$0xff]
    %v1530 = vld [vmem:[#allocation6 + $0x2f0] sm:$0xff]
    %v1531 = vld [vmem:[#allocation6 + $0x2f8] sm:$0xff]
    %v1532 = vld [vmem:[#allocation6 + $0x300] sm:$0xff]
    %v1533 = vld [vmem:[#allocation6 + $0x308] sm:$0xff]
    %v1534 = vld [vmem:[#allocation6 + $0x310] sm:$0xff]
    %v1535 = vld [vmem:[#allocation6 + $0x318] sm:$0xff]
    %v1536 = vld [vmem:[#allocation6 + $0x320] sm:$0xff]
    %v1537 = vld [vmem:[#allocation6 + $0x328] sm:$0xff]
    %v1538 = vld [vmem:[#allocation6 + $0x330] sm:$0xff]
    %v1539 = vld [vmem:[#allocation6 + $0x338] sm:$0xff]
    %v1540 = vld [vmem:[#allocation6 + $0x340] sm:$0xff]
    %v1541 = vld [vmem:[#allocation6 + $0x348] sm:$0xff]
    %v1542 = vld [vmem:[#allocation6 + $0x350] sm:$0xff]
    %v1543 = vld [vmem:[#allocation6 + $0x358] sm:$0xff]
    %v1544 = vld [vmem:[#allocation6 + $0x360] sm:$0xff]
    %v1545 = vld [vmem:[#allocation6 + $0x368] sm:$0xff]
    %v1546 = vld [vmem:[#allocation6 + $0x370] sm:$0xff]
    %v1547 = vld [vmem:[#allocation6 + $0x378] sm:$0xff]
    %v1548 = vld [vmem:[#allocation6 + $0x380] sm:$0xff]
    %v1549 = vld [vmem:[#allocation6 + $0x388] sm:$0xff]
    %v1550 = vld [vmem:[#allocation6 + $0x390] sm:$0xff]
    %v1551 = vld [vmem:[#allocation6 + $0x398] sm:$0xff]
    %v1552 = vld [vmem:[#allocation6 + $0x3a0] sm:$0xff]
    %v1553 = vld [vmem:[#allocation6 + $0x3a8] sm:$0xff]
    %v1554 = vld [vmem:[#allocation6 + $0x3b0] sm:$0xff]
    %v1555 = vld [vmem:[#allocation6 + $0x3b8] sm:$0xff]
    %v1556 = vld [vmem:[#allocation6 + $0x3c0] sm:$0xff]
    %v1557 = vld [vmem:[#allocation6 + $0x3c8] sm:$0xff]
    %v1558 = vld [vmem:[#allocation6 + $0x3d0] sm:$0xff]
    %v1559 = vld [vmem:[#allocation6 + $0x3d8] sm:$0xff]
    %v1560 = vld [vmem:[#allocation6 + $0x3e0] sm:$0xff]
    %v1561 = vld [vmem:[#allocation6 + $0x3e8] sm:$0xff]
    %v1562 = vld [vmem:[#allocation6 + $0x3f0] sm:$0xff]
    %v1563 = vld [vmem:[#allocation6 + $0x3f8] sm:$0xff]
    %v1564 = vld [vmem:[#allocation6 + $0x400] sm:$0xff]
    %v1565 = vld [vmem:[#allocation6 + $0x408] sm:$0xff]
    %v1566 = vld [vmem:[#allocation6 + $0x410] sm:$0xff]
    %v1567 = vld [vmem:[#allocation6 + $0x418] sm:$0xff]
    %v1568 = vld [vmem:[#allocation6 + $0x420] sm:$0xff]
    %v1569 = vld [vmem:[#allocation6 + $0x428] sm:$0xff]
    %v1570 = vld [vmem:[#allocation6 + $0x430] sm:$0xff]
    %v1571 = vld [vmem:[#allocation6 + $0x438] sm:$0xff]
    %v1572 = vld [vmem:[#allocation6 + $0x440] sm:$0xff]
    %v1573 = vld [vmem:[#allocation6 + $0x448] sm:$0xff]
    %v1574 = vld [vmem:[#allocation6 + $0x450] sm:$0xff]
    %v1575 = vld [vmem:[#allocation6 + $0x458] sm:$0xff]
    %v1576 = vld [vmem:[#allocation6 + $0x460] sm:$0xff]
    %v1577 = vld [vmem:[#allocation6 + $0x468] sm:$0xff]
    %v1578 = vld [vmem:[#allocation6 + $0x470] sm:$0xff]
    %v1579 = vld [vmem:[#allocation6 + $0x478] sm:$0xff]
    %v1580 = vld [vmem:[#allocation6 + $0x480] sm:$0xff]
    %v1581 = vld [vmem:[#allocation6 + $0x488] sm:$0xff]
    %v1582 = vld [vmem:[#allocation6 + $0x490] sm:$0xff]
    %v1583 = vld [vmem:[#allocation6 + $0x498] sm:$0xff]
    %v1584 = vld [vmem:[#allocation6 + $0x4a0] sm:$0xff]
    %v1585 = vld [vmem:[#allocation6 + $0x4a8] sm:$0xff]
    %v1586 = vld [vmem:[#allocation6 + $0x4b0] sm:$0xff]
    %v1587 = vld [vmem:[#allocation6 + $0x4b8] sm:$0xff]
    %v1588 = vld [vmem:[#allocation6 + $0x4c0] sm:$0xff]
    %v1589 = vld [vmem:[#allocation6 + $0x4c8] sm:$0xff]
    %v1590 = vld [vmem:[#allocation6 + $0x4d0] sm:$0xff]
    %v1591 = vld [vmem:[#allocation6 + $0x4d8] sm:$0xff]
    %v1592 = vld [vmem:[#allocation6 + $0x4e0] sm:$0xff]
    %v1593 = vld [vmem:[#allocation6 + $0x4e8] sm:$0xff]
    %v1594 = vld [vmem:[#allocation6 + $0x4f0] sm:$0xff]
    %v1595 = vld [vmem:[#allocation6 + $0x4f8] sm:$0xff]
    %v1596 = vld [vmem:[#allocation6 + $0x500] sm:$0xff]
    %v1597 = vld [vmem:[#allocation6 + $0x508] sm:$0xff]
    %v1598 = vld [vmem:[#allocation6 + $0x510] sm:$0xff]
    %v1599 = vld [vmem:[#allocation6 + $0x518] sm:$0xff]
    %v1600 = vld [vmem:[#allocation6 + $0x520] sm:$0xff]
    %v1601 = vld [vmem:[#allocation6 + $0x528] sm:$0xff]
    %v1602 = vld [vmem:[#allocation6 + $0x530] sm:$0xff]
    %v1603 = vld [vmem:[#allocation6 + $0x538] sm:$0xff]
    %v1604 = vld [vmem:[#allocation6 + $0x540] sm:$0xff]
    %v1605 = vld [vmem:[#allocation6 + $0x548] sm:$0xff]
    %v1606 = vld [vmem:[#allocation6 + $0x550] sm:$0xff]
    %v1607 = vld [vmem:[#allocation6 + $0x558] sm:$0xff]
    %v1608 = vld [vmem:[#allocation6 + $0x560] sm:$0xff]
    %v1609 = vld [vmem:[#allocation6 + $0x568] sm:$0xff]
    %v1610 = vld [vmem:[#allocation6 + $0x570] sm:$0xff]
    %v1611 = vld [vmem:[#allocation6 + $0x578] sm:$0xff]
    %v1612 = vld [vmem:[#allocation6 + $0x580] sm:$0xff]
    %v1613 = vld [vmem:[#allocation6 + $0x588] sm:$0xff]
    %v1614 = vld [vmem:[#allocation6 + $0x590] sm:$0xff]
    %v1615 = vld [vmem:[#allocation6 + $0x598] sm:$0xff]
    %v1616 = vld [vmem:[#allocation6 + $0x5a0] sm:$0xff]
    %v1617 = vld [vmem:[#allocation6 + $0x5a8] sm:$0xff]
    %v1618 = vld [vmem:[#allocation6 + $0x5b0] sm:$0xff]
    %v1619 = vld [vmem:[#allocation6 + $0x5b8] sm:$0xff]
    %v1620 = vld [vmem:[#allocation6 + $0x5c0] sm:$0xff]
    %v1621 = vld [vmem:[#allocation6 + $0x5c8] sm:$0xff]
    %v1622 = vld [vmem:[#allocation6 + $0x5d0] sm:$0xff]
    %v1623 = vld [vmem:[#allocation6 + $0x5d8] sm:$0xff]
    %v1624 = vld [vmem:[#allocation6 + $0x5e0] sm:$0xff]
    %v1625 = vld [vmem:[#allocation6 + $0x5e8] sm:$0xff]
    %v1626 = vld [vmem:[#allocation6 + $0x5f0] sm:$0xff]
    %v1627 = vld [vmem:[#allocation6 + $0x5f8] sm:$0xff]
    %v1628 = vld [vmem:[#allocation6 + $0x600] sm:$0xff]
    %v1629 = vld [vmem:[#allocation6 + $0x608] sm:$0xff]
    %v1630 = vld [vmem:[#allocation6 + $0x610] sm:$0xff]
    %v1631 = vld [vmem:[#allocation6 + $0x618] sm:$0xff]
    %v1632 = vld [vmem:[#allocation6 + $0x620] sm:$0xff]
    %v1633 = vld [vmem:[#allocation6 + $0x628] sm:$0xff]
    %v1634 = vld [vmem:[#allocation6 + $0x630] sm:$0xff]
    %v1635 = vld [vmem:[#allocation6 + $0x638] sm:$0xff]
    %v1636 = vld [vmem:[#allocation6 + $0x640] sm:$0xff]
    %v1637 = vld [vmem:[#allocation6 + $0x648] sm:$0xff]
    %v1638 = vld [vmem:[#allocation6 + $0x650] sm:$0xff]
    %v1639 = vld [vmem:[#allocation6 + $0x658] sm:$0xff]
    %v1640 = vld [vmem:[#allocation6 + $0x660] sm:$0xff]
    %v1641 = vld [vmem:[#allocation6 + $0x668] sm:$0xff]
    %v1642 = vld [vmem:[#allocation6 + $0x670] sm:$0xff]
    %v1643 = vld [vmem:[#allocation6 + $0x678] sm:$0xff]
    %v1644 = vld [vmem:[#allocation6 + $0x680] sm:$0xff]
    %v1645 = vld [vmem:[#allocation6 + $0x688] sm:$0xff]
    %v1646 = vld [vmem:[#allocation6 + $0x690] sm:$0xff]
    %v1647 = vld [vmem:[#allocation6 + $0x698] sm:$0xff]
    %v1648 = vld [vmem:[#allocation6 + $0x6a0] sm:$0xff]
    %v1649 = vld [vmem:[#allocation6 + $0x6a8] sm:$0xff]
    %v1650 = vld [vmem:[#allocation6 + $0x6b0] sm:$0xff]
    %v1651 = vld [vmem:[#allocation6 + $0x6b8] sm:$0xff]
    %v1652 = vld [vmem:[#allocation6 + $0x6c0] sm:$0xff]
    %v1653 = vld [vmem:[#allocation6 + $0x6c8] sm:$0xff]
    %v1654 = vld [vmem:[#allocation6 + $0x6d0] sm:$0xff]
    %v1655 = vld [vmem:[#allocation6 + $0x6d8] sm:$0xff]
    %v1656 = vld [vmem:[#allocation6 + $0x6e0] sm:$0xff]
    %v1657 = vld [vmem:[#allocation6 + $0x6e8] sm:$0xff]
    %v1658 = vld [vmem:[#allocation6 + $0x6f0] sm:$0xff]
    %v1659 = vld [vmem:[#allocation6 + $0x6f8] sm:$0xff]
    %v1660 = vld [vmem:[#allocation6 + $0x700] sm:$0xff]
    %v1661 = vld [vmem:[#allocation6 + $0x708] sm:$0xff]
    %v1662 = vld [vmem:[#allocation6 + $0x710] sm:$0xff]
    %v1663 = vld [vmem:[#allocation6 + $0x718] sm:$0xff]
    %v1664 = vld [vmem:[#allocation6 + $0x720] sm:$0xff]
    %v1665 = vld [vmem:[#allocation6 + $0x728] sm:$0xff]
    %v1666 = vld [vmem:[#allocation6 + $0x730] sm:$0xff]
    %v1667 = vld [vmem:[#allocation6 + $0x738] sm:$0xff]
    %v1668 = vld [vmem:[#allocation6 + $0x740] sm:$0xff]
    %v1669 = vld [vmem:[#allocation6 + $0x748] sm:$0xff]
    %v1670 = vld [vmem:[#allocation6 + $0x750] sm:$0xff]
    %v1671 = vld [vmem:[#allocation6 + $0x758] sm:$0xff]
    %v1672 = vld [vmem:[#allocation6 + $0x760] sm:$0xff]
    %v1673 = vld [vmem:[#allocation6 + $0x768] sm:$0xff]
    %v1674 = vld [vmem:[#allocation6 + $0x770] sm:$0xff]
    %v1675 = vld [vmem:[#allocation6 + $0x778] sm:$0xff]
    %v1676 = vld [vmem:[#allocation6 + $0x780] sm:$0xff]
    %v1677 = vld [vmem:[#allocation6 + $0x788] sm:$0xff]
    %v1678 = vld [vmem:[#allocation6 + $0x790] sm:$0xff]
    %v1679 = vld [vmem:[#allocation6 + $0x798] sm:$0xff]
    %v1680 = vld [vmem:[#allocation6 + $0x7a0] sm:$0xff]
    %v1681 = vld [vmem:[#allocation6 + $0x7a8] sm:$0xff]
    %v1682 = vld [vmem:[#allocation6 + $0x7b0] sm:$0xff]
    %v1683 = vld [vmem:[#allocation6 + $0x7b8] sm:$0xff]
    %v1684 = vld [vmem:[#allocation6 + $0x7c0] sm:$0xff]
    %v1685 = vld [vmem:[#allocation6 + $0x7c8] sm:$0xff]
    %v1686 = vld [vmem:[#allocation6 + $0x7d0] sm:$0xff]
    %v1687 = vld [vmem:[#allocation6 + $0x7d8] sm:$0xff]
    %v1688 = vld [vmem:[#allocation6 + $0x7e0] sm:$0xff]
    %v1689 = vld [vmem:[#allocation6 + $0x7e8] sm:$0xff]
    %v1690 = vld [vmem:[#allocation6 + $0x7f0] sm:$0xff]
    %v1691 = vld [vmem:[#allocation6 + $0x7f8] sm:$0xff]
    %v1692 = vld [vmem:[#allocation6 + $0x800] sm:$0xff]
    %v1693 = vld [vmem:[#allocation6 + $0x808] sm:$0xff]
    %v1694 = vld [vmem:[#allocation6 + $0x810] sm:$0xff]
    %v1695 = vld [vmem:[#allocation6 + $0x818] sm:$0xff]
    %v1696 = vld [vmem:[#allocation6 + $0x820] sm:$0xff]
    %v1697 = vld [vmem:[#allocation6 + $0x828] sm:$0xff]
    %v1698 = vld [vmem:[#allocation6 + $0x830] sm:$0xff]
    %v1699 = vld [vmem:[#allocation6 + $0x838] sm:$0xff]
    %v1700 = vld [vmem:[#allocation6 + $0x840] sm:$0xff]
    %v1701 = vld [vmem:[#allocation6 + $0x848] sm:$0xff]
    %v1702 = vld [vmem:[#allocation6 + $0x850] sm:$0xff]
    %v1703 = vld [vmem:[#allocation6 + $0x858] sm:$0xff]
    %v1704 = vld [vmem:[#allocation6 + $0x860] sm:$0xff]
    %v1705 = vld [vmem:[#allocation6 + $0x868] sm:$0xff]
    %v1706 = vld [vmem:[#allocation6 + $0x870] sm:$0xff]
    %v1707 = vld [vmem:[#allocation6 + $0x878] sm:$0xff]
    %v1708 = vld [vmem:[#allocation6 + $0x880] sm:$0xff]
    %v1709 = vld [vmem:[#allocation6 + $0x888] sm:$0xff]
    %v1710 = vld [vmem:[#allocation6 + $0x890] sm:$0xff]
    %v1711 = vld [vmem:[#allocation6 + $0x898] sm:$0xff]
    %v1712 = vld [vmem:[#allocation6 + $0x8a0] sm:$0xff]
    %v1713 = vld [vmem:[#allocation6 + $0x8a8] sm:$0xff]
    %v1714 = vld [vmem:[#allocation6 + $0x8b0] sm:$0xff]
    %v1715 = vld [vmem:[#allocation6 + $0x8b8] sm:$0xff]
    %v1716 = vld [vmem:[#allocation6 + $0x8c0] sm:$0xff]
    %v1717 = vld [vmem:[#allocation6 + $0x8c8] sm:$0xff]
    %v1718 = vld [vmem:[#allocation6 + $0x8d0] sm:$0xff]
    %v1719 = vld [vmem:[#allocation6 + $0x8d8] sm:$0xff]
    %v1720 = vld [vmem:[#allocation6 + $0x8e0] sm:$0xff]
    %v1721 = vld [vmem:[#allocation6 + $0x8e8] sm:$0xff]
    %v1722 = vld [vmem:[#allocation6 + $0x8f0] sm:$0xff]
    %v1723 = vld [vmem:[#allocation6 + $0x8f8] sm:$0xff]
    %v1724 = vld [vmem:[#allocation7] sm:$0x3f]
    %v1726 = vlaneseq
    %v1727 = vshrl.u32 %v1726, 7
    %v1728 = vsub.s32 0, %v1727
    %v1729 = vrot.slane %v1724, %v1728
    %v1730 = vlaneseq
    %v1731 = vshrl.u32 %v1730, 7
    %v1732 = vsub.s32 1, %v1731
    %v1733 = vrot.slane %v1724, %v1732
    %v1734 = vlaneseq
    %v1735 = vshrl.u32 %v1734, 7
    %v1736 = vsub.s32 2, %v1735
    %v1737 = vrot.slane %v1724, %v1736
    %v1738 = vlaneseq
    %v1739 = vshrl.u32 %v1738, 7
    %v1740 = vsub.s32 3, %v1739
    %v1741 = vrot.slane %v1724, %v1740
    %v1742 = vlaneseq
    %v1743 = vshrl.u32 %v1742, 7
    %v1744 = vsub.s32 4, %v1743
    %v1745 = vrot.slane %v1724, %v1744
    %v1746 = vlaneseq
    %v1747 = vshrl.u32 %v1746, 7
    %v1748 = vsub.s32 5, %v1747
    %v1749 = vrot.slane %v1724, %v1748
    %v2044 = vunpack.c.l.b16 %v1436
    %v2045 = vunpack.c.h.b16 %v1436
    %v2046 = vunpack.c.l.b16 %v1437
    %v2047 = vunpack.c.h.b16 %v1437
    %v2048 = vunpack.c.l.b16 %v1438
    %v2049 = vunpack.c.h.b16 %v1438
    %v2050 = vunpack.c.l.b16 %v1439
    %v2051 = vunpack.c.h.b16 %v1439
    %v2052 = vunpack.c.l.b16 %v1440
    %v2053 = vunpack.c.h.b16 %v1440
    %v2054 = vunpack.c.l.b16 %v1441
    %v2055 = vunpack.c.h.b16 %v1441
    %v2056 = vunpack.c.l.b16 %v1442
    %v2057 = vunpack.c.h.b16 %v1442
    %v2058 = vunpack.c.l.b16 %v1443
    %v2059 = vunpack.c.h.b16 %v1443
    %v2060 = vunpack.c.l.b16 %v1444
    %v2061 = vunpack.c.h.b16 %v1444
    %v2062 = vunpack.c.l.b16 %v1445
    %v2063 = vunpack.c.h.b16 %v1445
    %v2064 = vunpack.c.l.b16 %v1446
    %v2065 = vunpack.c.h.b16 %v1446
    %v2066 = vunpack.c.l.b16 %v1447
    %v2067 = vunpack.c.h.b16 %v1447
    %v2068 = vunpack.c.l.b16 %v1448
    %v2069 = vunpack.c.h.b16 %v1448
    %v2070 = vunpack.c.l.b16 %v1449
    %v2071 = vunpack.c.h.b16 %v1449
    %v2072 = vunpack.c.l.b16 %v1450
    %v2073 = vunpack.c.h.b16 %v1450
    %v2074 = vunpack.c.l.b16 %v1451
    %v2075 = vunpack.c.h.b16 %v1451
    %v2076 = vunpack.c.l.b16 %v1452
    %v2077 = vunpack.c.h.b16 %v1452
    %v2078 = vunpack.c.l.b16 %v1453
    %v2079 = vunpack.c.h.b16 %v1453
    %v2080 = vunpack.c.l.b16 %v1454
    %v2081 = vunpack.c.h.b16 %v1454
    %v2082 = vunpack.c.l.b16 %v1455
    %v2083 = vunpack.c.h.b16 %v1455
    %v2084 = vunpack.c.l.b16 %v1456
    %v2085 = vunpack.c.h.b16 %v1456
    %v2086 = vunpack.c.l.b16 %v1457
    %v2087 = vunpack.c.h.b16 %v1457
    %v2088 = vunpack.c.l.b16 %v1458
    %v2089 = vunpack.c.h.b16 %v1458
    %v2090 = vunpack.c.l.b16 %v1459
    %v2091 = vunpack.c.h.b16 %v1459
    %v2092 = vunpack.c.l.b16 %v1460
    %v2093 = vunpack.c.h.b16 %v1460
    %v2094 = vunpack.c.l.b16 %v1461
    %v2095 = vunpack.c.h.b16 %v1461
    %v2096 = vunpack.c.l.b16 %v1462
    %v2097 = vunpack.c.h.b16 %v1462
    %v2098 = vunpack.c.l.b16 %v1463
    %v2099 = vunpack.c.h.b16 %v1463
    %v2100 = vunpack.c.l.b16 %v1464
    %v2101 = vunpack.c.h.b16 %v1464
    %v2102 = vunpack.c.l.b16 %v1465
    %v2103 = vunpack.c.h.b16 %v1465
    %v2104 = vunpack.c.l.b16 %v1466
    %v2105 = vunpack.c.h.b16 %v1466
    %v2106 = vunpack.c.l.b16 %v1467
    %v2107 = vunpack.c.h.b16 %v1467
    %v2108 = vunpack.c.l.b16 %v1468
    %v2109 = vunpack.c.h.b16 %v1468
    %v2110 = vunpack.c.l.b16 %v1469
    %v2111 = vunpack.c.h.b16 %v1469
    %v2112 = vunpack.c.l.b16 %v1470
    %v2113 = vunpack.c.h.b16 %v1470
    %v2114 = vunpack.c.l.b16 %v1471
    %v2115 = vunpack.c.h.b16 %v1471
    %v2116 = vunpack.c.l.b16 %v1472
    %v2117 = vunpack.c.h.b16 %v1472
    %v2118 = vunpack.c.l.b16 %v1473
    %v2119 = vunpack.c.h.b16 %v1473
    %v2120 = vunpack.c.l.b16 %v1474
    %v2121 = vunpack.c.h.b16 %v1474
    %v2122 = vunpack.c.l.b16 %v1475
    %v2123 = vunpack.c.h.b16 %v1475
    %v2124 = vunpack.c.l.b16 %v1476
    %v2125 = vunpack.c.h.b16 %v1476
    %v2126 = vunpack.c.l.b16 %v1477
    %v2127 = vunpack.c.h.b16 %v1477
    %v2128 = vunpack.c.l.b16 %v1478
    %v2129 = vunpack.c.h.b16 %v1478
    %v2130 = vunpack.c.l.b16 %v1479
    %v2131 = vunpack.c.h.b16 %v1479
    %v2132 = vunpack.c.l.b16 %v1480
    %v2133 = vunpack.c.h.b16 %v1480
    %v2134 = vunpack.c.l.b16 %v1481
    %v2135 = vunpack.c.h.b16 %v1481
    %v2136 = vunpack.c.l.b16 %v1482
    %v2137 = vunpack.c.h.b16 %v1482
    %v2138 = vunpack.c.l.b16 %v1483
    %v2139 = vunpack.c.h.b16 %v1483
    %v2140 = vunpack.c.l.b16 %v1484
    %v2141 = vunpack.c.h.b16 %v1484
    %v2142 = vunpack.c.l.b16 %v1485
    %v2143 = vunpack.c.h.b16 %v1485
    %v2144 = vunpack.c.l.b16 %v1486
    %v2145 = vunpack.c.h.b16 %v1486
    %v2146 = vunpack.c.l.b16 %v1487
    %v2147 = vunpack.c.h.b16 %v1487
    %v2148 = vunpack.c.l.b16 %v1488
    %v2149 = vunpack.c.h.b16 %v1488
    %v2150 = vunpack.c.l.b16 %v1489
    %v2151 = vunpack.c.h.b16 %v1489
    %v2152 = vunpack.c.l.b16 %v1490
    %v2153 = vunpack.c.h.b16 %v1490
    %v2154 = vunpack.c.l.b16 %v1491
    %v2155 = vunpack.c.h.b16 %v1491
    %v2156 = vunpack.c.l.b16 %v1492
    %v2157 = vunpack.c.h.b16 %v1492
    %v2158 = vunpack.c.l.b16 %v1493
    %v2159 = vunpack.c.h.b16 %v1493
    %v2160 = vunpack.c.l.b16 %v1494
    %v2161 = vunpack.c.h.b16 %v1494
    %v2162 = vunpack.c.l.b16 %v1495
    %v2163 = vunpack.c.h.b16 %v1495
    %v2164 = vunpack.c.l.b16 %v1496
    %v2165 = vunpack.c.h.b16 %v1496
    %v2166 = vunpack.c.l.b16 %v1497
    %v2167 = vunpack.c.h.b16 %v1497
    %v2168 = vunpack.c.l.b16 %v1498
    %v2169 = vunpack.c.h.b16 %v1498
    %v2170 = vunpack.c.l.b16 %v1499
    %v2171 = vunpack.c.h.b16 %v1499
    %v2172 = vunpack.c.l.b16 %v1500
    %v2173 = vunpack.c.h.b16 %v1500
    %v2174 = vunpack.c.l.b16 %v1501
    %v2175 = vunpack.c.h.b16 %v1501
    %v2176 = vunpack.c.l.b16 %v1502
    %v2177 = vunpack.c.h.b16 %v1502
    %v2178 = vunpack.c.l.b16 %v1503
    %v2179 = vunpack.c.h.b16 %v1503
    %v2180 = vunpack.c.l.b16 %v1504
    %v2181 = vunpack.c.h.b16 %v1504
    %v2182 = vunpack.c.l.b16 %v1505
    %v2183 = vunpack.c.h.b16 %v1505
    %v2184 = vunpack.c.l.b16 %v1506
    %v2185 = vunpack.c.h.b16 %v1506
    %v2186 = vunpack.c.l.b16 %v1507
    %v2187 = vunpack.c.h.b16 %v1507
    %v2188 = vunpack.c.l.b16 %v1508
    %v2189 = vunpack.c.h.b16 %v1508
    %v2190 = vunpack.c.l.b16 %v1509
    %v2191 = vunpack.c.h.b16 %v1509
    %v2192 = vunpack.c.l.b16 %v1510
    %v2193 = vunpack.c.h.b16 %v1510
    %v2194 = vunpack.c.l.b16 %v1511
    %v2195 = vunpack.c.h.b16 %v1511
    %v2196 = vunpack.c.l.b16 %v1512
    %v2197 = vunpack.c.h.b16 %v1512
    %v2198 = vunpack.c.l.b16 %v1513
    %v2199 = vunpack.c.h.b16 %v1513
    %v2200 = vunpack.c.l.b16 %v1514
    %v2201 = vunpack.c.h.b16 %v1514
    %v2202 = vunpack.c.l.b16 %v1515
    %v2203 = vunpack.c.h.b16 %v1515
    %v2204 = vunpack.c.l.b16 %v1516
    %v2205 = vunpack.c.h.b16 %v1516
    %v2206 = vunpack.c.l.b16 %v1517
    %v2207 = vunpack.c.h.b16 %v1517
    %v2208 = vunpack.c.l.b16 %v1518
    %v2209 = vunpack.c.h.b16 %v1518
    %v2210 = vunpack.c.l.b16 %v1519
    %v2211 = vunpack.c.h.b16 %v1519
    %v2212 = vunpack.c.l.b16 %v1520
    %v2213 = vunpack.c.h.b16 %v1520
    %v2214 = vunpack.c.l.b16 %v1521
    %v2215 = vunpack.c.h.b16 %v1521
    %v2216 = vunpack.c.l.b16 %v1522
    %v2217 = vunpack.c.h.b16 %v1522
    %v2218 = vunpack.c.l.b16 %v1523
    %v2219 = vunpack.c.h.b16 %v1523
    %v2220 = vunpack.c.l.b16 %v1524
    %v2221 = vunpack.c.h.b16 %v1524
    %v2222 = vunpack.c.l.b16 %v1525
    %v2223 = vunpack.c.h.b16 %v1525
    %v2224 = vunpack.c.l.b16 %v1526
    %v2225 = vunpack.c.h.b16 %v1526
    %v2226 = vunpack.c.l.b16 %v1527
    %v2227 = vunpack.c.h.b16 %v1527
    %v2228 = vunpack.c.l.b16 %v1528
    %v2229 = vunpack.c.h.b16 %v1528
    %v2230 = vunpack.c.l.b16 %v1529
    %v2231 = vunpack.c.h.b16 %v1529
    %v2232 = vunpack.c.l.b16 %v1530
    %v2233 = vunpack.c.h.b16 %v1530
    %v2234 = vunpack.c.l.b16 %v1531
    %v2235 = vunpack.c.h.b16 %v1531
    %v2236 = vunpack.c.l.b16 %v1532
    %v2237 = vunpack.c.h.b16 %v1532
    %v2238 = vunpack.c.l.b16 %v1533
    %v2239 = vunpack.c.h.b16 %v1533
    %v2240 = vunpack.c.l.b16 %v1534
    %v2241 = vunpack.c.h.b16 %v1534
    %v2242 = vunpack.c.l.b16 %v1535
    %v2243 = vunpack.c.h.b16 %v1535
    %v2244 = vunpack.c.l.b16 %v1536
    %v2245 = vunpack.c.h.b16 %v1536
    %v2246 = vunpack.c.l.b16 %v1537
    %v2247 = vunpack.c.h.b16 %v1537
    %v2248 = vunpack.c.l.b16 %v1538
    %v2249 = vunpack.c.h.b16 %v1538
    %v2250 = vunpack.c.l.b16 %v1539
    %v2251 = vunpack.c.h.b16 %v1539
    %v2252 = vunpack.c.l.b16 %v1540
    %v2253 = vunpack.c.h.b16 %v1540
    %v2254 = vunpack.c.l.b16 %v1541
    %v2255 = vunpack.c.h.b16 %v1541
    %v2256 = vunpack.c.l.b16 %v1542
    %v2257 = vunpack.c.h.b16 %v1542
    %v2258 = vunpack.c.l.b16 %v1543
    %v2259 = vunpack.c.h.b16 %v1543
    %v2260 = vunpack.c.l.b16 %v1544
    %v2261 = vunpack.c.h.b16 %v1544
    %v2262 = vunpack.c.l.b16 %v1545
    %v2263 = vunpack.c.h.b16 %v1545
    %v2264 = vunpack.c.l.b16 %v1546
    %v2265 = vunpack.c.h.b16 %v1546
    %v2266 = vunpack.c.l.b16 %v1547
    %v2267 = vunpack.c.h.b16 %v1547
    %v2268 = vunpack.c.l.b16 %v1548
    %v2269 = vunpack.c.h.b16 %v1548
    %v2270 = vunpack.c.l.b16 %v1549
    %v2271 = vunpack.c.h.b16 %v1549
    %v2272 = vunpack.c.l.b16 %v1550
    %v2273 = vunpack.c.h.b16 %v1550
    %v2274 = vunpack.c.l.b16 %v1551
    %v2275 = vunpack.c.h.b16 %v1551
    %v2276 = vunpack.c.l.b16 %v1552
    %v2277 = vunpack.c.h.b16 %v1552
    %v2278 = vunpack.c.l.b16 %v1553
    %v2279 = vunpack.c.h.b16 %v1553
    %v2280 = vunpack.c.l.b16 %v1554
    %v2281 = vunpack.c.h.b16 %v1554
    %v2282 = vunpack.c.l.b16 %v1555
    %v2283 = vunpack.c.h.b16 %v1555
    %v2284 = vunpack.c.l.b16 %v1556
    %v2285 = vunpack.c.h.b16 %v1556
    %v2286 = vunpack.c.l.b16 %v1557
    %v2287 = vunpack.c.h.b16 %v1557
    %v2288 = vunpack.c.l.b16 %v1558
    %v2289 = vunpack.c.h.b16 %v1558
    %v2290 = vunpack.c.l.b16 %v1559
    %v2291 = vunpack.c.h.b16 %v1559
    %v2292 = vunpack.c.l.b16 %v1560
    %v2293 = vunpack.c.h.b16 %v1560
    %v2294 = vunpack.c.l.b16 %v1561
    %v2295 = vunpack.c.h.b16 %v1561
    %v2296 = vunpack.c.l.b16 %v1562
    %v2297 = vunpack.c.h.b16 %v1562
    %v2298 = vunpack.c.l.b16 %v1563
    %v2299 = vunpack.c.h.b16 %v1563
    %v2300 = vunpack.c.l.b16 %v1564
    %v2301 = vunpack.c.h.b16 %v1564
    %v2302 = vunpack.c.l.b16 %v1565
    %v2303 = vunpack.c.h.b16 %v1565
    %v2304 = vunpack.c.l.b16 %v1566
    %v2305 = vunpack.c.h.b16 %v1566
    %v2306 = vunpack.c.l.b16 %v1567
    %v2307 = vunpack.c.h.b16 %v1567
    %v2308 = vunpack.c.l.b16 %v1568
    %v2309 = vunpack.c.h.b16 %v1568
    %v2310 = vunpack.c.l.b16 %v1569
    %v2311 = vunpack.c.h.b16 %v1569
    %v2312 = vunpack.c.l.b16 %v1570
    %v2313 = vunpack.c.h.b16 %v1570
    %v2314 = vunpack.c.l.b16 %v1571
    %v2315 = vunpack.c.h.b16 %v1571
    %v2316 = vunpack.c.l.b16 %v1572
    %v2317 = vunpack.c.h.b16 %v1572
    %v2318 = vunpack.c.l.b16 %v1573
    %v2319 = vunpack.c.h.b16 %v1573
    %v2320 = vunpack.c.l.b16 %v1574
    %v2321 = vunpack.c.h.b16 %v1574
    %v2322 = vunpack.c.l.b16 %v1575
    %v2323 = vunpack.c.h.b16 %v1575
    %v2324 = vunpack.c.l.b16 %v1576
    %v2325 = vunpack.c.h.b16 %v1576
    %v2326 = vunpack.c.l.b16 %v1577
    %v2327 = vunpack.c.h.b16 %v1577
    %v2328 = vunpack.c.l.b16 %v1578
    %v2329 = vunpack.c.h.b16 %v1578
    %v2330 = vunpack.c.l.b16 %v1579
    %v2331 = vunpack.c.h.b16 %v1579
    %v2332 = vunpack.c.l.b16 %v1580
    %v2333 = vunpack.c.h.b16 %v1580
    %v2334 = vunpack.c.l.b16 %v1581
    %v2335 = vunpack.c.h.b16 %v1581
    %v2336 = vunpack.c.l.b16 %v1582
    %v2337 = vunpack.c.h.b16 %v1582
    %v2338 = vunpack.c.l.b16 %v1583
    %v2339 = vunpack.c.h.b16 %v1583
    %v2340 = vunpack.c.l.b16 %v1584
    %v2341 = vunpack.c.h.b16 %v1584
    %v2342 = vunpack.c.l.b16 %v1585
    %v2343 = vunpack.c.h.b16 %v1585
    %v2344 = vunpack.c.l.b16 %v1586
    %v2345 = vunpack.c.h.b16 %v1586
    %v2346 = vunpack.c.l.b16 %v1587
    %v2347 = vunpack.c.h.b16 %v1587
    %v2348 = vunpack.c.l.b16 %v1588
    %v2349 = vunpack.c.h.b16 %v1588
    %v2350 = vunpack.c.l.b16 %v1589
    %v2351 = vunpack.c.h.b16 %v1589
    %v2352 = vunpack.c.l.b16 %v1590
    %v2353 = vunpack.c.h.b16 %v1590
    %v2354 = vunpack.c.l.b16 %v1591
    %v2355 = vunpack.c.h.b16 %v1591
    %v2356 = vunpack.c.l.b16 %v1592
    %v2357 = vunpack.c.h.b16 %v1592
    %v2358 = vunpack.c.l.b16 %v1593
    %v2359 = vunpack.c.h.b16 %v1593
    %v2360 = vunpack.c.l.b16 %v1594
    %v2361 = vunpack.c.h.b16 %v1594
    %v2362 = vunpack.c.l.b16 %v1595
    %v2363 = vunpack.c.h.b16 %v1595
    %v2364 = vunpack.c.l.b16 %v1596
    %v2365 = vunpack.c.h.b16 %v1596
    %v2366 = vunpack.c.l.b16 %v1597
    %v2367 = vunpack.c.h.b16 %v1597
    %v2368 = vunpack.c.l.b16 %v1598
    %v2369 = vunpack.c.h.b16 %v1598
    %v2370 = vunpack.c.l.b16 %v1599
    %v2371 = vunpack.c.h.b16 %v1599
    %v2372 = vunpack.c.l.b16 %v1600
    %v2373 = vunpack.c.h.b16 %v1600
    %v2374 = vunpack.c.l.b16 %v1601
    %v2375 = vunpack.c.h.b16 %v1601
    %v2376 = vunpack.c.l.b16 %v1602
    %v2377 = vunpack.c.h.b16 %v1602
    %v2378 = vunpack.c.l.b16 %v1603
    %v2379 = vunpack.c.h.b16 %v1603
    %v2380 = vunpack.c.l.b16 %v1604
    %v2381 = vunpack.c.h.b16 %v1604
    %v2382 = vunpack.c.l.b16 %v1605
    %v2383 = vunpack.c.h.b16 %v1605
    %v2384 = vunpack.c.l.b16 %v1606
    %v2385 = vunpack.c.h.b16 %v1606
    %v2386 = vunpack.c.l.b16 %v1607
    %v2387 = vunpack.c.h.b16 %v1607
    %v2388 = vunpack.c.l.b16 %v1608
    %v2389 = vunpack.c.h.b16 %v1608
    %v2390 = vunpack.c.l.b16 %v1609
    %v2391 = vunpack.c.h.b16 %v1609
    %v2392 = vunpack.c.l.b16 %v1610
    %v2393 = vunpack.c.h.b16 %v1610
    %v2394 = vunpack.c.l.b16 %v1611
    %v2395 = vunpack.c.h.b16 %v1611
    %v2396 = vunpack.c.l.b16 %v1612
    %v2397 = vunpack.c.h.b16 %v1612
    %v2398 = vunpack.c.l.b16 %v1613
    %v2399 = vunpack.c.h.b16 %v1613
    %v2400 = vunpack.c.l.b16 %v1614
    %v2401 = vunpack.c.h.b16 %v1614
    %v2402 = vunpack.c.l.b16 %v1615
    %v2403 = vunpack.c.h.b16 %v1615
    %v2404 = vunpack.c.l.b16 %v1616
    %v2405 = vunpack.c.h.b16 %v1616
    %v2406 = vunpack.c.l.b16 %v1617
    %v2407 = vunpack.c.h.b16 %v1617
    %v2408 = vunpack.c.l.b16 %v1618
    %v2409 = vunpack.c.h.b16 %v1618
    %v2410 = vunpack.c.l.b16 %v1619
    %v2411 = vunpack.c.h.b16 %v1619
    %v2412 = vunpack.c.l.b16 %v1620
    %v2413 = vunpack.c.h.b16 %v1620
    %v2414 = vunpack.c.l.b16 %v1621
    %v2415 = vunpack.c.h.b16 %v1621
    %v2416 = vunpack.c.l.b16 %v1622
    %v2417 = vunpack.c.h.b16 %v1622
    %v2418 = vunpack.c.l.b16 %v1623
    %v2419 = vunpack.c.h.b16 %v1623
    %v2420 = vunpack.c.l.b16 %v1624
    %v2421 = vunpack.c.h.b16 %v1624
    %v2422 = vunpack.c.l.b16 %v1625
    %v2423 = vunpack.c.h.b16 %v1625
    %v2424 = vunpack.c.l.b16 %v1626
    %v2425 = vunpack.c.h.b16 %v1626
    %v2426 = vunpack.c.l.b16 %v1627
    %v2427 = vunpack.c.h.b16 %v1627
    %v2428 = vunpack.c.l.b16 %v1628
    %v2429 = vunpack.c.h.b16 %v1628
    %v2430 = vunpack.c.l.b16 %v1629
    %v2431 = vunpack.c.h.b16 %v1629
    %v2432 = vunpack.c.l.b16 %v1630
    %v2433 = vunpack.c.h.b16 %v1630
    %v2434 = vunpack.c.l.b16 %v1631
    %v2435 = vunpack.c.h.b16 %v1631
    %v2436 = vunpack.c.l.b16 %v1632
    %v2437 = vunpack.c.h.b16 %v1632
    %v2438 = vunpack.c.l.b16 %v1633
    %v2439 = vunpack.c.h.b16 %v1633
    %v2440 = vunpack.c.l.b16 %v1634
    %v2441 = vunpack.c.h.b16 %v1634
    %v2442 = vunpack.c.l.b16 %v1635
    %v2443 = vunpack.c.h.b16 %v1635
    %v2444 = vunpack.c.l.b16 %v1636
    %v2445 = vunpack.c.h.b16 %v1636
    %v2446 = vunpack.c.l.b16 %v1637
    %v2447 = vunpack.c.h.b16 %v1637
    %v2448 = vunpack.c.l.b16 %v1638
    %v2449 = vunpack.c.h.b16 %v1638
    %v2450 = vunpack.c.l.b16 %v1639
    %v2451 = vunpack.c.h.b16 %v1639
    %v2452 = vunpack.c.l.b16 %v1640
    %v2453 = vunpack.c.h.b16 %v1640
    %v2454 = vunpack.c.l.b16 %v1641
    %v2455 = vunpack.c.h.b16 %v1641
    %v2456 = vunpack.c.l.b16 %v1642
    %v2457 = vunpack.c.h.b16 %v1642
    %v2458 = vunpack.c.l.b16 %v1643
    %v2459 = vunpack.c.h.b16 %v1643
    %v2460 = vunpack.c.l.b16 %v1644
    %v2461 = vunpack.c.h.b16 %v1644
    %v2462 = vunpack.c.l.b16 %v1645
    %v2463 = vunpack.c.h.b16 %v1645
    %v2464 = vunpack.c.l.b16 %v1646
    %v2465 = vunpack.c.h.b16 %v1646
    %v2466 = vunpack.c.l.b16 %v1647
    %v2467 = vunpack.c.h.b16 %v1647
    %v2468 = vunpack.c.l.b16 %v1648
    %v2469 = vunpack.c.h.b16 %v1648
    %v2470 = vunpack.c.l.b16 %v1649
    %v2471 = vunpack.c.h.b16 %v1649
    %v2472 = vunpack.c.l.b16 %v1650
    %v2473 = vunpack.c.h.b16 %v1650
    %v2474 = vunpack.c.l.b16 %v1651
    %v2475 = vunpack.c.h.b16 %v1651
    %v2476 = vunpack.c.l.b16 %v1652
    %v2477 = vunpack.c.h.b16 %v1652
    %v2478 = vunpack.c.l.b16 %v1653
    %v2479 = vunpack.c.h.b16 %v1653
    %v2480 = vunpack.c.l.b16 %v1654
    %v2481 = vunpack.c.h.b16 %v1654
    %v2482 = vunpack.c.l.b16 %v1655
    %v2483 = vunpack.c.h.b16 %v1655
    %v2484 = vunpack.c.l.b16 %v1656
    %v2485 = vunpack.c.h.b16 %v1656
    %v2486 = vunpack.c.l.b16 %v1657
    %v2487 = vunpack.c.h.b16 %v1657
    %v2488 = vunpack.c.l.b16 %v1658
    %v2489 = vunpack.c.h.b16 %v1658
    %v2490 = vunpack.c.l.b16 %v1659
    %v2491 = vunpack.c.h.b16 %v1659
    %v2492 = vunpack.c.l.b16 %v1660
    %v2493 = vunpack.c.h.b16 %v1660
    %v2494 = vunpack.c.l.b16 %v1661
    %v2495 = vunpack.c.h.b16 %v1661
    %v2496 = vunpack.c.l.b16 %v1662
    %v2497 = vunpack.c.h.b16 %v1662
    %v2498 = vunpack.c.l.b16 %v1663
    %v2499 = vunpack.c.h.b16 %v1663
    %v2500 = vunpack.c.l.b16 %v1664
    %v2501 = vunpack.c.h.b16 %v1664
    %v2502 = vunpack.c.l.b16 %v1665
    %v2503 = vunpack.c.h.b16 %v1665
    %v2504 = vunpack.c.l.b16 %v1666
    %v2505 = vunpack.c.h.b16 %v1666
    %v2506 = vunpack.c.l.b16 %v1667
    %v2507 = vunpack.c.h.b16 %v1667
    %v2508 = vunpack.c.l.b16 %v1668
    %v2509 = vunpack.c.h.b16 %v1668
    %v2510 = vunpack.c.l.b16 %v1669
    %v2511 = vunpack.c.h.b16 %v1669
    %v2512 = vunpack.c.l.b16 %v1670
    %v2513 = vunpack.c.h.b16 %v1670
    %v2514 = vunpack.c.l.b16 %v1671
    %v2515 = vunpack.c.h.b16 %v1671
    %v2516 = vunpack.c.l.b16 %v1672
    %v2517 = vunpack.c.h.b16 %v1672
    %v2518 = vunpack.c.l.b16 %v1673
    %v2519 = vunpack.c.h.b16 %v1673
    %v2520 = vunpack.c.l.b16 %v1674
    %v2521 = vunpack.c.h.b16 %v1674
    %v2522 = vunpack.c.l.b16 %v1675
    %v2523 = vunpack.c.h.b16 %v1675
    %v2524 = vunpack.c.l.b16 %v1676
    %v2525 = vunpack.c.h.b16 %v1676
    %v2526 = vunpack.c.l.b16 %v1677
    %v2527 = vunpack.c.h.b16 %v1677
    %v2528 = vunpack.c.l.b16 %v1678
    %v2529 = vunpack.c.h.b16 %v1678
    %v2530 = vunpack.c.l.b16 %v1679
    %v2531 = vunpack.c.h.b16 %v1679
    %v2532 = vunpack.c.l.b16 %v1680
    %v2533 = vunpack.c.h.b16 %v1680
    %v2534 = vunpack.c.l.b16 %v1681
    %v2535 = vunpack.c.h.b16 %v1681
    %v2536 = vunpack.c.l.b16 %v1682
    %v2537 = vunpack.c.h.b16 %v1682
    %v2538 = vunpack.c.l.b16 %v1683
    %v2539 = vunpack.c.h.b16 %v1683
    %v2540 = vunpack.c.l.b16 %v1684
    %v2541 = vunpack.c.h.b16 %v1684
    %v2542 = vunpack.c.l.b16 %v1685
    %v2543 = vunpack.c.h.b16 %v1685
    %v2544 = vunpack.c.l.b16 %v1686
    %v2545 = vunpack.c.h.b16 %v1686
    %v2546 = vunpack.c.l.b16 %v1687
    %v2547 = vunpack.c.h.b16 %v1687
    %v2548 = vunpack.c.l.b16 %v1688
    %v2549 = vunpack.c.h.b16 %v1688
    %v2550 = vunpack.c.l.b16 %v1689
    %v2551 = vunpack.c.h.b16 %v1689
    %v2552 = vunpack.c.l.b16 %v1690
    %v2553 = vunpack.c.h.b16 %v1690
    %v2554 = vunpack.c.l.b16 %v1691
    %v2555 = vunpack.c.h.b16 %v1691
    %v2556 = vunpack.c.l.b16 %v1692
    %v2557 = vunpack.c.h.b16 %v1692
    %v2558 = vunpack.c.l.b16 %v1693
    %v2559 = vunpack.c.h.b16 %v1693
    %v2560 = vunpack.c.l.b16 %v1694
    %v2561 = vunpack.c.h.b16 %v1694
    %v2562 = vunpack.c.l.b16 %v1695
    %v2563 = vunpack.c.h.b16 %v1695
    %v2564 = vunpack.c.l.b16 %v1696
    %v2565 = vunpack.c.h.b16 %v1696
    %v2566 = vunpack.c.l.b16 %v1697
    %v2567 = vunpack.c.h.b16 %v1697
    %v2568 = vunpack.c.l.b16 %v1698
    %v2569 = vunpack.c.h.b16 %v1698
    %v2570 = vunpack.c.l.b16 %v1699
    %v2571 = vunpack.c.h.b16 %v1699
    %v2572 = vunpack.c.l.b16 %v1700
    %v2573 = vunpack.c.h.b16 %v1700
    %v2574 = vunpack.c.l.b16 %v1701
    %v2575 = vunpack.c.h.b16 %v1701
    %v2576 = vunpack.c.l.b16 %v1702
    %v2577 = vunpack.c.h.b16 %v1702
    %v2578 = vunpack.c.l.b16 %v1703
    %v2579 = vunpack.c.h.b16 %v1703
    %v2580 = vunpack.c.l.b16 %v1704
    %v2581 = vunpack.c.h.b16 %v1704
    %v2582 = vunpack.c.l.b16 %v1705
    %v2583 = vunpack.c.h.b16 %v1705
    %v2584 = vunpack.c.l.b16 %v1706
    %v2585 = vunpack.c.h.b16 %v1706
    %v2586 = vunpack.c.l.b16 %v1707
    %v2587 = vunpack.c.h.b16 %v1707
    %v2588 = vunpack.c.l.b16 %v1708
    %v2589 = vunpack.c.h.b16 %v1708
    %v2590 = vunpack.c.l.b16 %v1709
    %v2591 = vunpack.c.h.b16 %v1709
    %v2592 = vunpack.c.l.b16 %v1710
    %v2593 = vunpack.c.h.b16 %v1710
    %v2594 = vunpack.c.l.b16 %v1711
    %v2595 = vunpack.c.h.b16 %v1711
    %v2596 = vunpack.c.l.b16 %v1712
    %v2597 = vunpack.c.h.b16 %v1712
    %v2598 = vunpack.c.l.b16 %v1713
    %v2599 = vunpack.c.h.b16 %v1713
    %v2600 = vunpack.c.l.b16 %v1714
    %v2601 = vunpack.c.h.b16 %v1714
    %v2602 = vunpack.c.l.b16 %v1715
    %v2603 = vunpack.c.h.b16 %v1715
    %v2604 = vunpack.c.l.b16 %v1716
    %v2605 = vunpack.c.h.b16 %v1716
    %v2606 = vunpack.c.l.b16 %v1717
    %v2607 = vunpack.c.h.b16 %v1717
    %v2608 = vunpack.c.l.b16 %v1718
    %v2609 = vunpack.c.h.b16 %v1718
    %v2610 = vunpack.c.l.b16 %v1719
    %v2611 = vunpack.c.h.b16 %v1719
    %v2612 = vunpack.c.l.b16 %v1720
    %v2613 = vunpack.c.h.b16 %v1720
    %v2614 = vunpack.c.l.b16 %v1721
    %v2615 = vunpack.c.h.b16 %v1721
    %v2616 = vunpack.c.l.b16 %v1722
    %v2617 = vunpack.c.h.b16 %v1722
    %v2618 = vunpack.c.l.b16 %v1723
    %v2619 = vunpack.c.h.b16 %v1723
    %v2620 = vpack.c.b16 %v2050, %v2044
    %v2621 = vpack.c.b16 %v2051, %v2045
    %v2622 = vpack.c.b16 %v2052, %v2046
    %v2623 = vpack.c.b16 %v2053, %v2047
    %v2624 = vpack.c.b16 %v2054, %v2048
    %v2625 = vpack.c.b16 %v2055, %v2049
    %v2626 = vpack.c.b16 %v2062, %v2056
    %v2627 = vpack.c.b16 %v2063, %v2057
    %v2628 = vpack.c.b16 %v2064, %v2058
    %v2629 = vpack.c.b16 %v2065, %v2059
    %v2630 = vpack.c.b16 %v2066, %v2060
    %v2631 = vpack.c.b16 %v2067, %v2061
    %v2632 = vpack.c.b16 %v2074, %v2068
    %v2633 = vpack.c.b16 %v2075, %v2069
    %v2634 = vpack.c.b16 %v2076, %v2070
    %v2635 = vpack.c.b16 %v2077, %v2071
    %v2636 = vpack.c.b16 %v2078, %v2072
    %v2637 = vpack.c.b16 %v2079, %v2073
    %v2638 = vpack.c.b16 %v2086, %v2080
    %v2639 = vpack.c.b16 %v2087, %v2081
    %v2640 = vpack.c.b16 %v2088, %v2082
    %v2641 = vpack.c.b16 %v2089, %v2083
    %v2642 = vpack.c.b16 %v2090, %v2084
    %v2643 = vpack.c.b16 %v2091, %v2085
    %v2644 = vpack.c.b16 %v2098, %v2092
    %v2645 = vpack.c.b16 %v2099, %v2093
    %v2646 = vpack.c.b16 %v2100, %v2094
    %v2647 = vpack.c.b16 %v2101, %v2095
    %v2648 = vpack.c.b16 %v2102, %v2096
    %v2649 = vpack.c.b16 %v2103, %v2097
    %v2650 = vpack.c.b16 %v2110, %v2104
    %v2651 = vpack.c.b16 %v2111, %v2105
    %v2652 = vpack.c.b16 %v2112, %v2106
    %v2653 = vpack.c.b16 %v2113, %v2107
    %v2654 = vpack.c.b16 %v2114, %v2108
    %v2655 = vpack.c.b16 %v2115, %v2109
    %v2656 = vpack.c.b16 %v2122, %v2116
    %v2657 = vpack.c.b16 %v2123, %v2117
    %v2658 = vpack.c.b16 %v2124, %v2118
    %v2659 = vpack.c.b16 %v2125, %v2119
    %v2660 = vpack.c.b16 %v2126, %v2120
    %v2661 = vpack.c.b16 %v2127, %v2121
    %v2662 = vpack.c.b16 %v2134, %v2128
    %v2663 = vpack.c.b16 %v2135, %v2129
    %v2664 = vpack.c.b16 %v2136, %v2130
    %v2665 = vpack.c.b16 %v2137, %v2131
    %v2666 = vpack.c.b16 %v2138, %v2132
    %v2667 = vpack.c.b16 %v2139, %v2133
    %v2668 = vpack.c.b16 %v2146, %v2140
    %v2669 = vpack.c.b16 %v2147, %v2141
    %v2670 = vpack.c.b16 %v2148, %v2142
    %v2671 = vpack.c.b16 %v2149, %v2143
    %v2672 = vpack.c.b16 %v2150, %v2144
    %v2673 = vpack.c.b16 %v2151, %v2145
    %v2674 = vpack.c.b16 %v2158, %v2152
    %v2675 = vpack.c.b16 %v2159, %v2153
    %v2676 = vpack.c.b16 %v2160, %v2154
    %v2677 = vpack.c.b16 %v2161, %v2155
    %v2678 = vpack.c.b16 %v2162, %v2156
    %v2679 = vpack.c.b16 %v2163, %v2157
    %v2680 = vpack.c.b16 %v2170, %v2164
    %v2681 = vpack.c.b16 %v2171, %v2165
    %v2682 = vpack.c.b16 %v2172, %v2166
    %v2683 = vpack.c.b16 %v2173, %v2167
    %v2684 = vpack.c.b16 %v2174, %v2168
    %v2685 = vpack.c.b16 %v2175, %v2169
    %v2686 = vpack.c.b16 %v2182, %v2176
    %v2687 = vpack.c.b16 %v2183, %v2177
    %v2688 = vpack.c.b16 %v2184, %v2178
    %v2689 = vpack.c.b16 %v2185, %v2179
    %v2690 = vpack.c.b16 %v2186, %v2180
    %v2691 = vpack.c.b16 %v2187, %v2181
    %v2692 = vpack.c.b16 %v2194, %v2188
    %v2693 = vpack.c.b16 %v2195, %v2189
    %v2694 = vpack.c.b16 %v2196, %v2190
    %v2695 = vpack.c.b16 %v2197, %v2191
    %v2696 = vpack.c.b16 %v2198, %v2192
    %v2697 = vpack.c.b16 %v2199, %v2193
    %v2698 = vpack.c.b16 %v2206, %v2200
    %v2699 = vpack.c.b16 %v2207, %v2201
    %v2700 = vpack.c.b16 %v2208, %v2202
    %v2701 = vpack.c.b16 %v2209, %v2203
    %v2702 = vpack.c.b16 %v2210, %v2204
    %v2703 = vpack.c.b16 %v2211, %v2205
    %v2704 = vpack.c.b16 %v2218, %v2212
    %v2705 = vpack.c.b16 %v2219, %v2213
    %v2706 = vpack.c.b16 %v2220, %v2214
    %v2707 = vpack.c.b16 %v2221, %v2215
    %v2708 = vpack.c.b16 %v2222, %v2216
    %v2709 = vpack.c.b16 %v2223, %v2217
    %v2710 = vpack.c.b16 %v2230, %v2224
    %v2711 = vpack.c.b16 %v2231, %v2225
    %v2712 = vpack.c.b16 %v2232, %v2226
    %v2713 = vpack.c.b16 %v2233, %v2227
    %v2714 = vpack.c.b16 %v2234, %v2228
    %v2715 = vpack.c.b16 %v2235, %v2229
    %v2716 = vpack.c.b16 %v2242, %v2236
    %v2717 = vpack.c.b16 %v2243, %v2237
    %v2718 = vpack.c.b16 %v2244, %v2238
    %v2719 = vpack.c.b16 %v2245, %v2239
    %v2720 = vpack.c.b16 %v2246, %v2240
    %v2721 = vpack.c.b16 %v2247, %v2241
    %v2722 = vpack.c.b16 %v2254, %v2248
    %v2723 = vpack.c.b16 %v2255, %v2249
    %v2724 = vpack.c.b16 %v2256, %v2250
    %v2725 = vpack.c.b16 %v2257, %v2251
    %v2726 = vpack.c.b16 %v2258, %v2252
    %v2727 = vpack.c.b16 %v2259, %v2253
    %v2728 = vpack.c.b16 %v2266, %v2260
    %v2729 = vpack.c.b16 %v2267, %v2261
    %v2730 = vpack.c.b16 %v2268, %v2262
    %v2731 = vpack.c.b16 %v2269, %v2263
    %v2732 = vpack.c.b16 %v2270, %v2264
    %v2733 = vpack.c.b16 %v2271, %v2265
    %v2734 = vpack.c.b16 %v2278, %v2272
    %v2735 = vpack.c.b16 %v2279, %v2273
    %v2736 = vpack.c.b16 %v2280, %v2274
    %v2737 = vpack.c.b16 %v2281, %v2275
    %v2738 = vpack.c.b16 %v2282, %v2276
    %v2739 = vpack.c.b16 %v2283, %v2277
    %v2740 = vpack.c.b16 %v2290, %v2284
    %v2741 = vpack.c.b16 %v2291, %v2285
    %v2742 = vpack.c.b16 %v2292, %v2286
    %v2743 = vpack.c.b16 %v2293, %v2287
    %v2744 = vpack.c.b16 %v2294, %v2288
    %v2745 = vpack.c.b16 %v2295, %v2289
    %v2746 = vpack.c.b16 %v2302, %v2296
    %v2747 = vpack.c.b16 %v2303, %v2297
    %v2748 = vpack.c.b16 %v2304, %v2298
    %v2749 = vpack.c.b16 %v2305, %v2299
    %v2750 = vpack.c.b16 %v2306, %v2300
    %v2751 = vpack.c.b16 %v2307, %v2301
    %v2752 = vpack.c.b16 %v2314, %v2308
    %v2753 = vpack.c.b16 %v2315, %v2309
    %v2754 = vpack.c.b16 %v2316, %v2310
    %v2755 = vpack.c.b16 %v2317, %v2311
    %v2756 = vpack.c.b16 %v2318, %v2312
    %v2757 = vpack.c.b16 %v2319, %v2313
    %v2758 = vpack.c.b16 %v2326, %v2320
    %v2759 = vpack.c.b16 %v2327, %v2321
    %v2760 = vpack.c.b16 %v2328, %v2322
    %v2761 = vpack.c.b16 %v2329, %v2323
    %v2762 = vpack.c.b16 %v2330, %v2324
    %v2763 = vpack.c.b16 %v2331, %v2325
    %v2764 = vpack.c.b16 %v2338, %v2332
    %v2765 = vpack.c.b16 %v2339, %v2333
    %v2766 = vpack.c.b16 %v2340, %v2334
    %v2767 = vpack.c.b16 %v2341, %v2335
    %v2768 = vpack.c.b16 %v2342, %v2336
    %v2769 = vpack.c.b16 %v2343, %v2337
    %v2770 = vpack.c.b16 %v2350, %v2344
    %v2771 = vpack.c.b16 %v2351, %v2345
    %v2772 = vpack.c.b16 %v2352, %v2346
    %v2773 = vpack.c.b16 %v2353, %v2347
    %v2774 = vpack.c.b16 %v2354, %v2348
    %v2775 = vpack.c.b16 %v2355, %v2349
    %v2776 = vpack.c.b16 %v2362, %v2356
    %v2777 = vpack.c.b16 %v2363, %v2357
    %v2778 = vpack.c.b16 %v2364, %v2358
    %v2779 = vpack.c.b16 %v2365, %v2359
    %v2780 = vpack.c.b16 %v2366, %v2360
    %v2781 = vpack.c.b16 %v2367, %v2361
    %v2782 = vpack.c.b16 %v2374, %v2368
    %v2783 = vpack.c.b16 %v2375, %v2369
    %v2784 = vpack.c.b16 %v2376, %v2370
    %v2785 = vpack.c.b16 %v2377, %v2371
    %v2786 = vpack.c.b16 %v2378, %v2372
    %v2787 = vpack.c.b16 %v2379, %v2373
    %v2788 = vpack.c.b16 %v2386, %v2380
    %v2789 = vpack.c.b16 %v2387, %v2381
    %v2790 = vpack.c.b16 %v2388, %v2382
    %v2791 = vpack.c.b16 %v2389, %v2383
    %v2792 = vpack.c.b16 %v2390, %v2384
    %v2793 = vpack.c.b16 %v2391, %v2385
    %v2794 = vpack.c.b16 %v2398, %v2392
    %v2795 = vpack.c.b16 %v2399, %v2393
    %v2796 = vpack.c.b16 %v2400, %v2394
    %v2797 = vpack.c.b16 %v2401, %v2395
    %v2798 = vpack.c.b16 %v2402, %v2396
    %v2799 = vpack.c.b16 %v2403, %v2397
    %v2800 = vpack.c.b16 %v2410, %v2404
    %v2801 = vpack.c.b16 %v2411, %v2405
    %v2802 = vpack.c.b16 %v2412, %v2406
    %v2803 = vpack.c.b16 %v2413, %v2407
    %v2804 = vpack.c.b16 %v2414, %v2408
    %v2805 = vpack.c.b16 %v2415, %v2409
    %v2806 = vpack.c.b16 %v2422, %v2416
    %v2807 = vpack.c.b16 %v2423, %v2417
    %v2808 = vpack.c.b16 %v2424, %v2418
    %v2809 = vpack.c.b16 %v2425, %v2419
    %v2810 = vpack.c.b16 %v2426, %v2420
    %v2811 = vpack.c.b16 %v2427, %v2421
    %v2812 = vpack.c.b16 %v2434, %v2428
    %v2813 = vpack.c.b16 %v2435, %v2429
    %v2814 = vpack.c.b16 %v2436, %v2430
    %v2815 = vpack.c.b16 %v2437, %v2431
    %v2816 = vpack.c.b16 %v2438, %v2432
    %v2817 = vpack.c.b16 %v2439, %v2433
    %v2818 = vpack.c.b16 %v2446, %v2440
    %v2819 = vpack.c.b16 %v2447, %v2441
    %v2820 = vpack.c.b16 %v2448, %v2442
    %v2821 = vpack.c.b16 %v2449, %v2443
    %v2822 = vpack.c.b16 %v2450, %v2444
    %v2823 = vpack.c.b16 %v2451, %v2445
    %v2824 = vpack.c.b16 %v2458, %v2452
    %v2825 = vpack.c.b16 %v2459, %v2453
    %v2826 = vpack.c.b16 %v2460, %v2454
    %v2827 = vpack.c.b16 %v2461, %v2455
    %v2828 = vpack.c.b16 %v2462, %v2456
    %v2829 = vpack.c.b16 %v2463, %v2457
    %v2830 = vpack.c.b16 %v2470, %v2464
    %v2831 = vpack.c.b16 %v2471, %v2465
    %v2832 = vpack.c.b16 %v2472, %v2466
    %v2833 = vpack.c.b16 %v2473, %v2467
    %v2834 = vpack.c.b16 %v2474, %v2468
    %v2835 = vpack.c.b16 %v2475, %v2469
    %v2836 = vpack.c.b16 %v2482, %v2476
    %v2837 = vpack.c.b16 %v2483, %v2477
    %v2838 = vpack.c.b16 %v2484, %v2478
    %v2839 = vpack.c.b16 %v2485, %v2479
    %v2840 = vpack.c.b16 %v2486, %v2480
    %v2841 = vpack.c.b16 %v2487, %v2481
    %v2842 = vpack.c.b16 %v2494, %v2488
    %v2843 = vpack.c.b16 %v2495, %v2489
    %v2844 = vpack.c.b16 %v2496, %v2490
    %v2845 = vpack.c.b16 %v2497, %v2491
    %v2846 = vpack.c.b16 %v2498, %v2492
    %v2847 = vpack.c.b16 %v2499, %v2493
    %v2848 = vpack.c.b16 %v2506, %v2500
    %v2849 = vpack.c.b16 %v2507, %v2501
    %v2850 = vpack.c.b16 %v2508, %v2502
    %v2851 = vpack.c.b16 %v2509, %v2503
    %v2852 = vpack.c.b16 %v2510, %v2504
    %v2853 = vpack.c.b16 %v2511, %v2505
    %v2854 = vpack.c.b16 %v2518, %v2512
    %v2855 = vpack.c.b16 %v2519, %v2513
    %v2856 = vpack.c.b16 %v2520, %v2514
    %v2857 = vpack.c.b16 %v2521, %v2515
    %v2858 = vpack.c.b16 %v2522, %v2516
    %v2859 = vpack.c.b16 %v2523, %v2517
    %v2860 = vpack.c.b16 %v2530, %v2524
    %v2861 = vpack.c.b16 %v2531, %v2525
    %v2862 = vpack.c.b16 %v2532, %v2526
    %v2863 = vpack.c.b16 %v2533, %v2527
    %v2864 = vpack.c.b16 %v2534, %v2528
    %v2865 = vpack.c.b16 %v2535, %v2529
    %v2866 = vpack.c.b16 %v2542, %v2536
    %v2867 = vpack.c.b16 %v2543, %v2537
    %v2868 = vpack.c.b16 %v2544, %v2538
    %v2869 = vpack.c.b16 %v2545, %v2539
    %v2870 = vpack.c.b16 %v2546, %v2540
    %v2871 = vpack.c.b16 %v2547, %v2541
    %v2872 = vpack.c.b16 %v2554, %v2548
    %v2873 = vpack.c.b16 %v2555, %v2549
    %v2874 = vpack.c.b16 %v2556, %v2550
    %v2875 = vpack.c.b16 %v2557, %v2551
    %v2876 = vpack.c.b16 %v2558, %v2552
    %v2877 = vpack.c.b16 %v2559, %v2553
    %v2878 = vpack.c.b16 %v2566, %v2560
    %v2879 = vpack.c.b16 %v2567, %v2561
    %v2880 = vpack.c.b16 %v2568, %v2562
    %v2881 = vpack.c.b16 %v2569, %v2563
    %v2882 = vpack.c.b16 %v2570, %v2564
    %v2883 = vpack.c.b16 %v2571, %v2565
    %v2884 = vpack.c.b16 %v2578, %v2572
    %v2885 = vpack.c.b16 %v2579, %v2573
    %v2886 = vpack.c.b16 %v2580, %v2574
    %v2887 = vpack.c.b16 %v2581, %v2575
    %v2888 = vpack.c.b16 %v2582, %v2576
    %v2889 = vpack.c.b16 %v2583, %v2577
    %v2890 = vpack.c.b16 %v2590, %v2584
    %v2891 = vpack.c.b16 %v2591, %v2585
    %v2892 = vpack.c.b16 %v2592, %v2586
    %v2893 = vpack.c.b16 %v2593, %v2587
    %v2894 = vpack.c.b16 %v2594, %v2588
    %v2895 = vpack.c.b16 %v2595, %v2589
    %v2896 = vpack.c.b16 %v2602, %v2596
    %v2897 = vpack.c.b16 %v2603, %v2597
    %v2898 = vpack.c.b16 %v2604, %v2598
    %v2899 = vpack.c.b16 %v2605, %v2599
    %v2900 = vpack.c.b16 %v2606, %v2600
    %v2901 = vpack.c.b16 %v2607, %v2601
    %v2902 = vpack.c.b16 %v2614, %v2608
    %v2903 = vpack.c.b16 %v2615, %v2609
    %v2904 = vpack.c.b16 %v2616, %v2610
    %v2905 = vpack.c.b16 %v2617, %v2611
    %v2906 = vpack.c.b16 %v2618, %v2612
    %v2907 = vpack.c.b16 %v2619, %v2613
    %3196 = vmatprep.subr.bf16.mxu0 %v2663
    %3197 = vmatpush1.bf16.msra.mxu0 %v2662
    %3198 = vmatprep.subr.bf16.mxu0 %v2657
    %3199 = vmatpush1.bf16.msra.mxu0 %v2656
    %3200 = vmatprep.subr.bf16.mxu0 %v2651
    %3201 = vmatpush1.bf16.msra.mxu0 %v2650
    %3202 = vmatprep.subr.bf16.mxu0 %v2645
    %3203 = vmatpush1.bf16.msra.mxu0 %v2644
    %3204 = vmatprep.subr.bf16.mxu0 %v2639
    %3205 = vmatpush1.bf16.msra.mxu0 %v2638
    %3206 = vmatprep.subr.bf16.mxu0 %v2633
    %3207 = vmatpush1.bf16.msra.mxu0 %v2632
    %3208 = vmatprep.subr.bf16.mxu0 %v2627
    %3209 = vmatpush1.bf16.msra.mxu0 %v2626
    %3210 = vmatprep.subr.bf16.mxu0 %v2621
    %3211 = vmatpush1.bf16.msra.mxu0 %v2620
    %3212 = vmatprep.subr.bf16.mxu0 %v2711
    %3213 = vmatpush2.bf16.msra.mxu0 %v2710
    %3214 = vmatprep.subr.bf16.mxu0 %v2705
    %3215 = vmatpush2.bf16.msra.mxu0 %v2704
    %3216 = vmatprep.subr.bf16.mxu0 %v2699
    %3217 = vmatpush2.bf16.msra.mxu0 %v2698
    %3218 = vmatprep.subr.bf16.mxu0 %v2693
    %3219 = vmatpush2.bf16.msra.mxu0 %v2692
    %3220 = vmatprep.subr.bf16.mxu0 %v2687
    %3221 = vmatpush2.bf16.msra.mxu0 %v2686
    %3222 = vmatprep.subr.bf16.mxu0 %v2681
    %3223 = vmatpush2.bf16.msra.mxu0 %v2680
    %3224 = vmatprep.subr.bf16.mxu0 %v2675
    %3225 = vmatpush2.bf16.msra.mxu0 %v2674
    %3226 = vmatprep.subr.bf16.mxu0 %v2669
    %3227 = vmatpush2.bf16.msra.mxu0 %v2668
    %3228 = vmatprep.mubr.bf16.mxu0 %v1431
    %3229 = vmatmul.mubr.bf16.gmra.mxu0 %v1430
    %v3230 = vpop.f32.mrf.mxu0
    %v3231 = vadd.f32 %v1729, %v3230
    %v3232 = vpop.f32.mrf.mxu0
    %v3233 = vadd.f32 %v1733, %v3232
    %v3234 = vpop.f32.mrf.mxu0
    %v3235 = vpop.f32.mrf.mxu0
    %3236 = vdwg.mxu0
    %3237 = vmatprep.subr.bf16.mxu0 %v2759
    %3238 = vmatpush1.bf16.msra.mxu0 %v2758
    %3239 = vmatprep.subr.bf16.mxu0 %v2753
    %3240 = vmatpush1.bf16.msra.mxu0 %v2752
    %3241 = vmatprep.subr.bf16.mxu0 %v2747
    %3242 = vmatpush1.bf16.msra.mxu0 %v2746
    %3243 = vmatprep.subr.bf16.mxu0 %v2741
    %3244 = vmatpush1.bf16.msra.mxu0 %v2740
    %3245 = vmatprep.subr.bf16.mxu0 %v2735
    %3246 = vmatpush1.bf16.msra.mxu0 %v2734
    %3247 = vmatprep.subr.bf16.mxu0 %v2729
    %3248 = vmatpush1.bf16.msra.mxu0 %v2728
    %3249 = vmatprep.subr.bf16.mxu0 %v2723
    %3250 = vmatpush1.bf16.msra.mxu0 %v2722
    %3251 = vmatprep.subr.bf16.mxu0 %v2717
    %3252 = vmatpush1.bf16.msra.mxu0 %v2716
    %3253 = vmatprep.subr.bf16.mxu0 %v2807
    %3254 = vmatpush2.bf16.msra.mxu0 %v2806
    %3255 = vmatprep.subr.bf16.mxu0 %v2801
    %3256 = vmatpush2.bf16.msra.mxu0 %v2800
    %3257 = vmatprep.subr.bf16.mxu0 %v2795
    %3258 = vmatpush2.bf16.msra.mxu0 %v2794
    %3259 = vmatprep.subr.bf16.mxu0 %v2789
    %3260 = vmatpush2.bf16.msra.mxu0 %v2788
    %3261 = vmatprep.subr.bf16.mxu0 %v2783
    %3262 = vmatpush2.bf16.msra.mxu0 %v2782
    %3263 = vmatprep.subr.bf16.mxu0 %v2777
    %3264 = vmatpush2.bf16.msra.mxu0 %v2776
    %3265 = vmatprep.subr.bf16.mxu0 %v2771
    %3266 = vmatpush2.bf16.msra.mxu0 %v2770
    %3267 = vmatprep.subr.bf16.mxu0 %v2765
    %3268 = vmatpush2.bf16.msra.mxu0 %v2764
    %3269 = vmatprep.mubr.bf16.mxu0 %v1433
    %3270 = vmatmul.mubr.bf16.gmra.mxu0 %v1432
    %v3271 = vpop.f32.mrf.mxu0
    %v3272 = vadd.f32 %v3231, %v3271
    %v3273 = vpop.f32.mrf.mxu0
    %v3274 = vadd.f32 %v3233, %v3273
    %v3275 = vpop.f32.mrf.mxu0
    %v3276 = vpop.f32.mrf.mxu0
    %3277 = vdwg.mxu0
    %3278 = vmatprep.subr.bf16.mxu0 %v2855
    %3279 = vmatpush1.bf16.msra.mxu0 %v2854
    %3280 = vmatprep.subr.bf16.mxu0 %v2849
    %3281 = vmatpush1.bf16.msra.mxu0 %v2848
    %3282 = vmatprep.subr.bf16.mxu0 %v2843
    %3283 = vmatpush1.bf16.msra.mxu0 %v2842
    %3284 = vmatprep.subr.bf16.mxu0 %v2837
    %3285 = vmatpush1.bf16.msra.mxu0 %v2836
    %3286 = vmatprep.subr.bf16.mxu0 %v2831
    %3287 = vmatpush1.bf16.msra.mxu0 %v2830
    %3288 = vmatprep.subr.bf16.mxu0 %v2825
    %3289 = vmatpush1.bf16.msra.mxu0 %v2824
    %3290 = vmatprep.subr.bf16.mxu0 %v2819
    %3291 = vmatpush1.bf16.msra.mxu0 %v2818
    %3292 = vmatprep.subr.bf16.mxu0 %v2813
    %3293 = vmatpush1.bf16.msra.mxu0 %v2812
    %3294 = vmatprep.subr.bf16.mxu0 %v2903
    %3295 = vmatpush2.bf16.msra.mxu0 %v2902
    %3296 = vmatprep.subr.bf16.mxu0 %v2897
    %3297 = vmatpush2.bf16.msra.mxu0 %v2896
    %3298 = vmatprep.subr.bf16.mxu0 %v2891
    %3299 = vmatpush2.bf16.msra.mxu0 %v2890
    %3300 = vmatprep.subr.bf16.mxu0 %v2885
    %3301 = vmatpush2.bf16.msra.mxu0 %v2884
    %3302 = vmatprep.subr.bf16.mxu0 %v2879
    %3303 = vmatpush2.bf16.msra.mxu0 %v2878
    %3304 = vmatprep.subr.bf16.mxu0 %v2873
    %3305 = vmatpush2.bf16.msra.mxu0 %v2872
    %3306 = vmatprep.subr.bf16.mxu0 %v2867
    %3307 = vmatpush2.bf16.msra.mxu0 %v2866
    %3308 = vmatprep.subr.bf16.mxu0 %v2861
    %3309 = vmatpush2.bf16.msra.mxu0 %v2860
    %3310 = vmatprep.mubr.bf16.mxu0 %v1435
    %3311 = vmatmul.mubr.bf16.gmra.mxu0 %v1434
    %v3312 = vpop.f32.mrf.mxu0
    %v3313 = vadd.f32 %v3272, %v3312
    %v3314 = vpop.f32.mrf.mxu0
    %v3315 = vadd.f32 %v3274, %v3314
    %v3316 = vpop.f32.mrf.mxu0
    %v3317 = vpop.f32.mrf.mxu0
    %3318 = vdwg.mxu0
    %3319 = vmatprep.subr.bf16.mxu0 %v2665
    %3320 = vmatpush1.bf16.msra.mxu0 %v2664
    %3321 = vmatprep.subr.bf16.mxu0 %v2659
    %3322 = vmatpush1.bf16.msra.mxu0 %v2658
    %3323 = vmatprep.subr.bf16.mxu0 %v2653
    %3324 = vmatpush1.bf16.msra.mxu0 %v2652
    %3325 = vmatprep.subr.bf16.mxu0 %v2647
    %3326 = vmatpush1.bf16.msra.mxu0 %v2646
    %3327 = vmatprep.subr.bf16.mxu0 %v2641
    %3328 = vmatpush1.bf16.msra.mxu0 %v2640
    %3329 = vmatprep.subr.bf16.mxu0 %v2635
    %3330 = vmatpush1.bf16.msra.mxu0 %v2634
    %3331 = vmatprep.subr.bf16.mxu0 %v2629
    %3332 = vmatpush1.bf16.msra.mxu0 %v2628
    %3333 = vmatprep.subr.bf16.mxu0 %v2623
    %3334 = vmatpush1.bf16.msra.mxu0 %v2622
    %3335 = vmatprep.subr.bf16.mxu0 %v2713
    %3336 = vmatpush2.bf16.msra.mxu0 %v2712
    %3337 = vmatprep.subr.bf16.mxu0 %v2707
    %3338 = vmatpush2.bf16.msra.mxu0 %v2706
    %3339 = vmatprep.subr.bf16.mxu0 %v2701
    %3340 = vmatpush2.bf16.msra.mxu0 %v2700
    %3341 = vmatprep.subr.bf16.mxu0 %v2695
    %3342 = vmatpush2.bf16.msra.mxu0 %v2694
    %3343 = vmatprep.subr.bf16.mxu0 %v2689
    %3344 = vmatpush2.bf16.msra.mxu0 %v2688
    %3345 = vmatprep.subr.bf16.mxu0 %v2683
    %3346 = vmatpush2.bf16.msra.mxu0 %v2682
    %3347 = vmatprep.subr.bf16.mxu0 %v2677
    %3348 = vmatpush2.bf16.msra.mxu0 %v2676
    %3349 = vmatprep.subr.bf16.mxu0 %v2671
    %3350 = vmatpush2.bf16.msra.mxu0 %v2670
    %3351 = vmatprep.mubr.bf16.mxu0 %v1431
    %3352 = vmatmul.mubr.bf16.gmra.mxu0 %v1430
    %v3353 = vpop.f32.mrf.mxu0
    %v3354 = vadd.f32 %v1737, %v3353
    %v3355 = vpop.f32.mrf.mxu0
    %v3356 = vadd.f32 %v1741, %v3355
    %v3357 = vpop.f32.mrf.mxu0
    %v3358 = vpop.f32.mrf.mxu0
    %3359 = vdwg.mxu0
    %3360 = vmatprep.subr.bf16.mxu0 %v2761
    %3361 = vmatpush1.bf16.msra.mxu0 %v2760
    %3362 = vmatprep.subr.bf16.mxu0 %v2755
    %3363 = vmatpush1.bf16.msra.mxu0 %v2754
    %3364 = vmatprep.subr.bf16.mxu0 %v2749
    %3365 = vmatpush1.bf16.msra.mxu0 %v2748
    %3366 = vmatprep.subr.bf16.mxu0 %v2743
    %3367 = vmatpush1.bf16.msra.mxu0 %v2742
    %3368 = vmatprep.subr.bf16.mxu0 %v2737
    %3369 = vmatpush1.bf16.msra.mxu0 %v2736
    %3370 = vmatprep.subr.bf16.mxu0 %v2731
    %3371 = vmatpush1.bf16.msra.mxu0 %v2730
    %3372 = vmatprep.subr.bf16.mxu0 %v2725
    %3373 = vmatpush1.bf16.msra.mxu0 %v2724
    %3374 = vmatprep.subr.bf16.mxu0 %v2719
    %3375 = vmatpush1.bf16.msra.mxu0 %v2718
    %3376 = vmatprep.subr.bf16.mxu0 %v2809
    %3377 = vmatpush2.bf16.msra.mxu0 %v2808
    %3378 = vmatprep.subr.bf16.mxu0 %v2803
    %3379 = vmatpush2.bf16.msra.mxu0 %v2802
    %3380 = vmatprep.subr.bf16.mxu0 %v2797
    %3381 = vmatpush2.bf16.msra.mxu0 %v2796
    %3382 = vmatprep.subr.bf16.mxu0 %v2791
    %3383 = vmatpush2.bf16.msra.mxu0 %v2790
    %3384 = vmatprep.subr.bf16.mxu0 %v2785
    %3385 = vmatpush2.bf16.msra.mxu0 %v2784
    %3386 = vmatprep.subr.bf16.mxu0 %v2779
    %3387 = vmatpush2.bf16.msra.mxu0 %v2778
    %3388 = vmatprep.subr.bf16.mxu0 %v2773
    %3389 = vmatpush2.bf16.msra.mxu0 %v2772
    %3390 = vmatprep.subr.bf16.mxu0 %v2767
    %3391 = vmatpush2.bf16.msra.mxu0 %v2766
    %3392 = vmatprep.mubr.bf16.mxu0 %v1433
    %3393 = vmatmul.mubr.bf16.gmra.mxu0 %v1432
    %v3394 = vpop.f32.mrf.mxu0
    %v3395 = vadd.f32 %v3354, %v3394
    %v3396 = vpop.f32.mrf.mxu0
    %v3397 = vadd.f32 %v3356, %v3396
    %v3398 = vpop.f32.mrf.mxu0
    %v3399 = vpop.f32.mrf.mxu0
    %3400 = vdwg.mxu0
    %3401 = vmatprep.subr.bf16.mxu0 %v2857
    %3402 = vmatpush1.bf16.msra.mxu0 %v2856
    %3403 = vmatprep.subr.bf16.mxu0 %v2851
    %3404 = vmatpush1.bf16.msra.mxu0 %v2850
    %3405 = vmatprep.subr.bf16.mxu0 %v2845
    %3406 = vmatpush1.bf16.msra.mxu0 %v2844
    %3407 = vmatprep.subr.bf16.mxu0 %v2839
    %3408 = vmatpush1.bf16.msra.mxu0 %v2838
    %3409 = vmatprep.subr.bf16.mxu0 %v2833
    %3410 = vmatpush1.bf16.msra.mxu0 %v2832
    %3411 = vmatprep.subr.bf16.mxu0 %v2827
    %3412 = vmatpush1.bf16.msra.mxu0 %v2826
    %3413 = vmatprep.subr.bf16.mxu0 %v2821
    %3414 = vmatpush1.bf16.msra.mxu0 %v2820
    %3415 = vmatprep.subr.bf16.mxu0 %v2815
    %3416 = vmatpush1.bf16.msra.mxu0 %v2814
    %3417 = vmatprep.subr.bf16.mxu0 %v2905
    %3418 = vmatpush2.bf16.msra.mxu0 %v2904
    %3419 = vmatprep.subr.bf16.mxu0 %v2899
    %3420 = vmatpush2.bf16.msra.mxu0 %v2898
    %3421 = vmatprep.subr.bf16.mxu0 %v2893
    %3422 = vmatpush2.bf16.msra.mxu0 %v2892
    %3423 = vmatprep.subr.bf16.mxu0 %v2887
    %3424 = vmatpush2.bf16.msra.mxu0 %v2886
    %3425 = vmatprep.subr.bf16.mxu0 %v2881
    %3426 = vmatpush2.bf16.msra.mxu0 %v2880
    %3427 = vmatprep.subr.bf16.mxu0 %v2875
    %3428 = vmatpush2.bf16.msra.mxu0 %v2874
    %3429 = vmatprep.subr.bf16.mxu0 %v2869
    %3430 = vmatpush2.bf16.msra.mxu0 %v2868
    %3431 = vmatprep.subr.bf16.mxu0 %v2863
    %3432 = vmatpush2.bf16.msra.mxu0 %v2862
    %3433 = vmatprep.mubr.bf16.mxu0 %v1435
    %3434 = vmatmul.mubr.bf16.gmra.mxu0 %v1434
    %v3435 = vpop.f32.mrf.mxu0
    %v3436 = vadd.f32 %v3395, %v3435
    %v3437 = vpop.f32.mrf.mxu0
    %v3438 = vadd.f32 %v3397, %v3437
    %v3439 = vpop.f32.mrf.mxu0
    %v3440 = vpop.f32.mrf.mxu0
    %3441 = vdwg.mxu0
    %3442 = vmatprep.subr.bf16.mxu0 %v2667
    %3443 = vmatpush1.bf16.msra.mxu0 %v2666
    %3444 = vmatprep.subr.bf16.mxu0 %v2661
    %3445 = vmatpush1.bf16.msra.mxu0 %v2660
    %3446 = vmatprep.subr.bf16.mxu0 %v2655
    %3447 = vmatpush1.bf16.msra.mxu0 %v2654
    %3448 = vmatprep.subr.bf16.mxu0 %v2649
    %3449 = vmatpush1.bf16.msra.mxu0 %v2648
    %3450 = vmatprep.subr.bf16.mxu0 %v2643
    %3451 = vmatpush1.bf16.msra.mxu0 %v2642
    %3452 = vmatprep.subr.bf16.mxu0 %v2637
    %3453 = vmatpush1.bf16.msra.mxu0 %v2636
    %3454 = vmatprep.subr.bf16.mxu0 %v2631
    %3455 = vmatpush1.bf16.msra.mxu0 %v2630
    %3456 = vmatprep.subr.bf16.mxu0 %v2625
    %3457 = vmatpush1.bf16.msra.mxu0 %v2624
    %3458 = vmatprep.subr.bf16.mxu0 %v2715
    %3459 = vmatpush2.bf16.msra.mxu0 %v2714
    %3460 = vmatprep.subr.bf16.mxu0 %v2709
    %3461 = vmatpush2.bf16.msra.mxu0 %v2708
    %3462 = vmatprep.subr.bf16.mxu0 %v2703
    %3463 = vmatpush2.bf16.msra.mxu0 %v2702
    %3464 = vmatprep.subr.bf16.mxu0 %v2697
    %3465 = vmatpush2.bf16.msra.mxu0 %v2696
    %3466 = vmatprep.subr.bf16.mxu0 %v2691
    %3467 = vmatpush2.bf16.msra.mxu0 %v2690
    %3468 = vmatprep.subr.bf16.mxu0 %v2685
    %3469 = vmatpush2.bf16.msra.mxu0 %v2684
    %3470 = vmatprep.subr.bf16.mxu0 %v2679
    %3471 = vmatpush2.bf16.msra.mxu0 %v2678
    %3472 = vmatprep.subr.bf16.mxu0 %v2673
    %3473 = vmatpush2.bf16.msra.mxu0 %v2672
    %3474 = vmatprep.mubr.bf16.mxu0 %v1431
    %3475 = vmatmul.mubr.bf16.gmra.mxu0 %v1430
    %v3476 = vpop.f32.mrf.mxu0
    %v3477 = vadd.f32 %v1745, %v3476
    %v3478 = vpop.f32.mrf.mxu0
    %v3479 = vadd.f32 %v1749, %v3478
    %v3480 = vpop.f32.mrf.mxu0
    %v3481 = vpop.f32.mrf.mxu0
    %3482 = vdwg.mxu0
    %3483 = vmatprep.subr.bf16.mxu0 %v2763
    %3484 = vmatpush1.bf16.msra.mxu0 %v2762
    %3485 = vmatprep.subr.bf16.mxu0 %v2757
    %3486 = vmatpush1.bf16.msra.mxu0 %v2756
    %3487 = vmatprep.subr.bf16.mxu0 %v2751
    %3488 = vmatpush1.bf16.msra.mxu0 %v2750
    %3489 = vmatprep.subr.bf16.mxu0 %v2745
    %3490 = vmatpush1.bf16.msra.mxu0 %v2744
    %3491 = vmatprep.subr.bf16.mxu0 %v2739
    %3492 = vmatpush1.bf16.msra.mxu0 %v2738
    %3493 = vmatprep.subr.bf16.mxu0 %v2733
    %3494 = vmatpush1.bf16.msra.mxu0 %v2732
    %3495 = vmatprep.subr.bf16.mxu0 %v2727
    %3496 = vmatpush1.bf16.msra.mxu0 %v2726
    %3497 = vmatprep.subr.bf16.mxu0 %v2721
    %3498 = vmatpush1.bf16.msra.mxu0 %v2720
    %3499 = vmatprep.subr.bf16.mxu0 %v2811
    %3500 = vmatpush2.bf16.msra.mxu0 %v2810
    %3501 = vmatprep.subr.bf16.mxu0 %v2805
    %3502 = vmatpush2.bf16.msra.mxu0 %v2804
    %3503 = vmatprep.subr.bf16.mxu0 %v2799
    %3504 = vmatpush2.bf16.msra.mxu0 %v2798
    %3505 = vmatprep.subr.bf16.mxu0 %v2793
    %3506 = vmatpush2.bf16.msra.mxu0 %v2792
    %3507 = vmatprep.subr.bf16.mxu0 %v2787
    %3508 = vmatpush2.bf16.msra.mxu0 %v2786
    %3509 = vmatprep.subr.bf16.mxu0 %v2781
    %3510 = vmatpush2.bf16.msra.mxu0 %v2780
    %3511 = vmatprep.subr.bf16.mxu0 %v2775
    %3512 = vmatpush2.bf16.msra.mxu0 %v2774
    %3513 = vmatprep.subr.bf16.mxu0 %v2769
    %3514 = vmatpush2.bf16.msra.mxu0 %v2768
    %3515 = vmatprep.mubr.bf16.mxu0 %v1433
    %3516 = vmatmul.mubr.bf16.gmra.mxu0 %v1432
    %v3517 = vpop.f32.mrf.mxu0
    %v3518 = vadd.f32 %v3477, %v3517
    %v3519 = vpop.f32.mrf.mxu0
    %v3520 = vadd.f32 %v3479, %v3519
    %v3521 = vpop.f32.mrf.mxu0
    %v3522 = vpop.f32.mrf.mxu0
    %3523 = vdwg.mxu0
    %3524 = vmatprep.subr.bf16.mxu0 %v2859
    %3525 = vmatpush1.bf16.msra.mxu0 %v2858
    %3526 = vmatprep.subr.bf16.mxu0 %v2853
    %3527 = vmatpush1.bf16.msra.mxu0 %v2852
    %3528 = vmatprep.subr.bf16.mxu0 %v2847
    %3529 = vmatpush1.bf16.msra.mxu0 %v2846
    %3530 = vmatprep.subr.bf16.mxu0 %v2841
    %3531 = vmatpush1.bf16.msra.mxu0 %v2840
    %3532 = vmatprep.subr.bf16.mxu0 %v2835
    %3533 = vmatpush1.bf16.msra.mxu0 %v2834
    %3534 = vmatprep.subr.bf16.mxu0 %v2829
    %3535 = vmatpush1.bf16.msra.mxu0 %v2828
    %3536 = vmatprep.subr.bf16.mxu0 %v2823
    %3537 = vmatpush1.bf16.msra.mxu0 %v2822
    %3538 = vmatprep.subr.bf16.mxu0 %v2817
    %3539 = vmatpush1.bf16.msra.mxu0 %v2816
    %3540 = vmatprep.subr.bf16.mxu0 %v2907
    %3541 = vmatpush2.bf16.msra.mxu0 %v2906
    %3542 = vmatprep.subr.bf16.mxu0 %v2901
    %3543 = vmatpush2.bf16.msra.mxu0 %v2900
    %3544 = vmatprep.subr.bf16.mxu0 %v2895
    %3545 = vmatpush2.bf16.msra.mxu0 %v2894
    %3546 = vmatprep.subr.bf16.mxu0 %v2889
    %3547 = vmatpush2.bf16.msra.mxu0 %v2888
    %3548 = vmatprep.subr.bf16.mxu0 %v2883
    %3549 = vmatpush2.bf16.msra.mxu0 %v2882
    %3550 = vmatprep.subr.bf16.mxu0 %v2877
    %3551 = vmatpush2.bf16.msra.mxu0 %v2876
    %3552 = vmatprep.subr.bf16.mxu0 %v2871
    %3553 = vmatpush2.bf16.msra.mxu0 %v2870
    %3554 = vmatprep.subr.bf16.mxu0 %v2865
    %3555 = vmatpush2.bf16.msra.mxu0 %v2864
    %3556 = vmatprep.mubr.bf16.mxu0 %v1435
    %3557 = vmatmul.mubr.bf16.gmra.mxu0 %v1434
    %v3558 = vpop.f32.mrf.mxu0
    %v3559 = vadd.f32 %v3518, %v3558
    %v3560 = vpop.f32.mrf.mxu0
    %v3561 = vadd.f32 %v3520, %v3560
    %v3562 = vpop.f32.mrf.mxu0
    %v3563 = vpop.f32.mrf.mxu0
    %3564 = vdwg.mxu0
    %v3565 = vmax.f32 %v3313, 0.0
    %v3566 = vmax.f32 %v3315, 0.0
    %v3567 = vmax.f32 %v3436, 0.0
    %v3568 = vmax.f32 %v3438, 0.0
    %v3569 = vmax.f32 %v3559, 0.0
    %v3570 = vmax.f32 %v3561, 0.0
    %v3571 = vpack.c.bf16 %v3565, %v3565
    %v3572 = vpack.c.bf16 %v3566, %v3566
    %v3573 = vpack.c.bf16 %v3567, %v3567
    %v3574 = vpack.c.bf16 %v3568, %v3568
    %v3575 = vpack.c.bf16 %v3569, %v3569
    %v3576 = vpack.c.bf16 %v3570, %v3570
    %v3577 = vld [vmem:[#allocation9] sm:$0xff]
    %v3578 = vld [vmem:[#allocation9 + $0x8] sm:$0xff]
    %v3579 = vld [vmem:[#allocation9 + $0x10] sm:$0xff]
    %v3580 = vld [vmem:[#allocation9 + $0x18] sm:$0xff]
    %v3581 = vld [vmem:[#allocation9 + $0x20] sm:$0xff]
    %v3582 = vld [vmem:[#allocation9 + $0x28] sm:$0xff]
    %v3583 = vld [vmem:[#allocation9 + $0x30] sm:$0xff]
    %v3584 = vld [vmem:[#allocation9 + $0x38] sm:$0xff]
    %v3585 = vld [vmem:[#allocation9 + $0x40] sm:$0xff]
    %v3586 = vld [vmem:[#allocation9 + $0x48] sm:$0xff]
    %v3587 = vld [vmem:[#allocation9 + $0x50] sm:$0xff]
    %v3588 = vld [vmem:[#allocation9 + $0x58] sm:$0xff]
    %v3589 = vld [vmem:[#allocation9 + $0x60] sm:$0xff]
    %v3590 = vld [vmem:[#allocation9 + $0x68] sm:$0xff]
    %v3591 = vld [vmem:[#allocation9 + $0x70] sm:$0xff]
    %v3592 = vld [vmem:[#allocation9 + $0x78] sm:$0xff]
    %v3593 = vld [vmem:[#allocation9 + $0x80] sm:$0xff]
    %v3594 = vld [vmem:[#allocation9 + $0x88] sm:$0xff]
    %v3595 = vld [vmem:[#allocation9 + $0x90] sm:$0xff]
    %v3596 = vld [vmem:[#allocation9 + $0x98] sm:$0xff]
    %v3597 = vld [vmem:[#allocation9 + $0xa0] sm:$0xff]
    %v3598 = vld [vmem:[#allocation9 + $0xa8] sm:$0xff]
    %v3599 = vld [vmem:[#allocation9 + $0xb0] sm:$0xff]
    %v3600 = vld [vmem:[#allocation9 + $0xb8] sm:$0xff]
    %v3601 = vld [vmem:[#allocation9 + $0xc0] sm:$0xff]
    %v3602 = vld [vmem:[#allocation9 + $0xc8] sm:$0xff]
    %v3603 = vld [vmem:[#allocation9 + $0xd0] sm:$0xff]
    %v3604 = vld [vmem:[#allocation9 + $0xd8] sm:$0xff]
    %v3605 = vld [vmem:[#allocation9 + $0xe0] sm:$0xff]
    %v3606 = vld [vmem:[#allocation9 + $0xe8] sm:$0xff]
    %v3607 = vld [vmem:[#allocation9 + $0xf0] sm:$0xff]
    %v3608 = vld [vmem:[#allocation9 + $0xf8] sm:$0xff]
    %v3609 = vld [vmem:[#allocation9 + $0x100] sm:$0xff]
    %v3610 = vld [vmem:[#allocation9 + $0x108] sm:$0xff]
    %v3611 = vld [vmem:[#allocation9 + $0x110] sm:$0xff]
    %v3612 = vld [vmem:[#allocation9 + $0x118] sm:$0xff]
    %v3613 = vld [vmem:[#allocation9 + $0x120] sm:$0xff]
    %v3614 = vld [vmem:[#allocation9 + $0x128] sm:$0xff]
    %v3615 = vld [vmem:[#allocation9 + $0x130] sm:$0xff]
    %v3616 = vld [vmem:[#allocation9 + $0x138] sm:$0xff]
    %v3617 = vld [vmem:[#allocation9 + $0x140] sm:$0xff]
    %v3618 = vld [vmem:[#allocation9 + $0x148] sm:$0xff]
    %v3619 = vld [vmem:[#allocation9 + $0x150] sm:$0xff]
    %v3620 = vld [vmem:[#allocation9 + $0x158] sm:$0xff]
    %v3621 = vld [vmem:[#allocation9 + $0x160] sm:$0xff]
    %v3622 = vld [vmem:[#allocation9 + $0x168] sm:$0xff]
    %v3623 = vld [vmem:[#allocation9 + $0x170] sm:$0xff]
    %v3624 = vld [vmem:[#allocation9 + $0x178] sm:$0xff]
    %v3625 = vld [vmem:[#allocation9 + $0x180] sm:$0xff]
    %v3626 = vld [vmem:[#allocation9 + $0x188] sm:$0xff]
    %v3627 = vld [vmem:[#allocation9 + $0x190] sm:$0xff]
    %v3628 = vld [vmem:[#allocation9 + $0x198] sm:$0xff]
    %v3629 = vld [vmem:[#allocation9 + $0x1a0] sm:$0xff]
    %v3630 = vld [vmem:[#allocation9 + $0x1a8] sm:$0xff]
    %v3631 = vld [vmem:[#allocation9 + $0x1b0] sm:$0xff]
    %v3632 = vld [vmem:[#allocation9 + $0x1b8] sm:$0xff]
    %v3633 = vld [vmem:[#allocation9 + $0x1c0] sm:$0xff]
    %v3634 = vld [vmem:[#allocation9 + $0x1c8] sm:$0xff]
    %v3635 = vld [vmem:[#allocation9 + $0x1d0] sm:$0xff]
    %v3636 = vld [vmem:[#allocation9 + $0x1d8] sm:$0xff]
    %v3637 = vld [vmem:[#allocation9 + $0x1e0] sm:$0xff]
    %v3638 = vld [vmem:[#allocation9 + $0x1e8] sm:$0xff]
    %v3639 = vld [vmem:[#allocation9 + $0x1f0] sm:$0xff]
    %v3640 = vld [vmem:[#allocation9 + $0x1f8] sm:$0xff]
    %v3641 = vld [vmem:[#allocation9 + $0x200] sm:$0xff]
    %v3642 = vld [vmem:[#allocation9 + $0x208] sm:$0xff]
    %v3643 = vld [vmem:[#allocation9 + $0x210] sm:$0xff]
    %v3644 = vld [vmem:[#allocation9 + $0x218] sm:$0xff]
    %v3645 = vld [vmem:[#allocation9 + $0x220] sm:$0xff]
    %v3646 = vld [vmem:[#allocation9 + $0x228] sm:$0xff]
    %v3647 = vld [vmem:[#allocation9 + $0x230] sm:$0xff]
    %v3648 = vld [vmem:[#allocation9 + $0x238] sm:$0xff]
    %v3649 = vld [vmem:[#allocation9 + $0x240] sm:$0xff]
    %v3650 = vld [vmem:[#allocation9 + $0x248] sm:$0xff]
    %v3651 = vld [vmem:[#allocation9 + $0x250] sm:$0xff]
    %v3652 = vld [vmem:[#allocation9 + $0x258] sm:$0xff]
    %v3653 = vld [vmem:[#allocation9 + $0x260] sm:$0xff]
    %v3654 = vld [vmem:[#allocation9 + $0x268] sm:$0xff]
    %v3655 = vld [vmem:[#allocation9 + $0x270] sm:$0xff]
    %v3656 = vld [vmem:[#allocation9 + $0x278] sm:$0xff]
    %v3657 = vld [vmem:[#allocation9 + $0x280] sm:$0xff]
    %v3658 = vld [vmem:[#allocation9 + $0x288] sm:$0xff]
    %v3659 = vld [vmem:[#allocation9 + $0x290] sm:$0xff]
    %v3660 = vld [vmem:[#allocation9 + $0x298] sm:$0xff]
    %v3661 = vld [vmem:[#allocation9 + $0x2a0] sm:$0xff]
    %v3662 = vld [vmem:[#allocation9 + $0x2a8] sm:$0xff]
    %v3663 = vld [vmem:[#allocation9 + $0x2b0] sm:$0xff]
    %v3664 = vld [vmem:[#allocation9 + $0x2b8] sm:$0xff]
    %v3665 = vld [vmem:[#allocation9 + $0x2c0] sm:$0xff]
    %v3666 = vld [vmem:[#allocation9 + $0x2c8] sm:$0xff]
    %v3667 = vld [vmem:[#allocation9 + $0x2d0] sm:$0xff]
    %v3668 = vld [vmem:[#allocation9 + $0x2d8] sm:$0xff]
    %v3669 = vld [vmem:[#allocation9 + $0x2e0] sm:$0xff]
    %v3670 = vld [vmem:[#allocation9 + $0x2e8] sm:$0xff]
    %v3671 = vld [vmem:[#allocation9 + $0x2f0] sm:$0xff]
    %v3672 = vld [vmem:[#allocation9 + $0x2f8] sm:$0xff]
    %v3673 = vld [vmem:[#allocation9 + $0x300] sm:$0xff]
    %v3674 = vld [vmem:[#allocation9 + $0x308] sm:$0xff]
    %v3675 = vld [vmem:[#allocation9 + $0x310] sm:$0xff]
    %v3676 = vld [vmem:[#allocation9 + $0x318] sm:$0xff]
    %v3677 = vld [vmem:[#allocation9 + $0x320] sm:$0xff]
    %v3678 = vld [vmem:[#allocation9 + $0x328] sm:$0xff]
    %v3679 = vld [vmem:[#allocation9 + $0x330] sm:$0xff]
    %v3680 = vld [vmem:[#allocation9 + $0x338] sm:$0xff]
    %v3681 = vld [vmem:[#allocation9 + $0x340] sm:$0xff]
    %v3682 = vld [vmem:[#allocation9 + $0x348] sm:$0xff]
    %v3683 = vld [vmem:[#allocation9 + $0x350] sm:$0xff]
    %v3684 = vld [vmem:[#allocation9 + $0x358] sm:$0xff]
    %v3685 = vld [vmem:[#allocation9 + $0x360] sm:$0xff]
    %v3686 = vld [vmem:[#allocation9 + $0x368] sm:$0xff]
    %v3687 = vld [vmem:[#allocation9 + $0x370] sm:$0xff]
    %v3688 = vld [vmem:[#allocation9 + $0x378] sm:$0xff]
    %v3689 = vld [vmem:[#allocation9 + $0x380] sm:$0xff]
    %v3690 = vld [vmem:[#allocation9 + $0x388] sm:$0xff]
    %v3691 = vld [vmem:[#allocation9 + $0x390] sm:$0xff]
    %v3692 = vld [vmem:[#allocation9 + $0x398] sm:$0xff]
    %v3693 = vld [vmem:[#allocation9 + $0x3a0] sm:$0xff]
    %v3694 = vld [vmem:[#allocation9 + $0x3a8] sm:$0xff]
    %v3695 = vld [vmem:[#allocation9 + $0x3b0] sm:$0xff]
    %v3696 = vld [vmem:[#allocation9 + $0x3b8] sm:$0xff]
    %v3697 = vld [vmem:[#allocation9 + $0x3c0] sm:$0xff]
    %v3698 = vld [vmem:[#allocation9 + $0x3c8] sm:$0xff]
    %v3699 = vld [vmem:[#allocation9 + $0x3d0] sm:$0xff]
    %v3700 = vld [vmem:[#allocation9 + $0x3d8] sm:$0xff]
    %v3701 = vld [vmem:[#allocation9 + $0x3e0] sm:$0xff]
    %v3702 = vld [vmem:[#allocation9 + $0x3e8] sm:$0xff]
    %v3703 = vld [vmem:[#allocation9 + $0x3f0] sm:$0xff]
    %v3704 = vld [vmem:[#allocation9 + $0x3f8] sm:$0xff]
    %v3705 = vld [vmem:[#allocation9 + $0x400] sm:$0xff]
    %v3706 = vld [vmem:[#allocation9 + $0x408] sm:$0xff]
    %v3707 = vld [vmem:[#allocation9 + $0x410] sm:$0xff]
    %v3708 = vld [vmem:[#allocation9 + $0x418] sm:$0xff]
    %v3709 = vld [vmem:[#allocation9 + $0x420] sm:$0xff]
    %v3710 = vld [vmem:[#allocation9 + $0x428] sm:$0xff]
    %v3711 = vld [vmem:[#allocation9 + $0x430] sm:$0xff]
    %v3712 = vld [vmem:[#allocation9 + $0x438] sm:$0xff]
    %v3713 = vld [vmem:[#allocation9 + $0x440] sm:$0xff]
    %v3714 = vld [vmem:[#allocation9 + $0x448] sm:$0xff]
    %v3715 = vld [vmem:[#allocation9 + $0x450] sm:$0xff]
    %v3716 = vld [vmem:[#allocation9 + $0x458] sm:$0xff]
    %v3717 = vld [vmem:[#allocation9 + $0x460] sm:$0xff]
    %v3718 = vld [vmem:[#allocation9 + $0x468] sm:$0xff]
    %v3719 = vld [vmem:[#allocation9 + $0x470] sm:$0xff]
    %v3720 = vld [vmem:[#allocation9 + $0x478] sm:$0xff]
    %v3721 = vld [vmem:[#allocation9 + $0x480] sm:$0xff]
    %v3722 = vld [vmem:[#allocation9 + $0x488] sm:$0xff]
    %v3723 = vld [vmem:[#allocation9 + $0x490] sm:$0xff]
    %v3724 = vld [vmem:[#allocation9 + $0x498] sm:$0xff]
    %v3725 = vld [vmem:[#allocation9 + $0x4a0] sm:$0xff]
    %v3726 = vld [vmem:[#allocation9 + $0x4a8] sm:$0xff]
    %v3727 = vld [vmem:[#allocation9 + $0x4b0] sm:$0xff]
    %v3728 = vld [vmem:[#allocation9 + $0x4b8] sm:$0xff]
    %v3729 = vld [vmem:[#allocation9 + $0x4c0] sm:$0xff]
    %v3730 = vld [vmem:[#allocation9 + $0x4c8] sm:$0xff]
    %v3731 = vld [vmem:[#allocation9 + $0x4d0] sm:$0xff]
    %v3732 = vld [vmem:[#allocation9 + $0x4d8] sm:$0xff]
    %v3733 = vld [vmem:[#allocation9 + $0x4e0] sm:$0xff]
    %v3734 = vld [vmem:[#allocation9 + $0x4e8] sm:$0xff]
    %v3735 = vld [vmem:[#allocation9 + $0x4f0] sm:$0xff]
    %v3736 = vld [vmem:[#allocation9 + $0x4f8] sm:$0xff]
    %v3737 = vld [vmem:[#allocation9 + $0x500] sm:$0xff]
    %v3738 = vld [vmem:[#allocation9 + $0x508] sm:$0xff]
    %v3739 = vld [vmem:[#allocation9 + $0x510] sm:$0xff]
    %v3740 = vld [vmem:[#allocation9 + $0x518] sm:$0xff]
    %v3741 = vld [vmem:[#allocation9 + $0x520] sm:$0xff]
    %v3742 = vld [vmem:[#allocation9 + $0x528] sm:$0xff]
    %v3743 = vld [vmem:[#allocation9 + $0x530] sm:$0xff]
    %v3744 = vld [vmem:[#allocation9 + $0x538] sm:$0xff]
    %v3745 = vld [vmem:[#allocation9 + $0x540] sm:$0xff]
    %v3746 = vld [vmem:[#allocation9 + $0x548] sm:$0xff]
    %v3747 = vld [vmem:[#allocation9 + $0x550] sm:$0xff]
    %v3748 = vld [vmem:[#allocation9 + $0x558] sm:$0xff]
    %v3749 = vld [vmem:[#allocation9 + $0x560] sm:$0xff]
    %v3750 = vld [vmem:[#allocation9 + $0x568] sm:$0xff]
    %v3751 = vld [vmem:[#allocation9 + $0x570] sm:$0xff]
    %v3752 = vld [vmem:[#allocation9 + $0x578] sm:$0xff]
    %v3753 = vld [vmem:[#allocation9 + $0x580] sm:$0xff]
    %v3754 = vld [vmem:[#allocation9 + $0x588] sm:$0xff]
    %v3755 = vld [vmem:[#allocation9 + $0x590] sm:$0xff]
    %v3756 = vld [vmem:[#allocation9 + $0x598] sm:$0xff]
    %v3757 = vld [vmem:[#allocation9 + $0x5a0] sm:$0xff]
    %v3758 = vld [vmem:[#allocation9 + $0x5a8] sm:$0xff]
    %v3759 = vld [vmem:[#allocation9 + $0x5b0] sm:$0xff]
    %v3760 = vld [vmem:[#allocation9 + $0x5b8] sm:$0xff]
    %v3761 = vld [vmem:[#allocation9 + $0x5c0] sm:$0xff]
    %v3762 = vld [vmem:[#allocation9 + $0x5c8] sm:$0xff]
    %v3763 = vld [vmem:[#allocation9 + $0x5d0] sm:$0xff]
    %v3764 = vld [vmem:[#allocation9 + $0x5d8] sm:$0xff]
    %v3765 = vld [vmem:[#allocation9 + $0x5e0] sm:$0xff]
    %v3766 = vld [vmem:[#allocation9 + $0x5e8] sm:$0xff]
    %v3767 = vld [vmem:[#allocation9 + $0x5f0] sm:$0xff]
    %v3768 = vld [vmem:[#allocation9 + $0x5f8] sm:$0xff]
    %v3769 = vld [vmem:[#allocation10] sm:$0xf]
    %v3771 = vlaneseq
    %v3772 = vshrl.u32 %v3771, 7
    %v3773 = vsub.s32 0, %v3772
    %v3774 = vrot.slane %v3769, %v3773
    %v3775 = vlaneseq
    %v3776 = vshrl.u32 %v3775, 7
    %v3777 = vsub.s32 1, %v3776
    %v3778 = vrot.slane %v3769, %v3777
    %v3779 = vlaneseq
    %v3780 = vshrl.u32 %v3779, 7
    %v3781 = vsub.s32 2, %v3780
    %v3782 = vrot.slane %v3769, %v3781
    %v3783 = vlaneseq
    %v3784 = vshrl.u32 %v3783, 7
    %v3785 = vsub.s32 3, %v3784
    %v3786 = vrot.slane %v3769, %v3785
    %v3983 = vunpack.c.l.b16 %v3577
    %v3984 = vunpack.c.h.b16 %v3577
    %v3985 = vunpack.c.l.b16 %v3578
    %v3986 = vunpack.c.h.b16 %v3578
    %v3987 = vunpack.c.l.b16 %v3579
    %v3988 = vunpack.c.h.b16 %v3579
    %v3989 = vunpack.c.l.b16 %v3580
    %v3990 = vunpack.c.h.b16 %v3580
    %v3991 = vunpack.c.l.b16 %v3581
    %v3992 = vunpack.c.h.b16 %v3581
    %v3993 = vunpack.c.l.b16 %v3582
    %v3994 = vunpack.c.h.b16 %v3582
    %v3995 = vunpack.c.l.b16 %v3583
    %v3996 = vunpack.c.h.b16 %v3583
    %v3997 = vunpack.c.l.b16 %v3584
    %v3998 = vunpack.c.h.b16 %v3584
    %v3999 = vunpack.c.l.b16 %v3585
    %v4000 = vunpack.c.h.b16 %v3585
    %v4001 = vunpack.c.l.b16 %v3586
    %v4002 = vunpack.c.h.b16 %v3586
    %v4003 = vunpack.c.l.b16 %v3587
    %v4004 = vunpack.c.h.b16 %v3587
    %v4005 = vunpack.c.l.b16 %v3588
    %v4006 = vunpack.c.h.b16 %v3588
    %v4007 = vunpack.c.l.b16 %v3589
    %v4008 = vunpack.c.h.b16 %v3589
    %v4009 = vunpack.c.l.b16 %v3590
    %v4010 = vunpack.c.h.b16 %v3590
    %v4011 = vunpack.c.l.b16 %v3591
    %v4012 = vunpack.c.h.b16 %v3591
    %v4013 = vunpack.c.l.b16 %v3592
    %v4014 = vunpack.c.h.b16 %v3592
    %v4015 = vunpack.c.l.b16 %v3593
    %v4016 = vunpack.c.h.b16 %v3593
    %v4017 = vunpack.c.l.b16 %v3594
    %v4018 = vunpack.c.h.b16 %v3594
    %v4019 = vunpack.c.l.b16 %v3595
    %v4020 = vunpack.c.h.b16 %v3595
    %v4021 = vunpack.c.l.b16 %v3596
    %v4022 = vunpack.c.h.b16 %v3596
    %v4023 = vunpack.c.l.b16 %v3597
    %v4024 = vunpack.c.h.b16 %v3597
    %v4025 = vunpack.c.l.b16 %v3598
    %v4026 = vunpack.c.h.b16 %v3598
    %v4027 = vunpack.c.l.b16 %v3599
    %v4028 = vunpack.c.h.b16 %v3599
    %v4029 = vunpack.c.l.b16 %v3600
    %v4030 = vunpack.c.h.b16 %v3600
    %v4031 = vunpack.c.l.b16 %v3601
    %v4032 = vunpack.c.h.b16 %v3601
    %v4033 = vunpack.c.l.b16 %v3602
    %v4034 = vunpack.c.h.b16 %v3602
    %v4035 = vunpack.c.l.b16 %v3603
    %v4036 = vunpack.c.h.b16 %v3603
    %v4037 = vunpack.c.l.b16 %v3604
    %v4038 = vunpack.c.h.b16 %v3604
    %v4039 = vunpack.c.l.b16 %v3605
    %v4040 = vunpack.c.h.b16 %v3605
    %v4041 = vunpack.c.l.b16 %v3606
    %v4042 = vunpack.c.h.b16 %v3606
    %v4043 = vunpack.c.l.b16 %v3607
    %v4044 = vunpack.c.h.b16 %v3607
    %v4045 = vunpack.c.l.b16 %v3608
    %v4046 = vunpack.c.h.b16 %v3608
    %v4047 = vunpack.c.l.b16 %v3609
    %v4048 = vunpack.c.h.b16 %v3609
    %v4049 = vunpack.c.l.b16 %v3610
    %v4050 = vunpack.c.h.b16 %v3610
    %v4051 = vunpack.c.l.b16 %v3611
    %v4052 = vunpack.c.h.b16 %v3611
    %v4053 = vunpack.c.l.b16 %v3612
    %v4054 = vunpack.c.h.b16 %v3612
    %v4055 = vunpack.c.l.b16 %v3613
    %v4056 = vunpack.c.h.b16 %v3613
    %v4057 = vunpack.c.l.b16 %v3614
    %v4058 = vunpack.c.h.b16 %v3614
    %v4059 = vunpack.c.l.b16 %v3615
    %v4060 = vunpack.c.h.b16 %v3615
    %v4061 = vunpack.c.l.b16 %v3616
    %v4062 = vunpack.c.h.b16 %v3616
    %v4063 = vunpack.c.l.b16 %v3617
    %v4064 = vunpack.c.h.b16 %v3617
    %v4065 = vunpack.c.l.b16 %v3618
    %v4066 = vunpack.c.h.b16 %v3618
    %v4067 = vunpack.c.l.b16 %v3619
    %v4068 = vunpack.c.h.b16 %v3619
    %v4069 = vunpack.c.l.b16 %v3620
    %v4070 = vunpack.c.h.b16 %v3620
    %v4071 = vunpack.c.l.b16 %v3621
    %v4072 = vunpack.c.h.b16 %v3621
    %v4073 = vunpack.c.l.b16 %v3622
    %v4074 = vunpack.c.h.b16 %v3622
    %v4075 = vunpack.c.l.b16 %v3623
    %v4076 = vunpack.c.h.b16 %v3623
    %v4077 = vunpack.c.l.b16 %v3624
    %v4078 = vunpack.c.h.b16 %v3624
    %v4079 = vunpack.c.l.b16 %v3625
    %v4080 = vunpack.c.h.b16 %v3625
    %v4081 = vunpack.c.l.b16 %v3626
    %v4082 = vunpack.c.h.b16 %v3626
    %v4083 = vunpack.c.l.b16 %v3627
    %v4084 = vunpack.c.h.b16 %v3627
    %v4085 = vunpack.c.l.b16 %v3628
    %v4086 = vunpack.c.h.b16 %v3628
    %v4087 = vunpack.c.l.b16 %v3629
    %v4088 = vunpack.c.h.b16 %v3629
    %v4089 = vunpack.c.l.b16 %v3630
    %v4090 = vunpack.c.h.b16 %v3630
    %v4091 = vunpack.c.l.b16 %v3631
    %v4092 = vunpack.c.h.b16 %v3631
    %v4093 = vunpack.c.l.b16 %v3632
    %v4094 = vunpack.c.h.b16 %v3632
    %v4095 = vunpack.c.l.b16 %v3633
    %v4096 = vunpack.c.h.b16 %v3633
    %v4097 = vunpack.c.l.b16 %v3634
    %v4098 = vunpack.c.h.b16 %v3634
    %v4099 = vunpack.c.l.b16 %v3635
    %v4100 = vunpack.c.h.b16 %v3635
    %v4101 = vunpack.c.l.b16 %v3636
    %v4102 = vunpack.c.h.b16 %v3636
    %v4103 = vunpack.c.l.b16 %v3637
    %v4104 = vunpack.c.h.b16 %v3637
    %v4105 = vunpack.c.l.b16 %v3638
    %v4106 = vunpack.c.h.b16 %v3638
    %v4107 = vunpack.c.l.b16 %v3639
    %v4108 = vunpack.c.h.b16 %v3639
    %v4109 = vunpack.c.l.b16 %v3640
    %v4110 = vunpack.c.h.b16 %v3640
    %v4111 = vunpack.c.l.b16 %v3641
    %v4112 = vunpack.c.h.b16 %v3641
    %v4113 = vunpack.c.l.b16 %v3642
    %v4114 = vunpack.c.h.b16 %v3642
    %v4115 = vunpack.c.l.b16 %v3643
    %v4116 = vunpack.c.h.b16 %v3643
    %v4117 = vunpack.c.l.b16 %v3644
    %v4118 = vunpack.c.h.b16 %v3644
    %v4119 = vunpack.c.l.b16 %v3645
    %v4120 = vunpack.c.h.b16 %v3645
    %v4121 = vunpack.c.l.b16 %v3646
    %v4122 = vunpack.c.h.b16 %v3646
    %v4123 = vunpack.c.l.b16 %v3647
    %v4124 = vunpack.c.h.b16 %v3647
    %v4125 = vunpack.c.l.b16 %v3648
    %v4126 = vunpack.c.h.b16 %v3648
    %v4127 = vunpack.c.l.b16 %v3649
    %v4128 = vunpack.c.h.b16 %v3649
    %v4129 = vunpack.c.l.b16 %v3650
    %v4130 = vunpack.c.h.b16 %v3650
    %v4131 = vunpack.c.l.b16 %v3651
    %v4132 = vunpack.c.h.b16 %v3651
    %v4133 = vunpack.c.l.b16 %v3652
    %v4134 = vunpack.c.h.b16 %v3652
    %v4135 = vunpack.c.l.b16 %v3653
    %v4136 = vunpack.c.h.b16 %v3653
    %v4137 = vunpack.c.l.b16 %v3654
    %v4138 = vunpack.c.h.b16 %v3654
    %v4139 = vunpack.c.l.b16 %v3655
    %v4140 = vunpack.c.h.b16 %v3655
    %v4141 = vunpack.c.l.b16 %v3656
    %v4142 = vunpack.c.h.b16 %v3656
    %v4143 = vunpack.c.l.b16 %v3657
    %v4144 = vunpack.c.h.b16 %v3657
    %v4145 = vunpack.c.l.b16 %v3658
    %v4146 = vunpack.c.h.b16 %v3658
    %v4147 = vunpack.c.l.b16 %v3659
    %v4148 = vunpack.c.h.b16 %v3659
    %v4149 = vunpack.c.l.b16 %v3660
    %v4150 = vunpack.c.h.b16 %v3660
    %v4151 = vunpack.c.l.b16 %v3661
    %v4152 = vunpack.c.h.b16 %v3661
    %v4153 = vunpack.c.l.b16 %v3662
    %v4154 = vunpack.c.h.b16 %v3662
    %v4155 = vunpack.c.l.b16 %v3663
    %v4156 = vunpack.c.h.b16 %v3663
    %v4157 = vunpack.c.l.b16 %v3664
    %v4158 = vunpack.c.h.b16 %v3664
    %v4159 = vunpack.c.l.b16 %v3665
    %v4160 = vunpack.c.h.b16 %v3665
    %v4161 = vunpack.c.l.b16 %v3666
    %v4162 = vunpack.c.h.b16 %v3666
    %v4163 = vunpack.c.l.b16 %v3667
    %v4164 = vunpack.c.h.b16 %v3667
    %v4165 = vunpack.c.l.b16 %v3668
    %v4166 = vunpack.c.h.b16 %v3668
    %v4167 = vunpack.c.l.b16 %v3669
    %v4168 = vunpack.c.h.b16 %v3669
    %v4169 = vunpack.c.l.b16 %v3670
    %v4170 = vunpack.c.h.b16 %v3670
    %v4171 = vunpack.c.l.b16 %v3671
    %v4172 = vunpack.c.h.b16 %v3671
    %v4173 = vunpack.c.l.b16 %v3672
    %v4174 = vunpack.c.h.b16 %v3672
    %v4175 = vunpack.c.l.b16 %v3673
    %v4176 = vunpack.c.h.b16 %v3673
    %v4177 = vunpack.c.l.b16 %v3674
    %v4178 = vunpack.c.h.b16 %v3674
    %v4179 = vunpack.c.l.b16 %v3675
    %v4180 = vunpack.c.h.b16 %v3675
    %v4181 = vunpack.c.l.b16 %v3676
    %v4182 = vunpack.c.h.b16 %v3676
    %v4183 = vunpack.c.l.b16 %v3677
    %v4184 = vunpack.c.h.b16 %v3677
    %v4185 = vunpack.c.l.b16 %v3678
    %v4186 = vunpack.c.h.b16 %v3678
    %v4187 = vunpack.c.l.b16 %v3679
    %v4188 = vunpack.c.h.b16 %v3679
    %v4189 = vunpack.c.l.b16 %v3680
    %v4190 = vunpack.c.h.b16 %v3680
    %v4191 = vunpack.c.l.b16 %v3681
    %v4192 = vunpack.c.h.b16 %v3681
    %v4193 = vunpack.c.l.b16 %v3682
    %v4194 = vunpack.c.h.b16 %v3682
    %v4195 = vunpack.c.l.b16 %v3683
    %v4196 = vunpack.c.h.b16 %v3683
    %v4197 = vunpack.c.l.b16 %v3684
    %v4198 = vunpack.c.h.b16 %v3684
    %v4199 = vunpack.c.l.b16 %v3685
    %v4200 = vunpack.c.h.b16 %v3685
    %v4201 = vunpack.c.l.b16 %v3686
    %v4202 = vunpack.c.h.b16 %v3686
    %v4203 = vunpack.c.l.b16 %v3687
    %v4204 = vunpack.c.h.b16 %v3687
    %v4205 = vunpack.c.l.b16 %v3688
    %v4206 = vunpack.c.h.b16 %v3688
    %v4207 = vunpack.c.l.b16 %v3689
    %v4208 = vunpack.c.h.b16 %v3689
    %v4209 = vunpack.c.l.b16 %v3690
    %v4210 = vunpack.c.h.b16 %v3690
    %v4211 = vunpack.c.l.b16 %v3691
    %v4212 = vunpack.c.h.b16 %v3691
    %v4213 = vunpack.c.l.b16 %v3692
    %v4214 = vunpack.c.h.b16 %v3692
    %v4215 = vunpack.c.l.b16 %v3693
    %v4216 = vunpack.c.h.b16 %v3693
    %v4217 = vunpack.c.l.b16 %v3694
    %v4218 = vunpack.c.h.b16 %v3694
    %v4219 = vunpack.c.l.b16 %v3695
    %v4220 = vunpack.c.h.b16 %v3695
    %v4221 = vunpack.c.l.b16 %v3696
    %v4222 = vunpack.c.h.b16 %v3696
    %v4223 = vunpack.c.l.b16 %v3697
    %v4224 = vunpack.c.h.b16 %v3697
    %v4225 = vunpack.c.l.b16 %v3698
    %v4226 = vunpack.c.h.b16 %v3698
    %v4227 = vunpack.c.l.b16 %v3699
    %v4228 = vunpack.c.h.b16 %v3699
    %v4229 = vunpack.c.l.b16 %v3700
    %v4230 = vunpack.c.h.b16 %v3700
    %v4231 = vunpack.c.l.b16 %v3701
    %v4232 = vunpack.c.h.b16 %v3701
    %v4233 = vunpack.c.l.b16 %v3702
    %v4234 = vunpack.c.h.b16 %v3702
    %v4235 = vunpack.c.l.b16 %v3703
    %v4236 = vunpack.c.h.b16 %v3703
    %v4237 = vunpack.c.l.b16 %v3704
    %v4238 = vunpack.c.h.b16 %v3704
    %v4239 = vunpack.c.l.b16 %v3705
    %v4240 = vunpack.c.h.b16 %v3705
    %v4241 = vunpack.c.l.b16 %v3706
    %v4242 = vunpack.c.h.b16 %v3706
    %v4243 = vunpack.c.l.b16 %v3707
    %v4244 = vunpack.c.h.b16 %v3707
    %v4245 = vunpack.c.l.b16 %v3708
    %v4246 = vunpack.c.h.b16 %v3708
    %v4247 = vunpack.c.l.b16 %v3709
    %v4248 = vunpack.c.h.b16 %v3709
    %v4249 = vunpack.c.l.b16 %v3710
    %v4250 = vunpack.c.h.b16 %v3710
    %v4251 = vunpack.c.l.b16 %v3711
    %v4252 = vunpack.c.h.b16 %v3711
    %v4253 = vunpack.c.l.b16 %v3712
    %v4254 = vunpack.c.h.b16 %v3712
    %v4255 = vunpack.c.l.b16 %v3713
    %v4256 = vunpack.c.h.b16 %v3713
    %v4257 = vunpack.c.l.b16 %v3714
    %v4258 = vunpack.c.h.b16 %v3714
    %v4259 = vunpack.c.l.b16 %v3715
    %v4260 = vunpack.c.h.b16 %v3715
    %v4261 = vunpack.c.l.b16 %v3716
    %v4262 = vunpack.c.h.b16 %v3716
    %v4263 = vunpack.c.l.b16 %v3717
    %v4264 = vunpack.c.h.b16 %v3717
    %v4265 = vunpack.c.l.b16 %v3718
    %v4266 = vunpack.c.h.b16 %v3718
    %v4267 = vunpack.c.l.b16 %v3719
    %v4268 = vunpack.c.h.b16 %v3719
    %v4269 = vunpack.c.l.b16 %v3720
    %v4270 = vunpack.c.h.b16 %v3720
    %v4271 = vunpack.c.l.b16 %v3721
    %v4272 = vunpack.c.h.b16 %v3721
    %v4273 = vunpack.c.l.b16 %v3722
    %v4274 = vunpack.c.h.b16 %v3722
    %v4275 = vunpack.c.l.b16 %v3723
    %v4276 = vunpack.c.h.b16 %v3723
    %v4277 = vunpack.c.l.b16 %v3724
    %v4278 = vunpack.c.h.b16 %v3724
    %v4279 = vunpack.c.l.b16 %v3725
    %v4280 = vunpack.c.h.b16 %v3725
    %v4281 = vunpack.c.l.b16 %v3726
    %v4282 = vunpack.c.h.b16 %v3726
    %v4283 = vunpack.c.l.b16 %v3727
    %v4284 = vunpack.c.h.b16 %v3727
    %v4285 = vunpack.c.l.b16 %v3728
    %v4286 = vunpack.c.h.b16 %v3728
    %v4287 = vunpack.c.l.b16 %v3729
    %v4288 = vunpack.c.h.b16 %v3729
    %v4289 = vunpack.c.l.b16 %v3730
    %v4290 = vunpack.c.h.b16 %v3730
    %v4291 = vunpack.c.l.b16 %v3731
    %v4292 = vunpack.c.h.b16 %v3731
    %v4293 = vunpack.c.l.b16 %v3732
    %v4294 = vunpack.c.h.b16 %v3732
    %v4295 = vunpack.c.l.b16 %v3733
    %v4296 = vunpack.c.h.b16 %v3733
    %v4297 = vunpack.c.l.b16 %v3734
    %v4298 = vunpack.c.h.b16 %v3734
    %v4299 = vunpack.c.l.b16 %v3735
    %v4300 = vunpack.c.h.b16 %v3735
    %v4301 = vunpack.c.l.b16 %v3736
    %v4302 = vunpack.c.h.b16 %v3736
    %v4303 = vunpack.c.l.b16 %v3737
    %v4304 = vunpack.c.h.b16 %v3737
    %v4305 = vunpack.c.l.b16 %v3738
    %v4306 = vunpack.c.h.b16 %v3738
    %v4307 = vunpack.c.l.b16 %v3739
    %v4308 = vunpack.c.h.b16 %v3739
    %v4309 = vunpack.c.l.b16 %v3740
    %v4310 = vunpack.c.h.b16 %v3740
    %v4311 = vunpack.c.l.b16 %v3741
    %v4312 = vunpack.c.h.b16 %v3741
    %v4313 = vunpack.c.l.b16 %v3742
    %v4314 = vunpack.c.h.b16 %v3742
    %v4315 = vunpack.c.l.b16 %v3743
    %v4316 = vunpack.c.h.b16 %v3743
    %v4317 = vunpack.c.l.b16 %v3744
    %v4318 = vunpack.c.h.b16 %v3744
    %v4319 = vunpack.c.l.b16 %v3745
    %v4320 = vunpack.c.h.b16 %v3745
    %v4321 = vunpack.c.l.b16 %v3746
    %v4322 = vunpack.c.h.b16 %v3746
    %v4323 = vunpack.c.l.b16 %v3747
    %v4324 = vunpack.c.h.b16 %v3747
    %v4325 = vunpack.c.l.b16 %v3748
    %v4326 = vunpack.c.h.b16 %v3748
    %v4327 = vunpack.c.l.b16 %v3749
    %v4328 = vunpack.c.h.b16 %v3749
    %v4329 = vunpack.c.l.b16 %v3750
    %v4330 = vunpack.c.h.b16 %v3750
    %v4331 = vunpack.c.l.b16 %v3751
    %v4332 = vunpack.c.h.b16 %v3751
    %v4333 = vunpack.c.l.b16 %v3752
    %v4334 = vunpack.c.h.b16 %v3752
    %v4335 = vunpack.c.l.b16 %v3753
    %v4336 = vunpack.c.h.b16 %v3753
    %v4337 = vunpack.c.l.b16 %v3754
    %v4338 = vunpack.c.h.b16 %v3754
    %v4339 = vunpack.c.l.b16 %v3755
    %v4340 = vunpack.c.h.b16 %v3755
    %v4341 = vunpack.c.l.b16 %v3756
    %v4342 = vunpack.c.h.b16 %v3756
    %v4343 = vunpack.c.l.b16 %v3757
    %v4344 = vunpack.c.h.b16 %v3757
    %v4345 = vunpack.c.l.b16 %v3758
    %v4346 = vunpack.c.h.b16 %v3758
    %v4347 = vunpack.c.l.b16 %v3759
    %v4348 = vunpack.c.h.b16 %v3759
    %v4349 = vunpack.c.l.b16 %v3760
    %v4350 = vunpack.c.h.b16 %v3760
    %v4351 = vunpack.c.l.b16 %v3761
    %v4352 = vunpack.c.h.b16 %v3761
    %v4353 = vunpack.c.l.b16 %v3762
    %v4354 = vunpack.c.h.b16 %v3762
    %v4355 = vunpack.c.l.b16 %v3763
    %v4356 = vunpack.c.h.b16 %v3763
    %v4357 = vunpack.c.l.b16 %v3764
    %v4358 = vunpack.c.h.b16 %v3764
    %v4359 = vunpack.c.l.b16 %v3765
    %v4360 = vunpack.c.h.b16 %v3765
    %v4361 = vunpack.c.l.b16 %v3766
    %v4362 = vunpack.c.h.b16 %v3766
    %v4363 = vunpack.c.l.b16 %v3767
    %v4364 = vunpack.c.h.b16 %v3767
    %v4365 = vunpack.c.l.b16 %v3768
    %v4366 = vunpack.c.h.b16 %v3768
    %v4367 = vpack.c.b16 %v3987, %v3983
    %v4368 = vpack.c.b16 %v3988, %v3984
    %v4369 = vpack.c.b16 %v3989, %v3985
    %v4370 = vpack.c.b16 %v3990, %v3986
    %v4371 = vpack.c.b16 %v3995, %v3991
    %v4372 = vpack.c.b16 %v3996, %v3992
    %v4373 = vpack.c.b16 %v3997, %v3993
    %v4374 = vpack.c.b16 %v3998, %v3994
    %v4375 = vpack.c.b16 %v4003, %v3999
    %v4376 = vpack.c.b16 %v4004, %v4000
    %v4377 = vpack.c.b16 %v4005, %v4001
    %v4378 = vpack.c.b16 %v4006, %v4002
    %v4379 = vpack.c.b16 %v4011, %v4007
    %v4380 = vpack.c.b16 %v4012, %v4008
    %v4381 = vpack.c.b16 %v4013, %v4009
    %v4382 = vpack.c.b16 %v4014, %v4010
    %v4383 = vpack.c.b16 %v4019, %v4015
    %v4384 = vpack.c.b16 %v4020, %v4016
    %v4385 = vpack.c.b16 %v4021, %v4017
    %v4386 = vpack.c.b16 %v4022, %v4018
    %v4387 = vpack.c.b16 %v4027, %v4023
    %v4388 = vpack.c.b16 %v4028, %v4024
    %v4389 = vpack.c.b16 %v4029, %v4025
    %v4390 = vpack.c.b16 %v4030, %v4026
    %v4391 = vpack.c.b16 %v4035, %v4031
    %v4392 = vpack.c.b16 %v4036, %v4032
    %v4393 = vpack.c.b16 %v4037, %v4033
    %v4394 = vpack.c.b16 %v4038, %v4034
    %v4395 = vpack.c.b16 %v4043, %v4039
    %v4396 = vpack.c.b16 %v4044, %v4040
    %v4397 = vpack.c.b16 %v4045, %v4041
    %v4398 = vpack.c.b16 %v4046, %v4042
    %v4399 = vpack.c.b16 %v4051, %v4047
    %v4400 = vpack.c.b16 %v4052, %v4048
    %v4401 = vpack.c.b16 %v4053, %v4049
    %v4402 = vpack.c.b16 %v4054, %v4050
    %v4403 = vpack.c.b16 %v4059, %v4055
    %v4404 = vpack.c.b16 %v4060, %v4056
    %v4405 = vpack.c.b16 %v4061, %v4057
    %v4406 = vpack.c.b16 %v4062, %v4058
    %v4407 = vpack.c.b16 %v4067, %v4063
    %v4408 = vpack.c.b16 %v4068, %v4064
    %v4409 = vpack.c.b16 %v4069, %v4065
    %v4410 = vpack.c.b16 %v4070, %v4066
    %v4411 = vpack.c.b16 %v4075, %v4071
    %v4412 = vpack.c.b16 %v4076, %v4072
    %v4413 = vpack.c.b16 %v4077, %v4073
    %v4414 = vpack.c.b16 %v4078, %v4074
    %v4415 = vpack.c.b16 %v4083, %v4079
    %v4416 = vpack.c.b16 %v4084, %v4080
    %v4417 = vpack.c.b16 %v4085, %v4081
    %v4418 = vpack.c.b16 %v4086, %v4082
    %v4419 = vpack.c.b16 %v4091, %v4087
    %v4420 = vpack.c.b16 %v4092, %v4088
    %v4421 = vpack.c.b16 %v4093, %v4089
    %v4422 = vpack.c.b16 %v4094, %v4090
    %v4423 = vpack.c.b16 %v4099, %v4095
    %v4424 = vpack.c.b16 %v4100, %v4096
    %v4425 = vpack.c.b16 %v4101, %v4097
    %v4426 = vpack.c.b16 %v4102, %v4098
    %v4427 = vpack.c.b16 %v4107, %v4103
    %v4428 = vpack.c.b16 %v4108, %v4104
    %v4429 = vpack.c.b16 %v4109, %v4105
    %v4430 = vpack.c.b16 %v4110, %v4106
    %v4431 = vpack.c.b16 %v4115, %v4111
    %v4432 = vpack.c.b16 %v4116, %v4112
    %v4433 = vpack.c.b16 %v4117, %v4113
    %v4434 = vpack.c.b16 %v4118, %v4114
    %v4435 = vpack.c.b16 %v4123, %v4119
    %v4436 = vpack.c.b16 %v4124, %v4120
    %v4437 = vpack.c.b16 %v4125, %v4121
    %v4438 = vpack.c.b16 %v4126, %v4122
    %v4439 = vpack.c.b16 %v4131, %v4127
    %v4440 = vpack.c.b16 %v4132, %v4128
    %v4441 = vpack.c.b16 %v4133, %v4129
    %v4442 = vpack.c.b16 %v4134, %v4130
    %v4443 = vpack.c.b16 %v4139, %v4135
    %v4444 = vpack.c.b16 %v4140, %v4136
    %v4445 = vpack.c.b16 %v4141, %v4137
    %v4446 = vpack.c.b16 %v4142, %v4138
    %v4447 = vpack.c.b16 %v4147, %v4143
    %v4448 = vpack.c.b16 %v4148, %v4144
    %v4449 = vpack.c.b16 %v4149, %v4145
    %v4450 = vpack.c.b16 %v4150, %v4146
    %v4451 = vpack.c.b16 %v4155, %v4151
    %v4452 = vpack.c.b16 %v4156, %v4152
    %v4453 = vpack.c.b16 %v4157, %v4153
    %v4454 = vpack.c.b16 %v4158, %v4154
    %v4455 = vpack.c.b16 %v4163, %v4159
    %v4456 = vpack.c.b16 %v4164, %v4160
    %v4457 = vpack.c.b16 %v4165, %v4161
    %v4458 = vpack.c.b16 %v4166, %v4162
    %v4459 = vpack.c.b16 %v4171, %v4167
    %v4460 = vpack.c.b16 %v4172, %v4168
    %v4461 = vpack.c.b16 %v4173, %v4169
    %v4462 = vpack.c.b16 %v4174, %v4170
    %v4463 = vpack.c.b16 %v4179, %v4175
    %v4464 = vpack.c.b16 %v4180, %v4176
    %v4465 = vpack.c.b16 %v4181, %v4177
    %v4466 = vpack.c.b16 %v4182, %v4178
    %v4467 = vpack.c.b16 %v4187, %v4183
    %v4468 = vpack.c.b16 %v4188, %v4184
    %v4469 = vpack.c.b16 %v4189, %v4185
    %v4470 = vpack.c.b16 %v4190, %v4186
    %v4471 = vpack.c.b16 %v4195, %v4191
    %v4472 = vpack.c.b16 %v4196, %v4192
    %v4473 = vpack.c.b16 %v4197, %v4193
    %v4474 = vpack.c.b16 %v4198, %v4194
    %v4475 = vpack.c.b16 %v4203, %v4199
    %v4476 = vpack.c.b16 %v4204, %v4200
    %v4477 = vpack.c.b16 %v4205, %v4201
    %v4478 = vpack.c.b16 %v4206, %v4202
    %v4479 = vpack.c.b16 %v4211, %v4207
    %v4480 = vpack.c.b16 %v4212, %v4208
    %v4481 = vpack.c.b16 %v4213, %v4209
    %v4482 = vpack.c.b16 %v4214, %v4210
    %v4483 = vpack.c.b16 %v4219, %v4215
    %v4484 = vpack.c.b16 %v4220, %v4216
    %v4485 = vpack.c.b16 %v4221, %v4217
    %v4486 = vpack.c.b16 %v4222, %v4218
    %v4487 = vpack.c.b16 %v4227, %v4223
    %v4488 = vpack.c.b16 %v4228, %v4224
    %v4489 = vpack.c.b16 %v4229, %v4225
    %v4490 = vpack.c.b16 %v4230, %v4226
    %v4491 = vpack.c.b16 %v4235, %v4231
    %v4492 = vpack.c.b16 %v4236, %v4232
    %v4493 = vpack.c.b16 %v4237, %v4233
    %v4494 = vpack.c.b16 %v4238, %v4234
    %v4495 = vpack.c.b16 %v4243, %v4239
    %v4496 = vpack.c.b16 %v4244, %v4240
    %v4497 = vpack.c.b16 %v4245, %v4241
    %v4498 = vpack.c.b16 %v4246, %v4242
    %v4499 = vpack.c.b16 %v4251, %v4247
    %v4500 = vpack.c.b16 %v4252, %v4248
    %v4501 = vpack.c.b16 %v4253, %v4249
    %v4502 = vpack.c.b16 %v4254, %v4250
    %v4503 = vpack.c.b16 %v4259, %v4255
    %v4504 = vpack.c.b16 %v4260, %v4256
    %v4505 = vpack.c.b16 %v4261, %v4257
    %v4506 = vpack.c.b16 %v4262, %v4258
    %v4507 = vpack.c.b16 %v4267, %v4263
    %v4508 = vpack.c.b16 %v4268, %v4264
    %v4509 = vpack.c.b16 %v4269, %v4265
    %v4510 = vpack.c.b16 %v4270, %v4266
    %v4511 = vpack.c.b16 %v4275, %v4271
    %v4512 = vpack.c.b16 %v4276, %v4272
    %v4513 = vpack.c.b16 %v4277, %v4273
    %v4514 = vpack.c.b16 %v4278, %v4274
    %v4515 = vpack.c.b16 %v4283, %v4279
    %v4516 = vpack.c.b16 %v4284, %v4280
    %v4517 = vpack.c.b16 %v4285, %v4281
    %v4518 = vpack.c.b16 %v4286, %v4282
    %v4519 = vpack.c.b16 %v4291, %v4287
    %v4520 = vpack.c.b16 %v4292, %v4288
    %v4521 = vpack.c.b16 %v4293, %v4289
    %v4522 = vpack.c.b16 %v4294, %v4290
    %v4523 = vpack.c.b16 %v4299, %v4295
    %v4524 = vpack.c.b16 %v4300, %v4296
    %v4525 = vpack.c.b16 %v4301, %v4297
    %v4526 = vpack.c.b16 %v4302, %v4298
    %v4527 = vpack.c.b16 %v4307, %v4303
    %v4528 = vpack.c.b16 %v4308, %v4304
    %v4529 = vpack.c.b16 %v4309, %v4305
    %v4530 = vpack.c.b16 %v4310, %v4306
    %v4531 = vpack.c.b16 %v4315, %v4311
    %v4532 = vpack.c.b16 %v4316, %v4312
    %v4533 = vpack.c.b16 %v4317, %v4313
    %v4534 = vpack.c.b16 %v4318, %v4314
    %v4535 = vpack.c.b16 %v4323, %v4319
    %v4536 = vpack.c.b16 %v4324, %v4320
    %v4537 = vpack.c.b16 %v4325, %v4321
    %v4538 = vpack.c.b16 %v4326, %v4322
    %v4539 = vpack.c.b16 %v4331, %v4327
    %v4540 = vpack.c.b16 %v4332, %v4328
    %v4541 = vpack.c.b16 %v4333, %v4329
    %v4542 = vpack.c.b16 %v4334, %v4330
    %v4543 = vpack.c.b16 %v4339, %v4335
    %v4544 = vpack.c.b16 %v4340, %v4336
    %v4545 = vpack.c.b16 %v4341, %v4337
    %v4546 = vpack.c.b16 %v4342, %v4338
    %v4547 = vpack.c.b16 %v4347, %v4343
    %v4548 = vpack.c.b16 %v4348, %v4344
    %v4549 = vpack.c.b16 %v4349, %v4345
    %v4550 = vpack.c.b16 %v4350, %v4346
    %v4551 = vpack.c.b16 %v4355, %v4351
    %v4552 = vpack.c.b16 %v4356, %v4352
    %v4553 = vpack.c.b16 %v4357, %v4353
    %v4554 = vpack.c.b16 %v4358, %v4354
    %v4555 = vpack.c.b16 %v4363, %v4359
    %v4556 = vpack.c.b16 %v4364, %v4360
    %v4557 = vpack.c.b16 %v4365, %v4361
    %v4558 = vpack.c.b16 %v4366, %v4362
    %4751 = vmatprep.subr.bf16.mxu0 %v4396
    %4752 = vmatpush1.bf16.msra.mxu0 %v4395
    %4753 = vmatprep.subr.bf16.mxu0 %v4392
    %4754 = vmatpush1.bf16.msra.mxu0 %v4391
    %4755 = vmatprep.subr.bf16.mxu0 %v4388
    %4756 = vmatpush1.bf16.msra.mxu0 %v4387
    %4757 = vmatprep.subr.bf16.mxu0 %v4384
    %4758 = vmatpush1.bf16.msra.mxu0 %v4383
    %4759 = vmatprep.subr.bf16.mxu0 %v4380
    %4760 = vmatpush1.bf16.msra.mxu0 %v4379
    %4761 = vmatprep.subr.bf16.mxu0 %v4376
    %4762 = vmatpush1.bf16.msra.mxu0 %v4375
    %4763 = vmatprep.subr.bf16.mxu0 %v4372
    %4764 = vmatpush1.bf16.msra.mxu0 %v4371
    %4765 = vmatprep.subr.bf16.mxu0 %v4368
    %4766 = vmatpush1.bf16.msra.mxu0 %v4367
    %4767 = vmatprep.subr.bf16.mxu0 %v4428
    %4768 = vmatpush2.bf16.msra.mxu0 %v4427
    %4769 = vmatprep.subr.bf16.mxu0 %v4424
    %4770 = vmatpush2.bf16.msra.mxu0 %v4423
    %4771 = vmatprep.subr.bf16.mxu0 %v4420
    %4772 = vmatpush2.bf16.msra.mxu0 %v4419
    %4773 = vmatprep.subr.bf16.mxu0 %v4416
    %4774 = vmatpush2.bf16.msra.mxu0 %v4415
    %4775 = vmatprep.subr.bf16.mxu0 %v4412
    %4776 = vmatpush2.bf16.msra.mxu0 %v4411
    %4777 = vmatprep.subr.bf16.mxu0 %v4408
    %4778 = vmatpush2.bf16.msra.mxu0 %v4407
    %4779 = vmatprep.subr.bf16.mxu0 %v4404
    %4780 = vmatpush2.bf16.msra.mxu0 %v4403
    %4781 = vmatprep.subr.bf16.mxu0 %v4400
    %4782 = vmatpush2.bf16.msra.mxu0 %v4399
    %4783 = vmatprep.mubr.bf16.mxu0 %v3572
    %4784 = vmatmul.mubr.bf16.gmra.mxu0 %v3571
    %v4785 = vpop.f32.mrf.mxu0
    %v4786 = vadd.f32 %v3774, %v4785
    %v4787 = vpop.f32.mrf.mxu0
    %v4788 = vadd.f32 %v3778, %v4787
    %v4789 = vpop.f32.mrf.mxu0
    %v4790 = vpop.f32.mrf.mxu0
    %4791 = vdwg.mxu0
    %4792 = vmatprep.subr.bf16.mxu0 %v4460
    %4793 = vmatpush1.bf16.msra.mxu0 %v4459
    %4794 = vmatprep.subr.bf16.mxu0 %v4456
    %4795 = vmatpush1.bf16.msra.mxu0 %v4455
    %4796 = vmatprep.subr.bf16.mxu0 %v4452
    %4797 = vmatpush1.bf16.msra.mxu0 %v4451
    %4798 = vmatprep.subr.bf16.mxu0 %v4448
    %4799 = vmatpush1.bf16.msra.mxu0 %v4447
    %4800 = vmatprep.subr.bf16.mxu0 %v4444
    %4801 = vmatpush1.bf16.msra.mxu0 %v4443
    %4802 = vmatprep.subr.bf16.mxu0 %v4440
    %4803 = vmatpush1.bf16.msra.mxu0 %v4439
    %4804 = vmatprep.subr.bf16.mxu0 %v4436
    %4805 = vmatpush1.bf16.msra.mxu0 %v4435
    %4806 = vmatprep.subr.bf16.mxu0 %v4432
    %4807 = vmatpush1.bf16.msra.mxu0 %v4431
    %4808 = vmatprep.subr.bf16.mxu0 %v4492
    %4809 = vmatpush2.bf16.msra.mxu0 %v4491
    %4810 = vmatprep.subr.bf16.mxu0 %v4488
    %4811 = vmatpush2.bf16.msra.mxu0 %v4487
    %4812 = vmatprep.subr.bf16.mxu0 %v4484
    %4813 = vmatpush2.bf16.msra.mxu0 %v4483
    %4814 = vmatprep.subr.bf16.mxu0 %v4480
    %4815 = vmatpush2.bf16.msra.mxu0 %v4479
    %4816 = vmatprep.subr.bf16.mxu0 %v4476
    %4817 = vmatpush2.bf16.msra.mxu0 %v4475
    %4818 = vmatprep.subr.bf16.mxu0 %v4472
    %4819 = vmatpush2.bf16.msra.mxu0 %v4471
    %4820 = vmatprep.subr.bf16.mxu0 %v4468
    %4821 = vmatpush2.bf16.msra.mxu0 %v4467
    %4822 = vmatprep.subr.bf16.mxu0 %v4464
    %4823 = vmatpush2.bf16.msra.mxu0 %v4463
    %4824 = vmatprep.mubr.bf16.mxu0 %v3574
    %4825 = vmatmul.mubr.bf16.gmra.mxu0 %v3573
    %v4826 = vpop.f32.mrf.mxu0
    %v4827 = vadd.f32 %v4786, %v4826
    %v4828 = vpop.f32.mrf.mxu0
    %v4829 = vadd.f32 %v4788, %v4828
    %v4830 = vpop.f32.mrf.mxu0
    %v4831 = vpop.f32.mrf.mxu0
    %4832 = vdwg.mxu0
    %4833 = vmatprep.subr.bf16.mxu0 %v4524
    %4834 = vmatpush1.bf16.msra.mxu0 %v4523
    %4835 = vmatprep.subr.bf16.mxu0 %v4520
    %4836 = vmatpush1.bf16.msra.mxu0 %v4519
    %4837 = vmatprep.subr.bf16.mxu0 %v4516
    %4838 = vmatpush1.bf16.msra.mxu0 %v4515
    %4839 = vmatprep.subr.bf16.mxu0 %v4512
    %4840 = vmatpush1.bf16.msra.mxu0 %v4511
    %4841 = vmatprep.subr.bf16.mxu0 %v4508
    %4842 = vmatpush1.bf16.msra.mxu0 %v4507
    %4843 = vmatprep.subr.bf16.mxu0 %v4504
    %4844 = vmatpush1.bf16.msra.mxu0 %v4503
    %4845 = vmatprep.subr.bf16.mxu0 %v4500
    %4846 = vmatpush1.bf16.msra.mxu0 %v4499
    %4847 = vmatprep.subr.bf16.mxu0 %v4496
    %4848 = vmatpush1.bf16.msra.mxu0 %v4495
    %4849 = vmatprep.subr.bf16.mxu0 %v4556
    %4850 = vmatpush2.bf16.msra.mxu0 %v4555
    %4851 = vmatprep.subr.bf16.mxu0 %v4552
    %4852 = vmatpush2.bf16.msra.mxu0 %v4551
    %4853 = vmatprep.subr.bf16.mxu0 %v4548
    %4854 = vmatpush2.bf16.msra.mxu0 %v4547
    %4855 = vmatprep.subr.bf16.mxu0 %v4544
    %4856 = vmatpush2.bf16.msra.mxu0 %v4543
    %4857 = vmatprep.subr.bf16.mxu0 %v4540
    %4858 = vmatpush2.bf16.msra.mxu0 %v4539
    %4859 = vmatprep.subr.bf16.mxu0 %v4536
    %4860 = vmatpush2.bf16.msra.mxu0 %v4535
    %4861 = vmatprep.subr.bf16.mxu0 %v4532
    %4862 = vmatpush2.bf16.msra.mxu0 %v4531
    %4863 = vmatprep.subr.bf16.mxu0 %v4528
    %4864 = vmatpush2.bf16.msra.mxu0 %v4527
    %4865 = vmatprep.mubr.bf16.mxu0 %v3576
    %4866 = vmatmul.mubr.bf16.gmra.mxu0 %v3575
    %v4867 = vpop.f32.mrf.mxu0
    %v4868 = vadd.f32 %v4827, %v4867
    %v4869 = vpop.f32.mrf.mxu0
    %v4870 = vadd.f32 %v4829, %v4869
    %v4871 = vpop.f32.mrf.mxu0
    %v4872 = vpop.f32.mrf.mxu0
    %4873 = vdwg.mxu0
    %4874 = vmatprep.subr.bf16.mxu0 %v4398
    %4875 = vmatpush1.bf16.msra.mxu0 %v4397
    %4876 = vmatprep.subr.bf16.mxu0 %v4394
    %4877 = vmatpush1.bf16.msra.mxu0 %v4393
    %4878 = vmatprep.subr.bf16.mxu0 %v4390
    %4879 = vmatpush1.bf16.msra.mxu0 %v4389
    %4880 = vmatprep.subr.bf16.mxu0 %v4386
    %4881 = vmatpush1.bf16.msra.mxu0 %v4385
    %4882 = vmatprep.subr.bf16.mxu0 %v4382
    %4883 = vmatpush1.bf16.msra.mxu0 %v4381
    %4884 = vmatprep.subr.bf16.mxu0 %v4378
    %4885 = vmatpush1.bf16.msra.mxu0 %v4377
    %4886 = vmatprep.subr.bf16.mxu0 %v4374
    %4887 = vmatpush1.bf16.msra.mxu0 %v4373
    %4888 = vmatprep.subr.bf16.mxu0 %v4370
    %4889 = vmatpush1.bf16.msra.mxu0 %v4369
    %4890 = vmatprep.subr.bf16.mxu0 %v4430
    %4891 = vmatpush2.bf16.msra.mxu0 %v4429
    %4892 = vmatprep.subr.bf16.mxu0 %v4426
    %4893 = vmatpush2.bf16.msra.mxu0 %v4425
    %4894 = vmatprep.subr.bf16.mxu0 %v4422
    %4895 = vmatpush2.bf16.msra.mxu0 %v4421
    %4896 = vmatprep.subr.bf16.mxu0 %v4418
    %4897 = vmatpush2.bf16.msra.mxu0 %v4417
    %4898 = vmatprep.subr.bf16.mxu0 %v4414
    %4899 = vmatpush2.bf16.msra.mxu0 %v4413
    %4900 = vmatprep.subr.bf16.mxu0 %v4410
    %4901 = vmatpush2.bf16.msra.mxu0 %v4409
    %4902 = vmatprep.subr.bf16.mxu0 %v4406
    %4903 = vmatpush2.bf16.msra.mxu0 %v4405
    %4904 = vmatprep.subr.bf16.mxu0 %v4402
    %4905 = vmatpush2.bf16.msra.mxu0 %v4401
    %4906 = vmatprep.mubr.bf16.mxu0 %v3572
    %4907 = vmatmul.mubr.bf16.gmra.mxu0 %v3571
    %v4908 = vpop.f32.mrf.mxu0
    %v4909 = vadd.f32 %v3782, %v4908
    %v4910 = vpop.f32.mrf.mxu0
    %v4911 = vadd.f32 %v3786, %v4910
    %v4912 = vpop.f32.mrf.mxu0
    %v4913 = vpop.f32.mrf.mxu0
    %4914 = vdwg.mxu0
    %4915 = vmatprep.subr.bf16.mxu0 %v4462
    %4916 = vmatpush1.bf16.msra.mxu0 %v4461
    %4917 = vmatprep.subr.bf16.mxu0 %v4458
    %4918 = vmatpush1.bf16.msra.mxu0 %v4457
    %4919 = vmatprep.subr.bf16.mxu0 %v4454
    %4920 = vmatpush1.bf16.msra.mxu0 %v4453
    %4921 = vmatprep.subr.bf16.mxu0 %v4450
    %4922 = vmatpush1.bf16.msra.mxu0 %v4449
    %4923 = vmatprep.subr.bf16.mxu0 %v4446
    %4924 = vmatpush1.bf16.msra.mxu0 %v4445
    %4925 = vmatprep.subr.bf16.mxu0 %v4442
    %4926 = vmatpush1.bf16.msra.mxu0 %v4441
    %4927 = vmatprep.subr.bf16.mxu0 %v4438
    %4928 = vmatpush1.bf16.msra.mxu0 %v4437
    %4929 = vmatprep.subr.bf16.mxu0 %v4434
    %4930 = vmatpush1.bf16.msra.mxu0 %v4433
    %4931 = vmatprep.subr.bf16.mxu0 %v4494
    %4932 = vmatpush2.bf16.msra.mxu0 %v4493
    %4933 = vmatprep.subr.bf16.mxu0 %v4490
    %4934 = vmatpush2.bf16.msra.mxu0 %v4489
    %4935 = vmatprep.subr.bf16.mxu0 %v4486
    %4936 = vmatpush2.bf16.msra.mxu0 %v4485
    %4937 = vmatprep.subr.bf16.mxu0 %v4482
    %4938 = vmatpush2.bf16.msra.mxu0 %v4481
    %4939 = vmatprep.subr.bf16.mxu0 %v4478
    %4940 = vmatpush2.bf16.msra.mxu0 %v4477
    %4941 = vmatprep.subr.bf16.mxu0 %v4474
    %4942 = vmatpush2.bf16.msra.mxu0 %v4473
    %4943 = vmatprep.subr.bf16.mxu0 %v4470
    %4944 = vmatpush2.bf16.msra.mxu0 %v4469
    %4945 = vmatprep.subr.bf16.mxu0 %v4466
    %4946 = vmatpush2.bf16.msra.mxu0 %v4465
    %4947 = vmatprep.mubr.bf16.mxu0 %v3574
    %4948 = vmatmul.mubr.bf16.gmra.mxu0 %v3573
    %v4949 = vpop.f32.mrf.mxu0
    %v4950 = vadd.f32 %v4909, %v4949
    %v4951 = vpop.f32.mrf.mxu0
    %v4952 = vadd.f32 %v4911, %v4951
    %v4953 = vpop.f32.mrf.mxu0
    %v4954 = vpop.f32.mrf.mxu0
    %4955 = vdwg.mxu0
    %4956 = vmatprep.subr.bf16.mxu0 %v4526
    %4957 = vmatpush1.bf16.msra.mxu0 %v4525
    %4958 = vmatprep.subr.bf16.mxu0 %v4522
    %4959 = vmatpush1.bf16.msra.mxu0 %v4521
    %4960 = vmatprep.subr.bf16.mxu0 %v4518
    %4961 = vmatpush1.bf16.msra.mxu0 %v4517
    %4962 = vmatprep.subr.bf16.mxu0 %v4514
    %4963 = vmatpush1.bf16.msra.mxu0 %v4513
    %4964 = vmatprep.subr.bf16.mxu0 %v4510
    %4965 = vmatpush1.bf16.msra.mxu0 %v4509
    %4966 = vmatprep.subr.bf16.mxu0 %v4506
    %4967 = vmatpush1.bf16.msra.mxu0 %v4505
    %4968 = vmatprep.subr.bf16.mxu0 %v4502
    %4969 = vmatpush1.bf16.msra.mxu0 %v4501
    %4970 = vmatprep.subr.bf16.mxu0 %v4498
    %4971 = vmatpush1.bf16.msra.mxu0 %v4497
    %4972 = vmatprep.subr.bf16.mxu0 %v4558
    %4973 = vmatpush2.bf16.msra.mxu0 %v4557
    %4974 = vmatprep.subr.bf16.mxu0 %v4554
    %4975 = vmatpush2.bf16.msra.mxu0 %v4553
    %4976 = vmatprep.subr.bf16.mxu0 %v4550
    %4977 = vmatpush2.bf16.msra.mxu0 %v4549
    %4978 = vmatprep.subr.bf16.mxu0 %v4546
    %4979 = vmatpush2.bf16.msra.mxu0 %v4545
    %4980 = vmatprep.subr.bf16.mxu0 %v4542
    %4981 = vmatpush2.bf16.msra.mxu0 %v4541
    %4982 = vmatprep.subr.bf16.mxu0 %v4538
    %4983 = vmatpush2.bf16.msra.mxu0 %v4537
    %4984 = vmatprep.subr.bf16.mxu0 %v4534
    %4985 = vmatpush2.bf16.msra.mxu0 %v4533
    %4986 = vmatprep.subr.bf16.mxu0 %v4530
    %4987 = vmatpush2.bf16.msra.mxu0 %v4529
    %4988 = vmatprep.mubr.bf16.mxu0 %v3576
    %4989 = vmatmul.mubr.bf16.gmra.mxu0 %v3575
    %v4990 = vpop.f32.mrf.mxu0
    %v4991 = vadd.f32 %v4950, %v4990
    %v4992 = vpop.f32.mrf.mxu0
    %v4993 = vadd.f32 %v4952, %v4992
    %v4994 = vpop.f32.mrf.mxu0
    %v4995 = vpop.f32.mrf.mxu0
    %4996 = vdwg.mxu0
    %4997 = vst [vmem:[%s7] sm:$0xff] %v4868
    %4998 = vst [vmem:[%s7 + $0x8] sm:$0xff] %v4870
    %4999 = vst [vmem:[%s7 + $0x10] sm:$0xff] %v4991
    %5000 = vst [vmem:[%s7 + $0x18] sm:$0xff] %v4993
    // Predicated region
    $region54: #{image_encoder_forward.1} parent=1 // pred_check
      _
    $region55: #{image_encoder_forward.1} parent=1 // pred_check_branch
      %5002 = sbr.rel (0) target = $region57
    $region56: #{image_encoder_forward.1} parent=1 // pred_region
      _
    $region57: #{image_encoder_forward.1} parent=1 // pred_fallthru
      _
    // Predicated region
    $region58: #{image_encoder_forward.1} parent=1 // pred_check
      _
    $region59: #{image_encoder_forward.1} parent=1 // pred_check_branch
      %5004 = sbr.rel (0) target = $region61
    $region60: #{image_encoder_forward.1} parent=1 // pred_region
      _
    $region61: #{image_encoder_forward.1} parent=1 // pred_fallthru
      _
    %5005 = vsyncpa [#allocation3], 1
    %5006 = vsyncpa [#allocation5], 1
    %5007 = vsyncpa [#allocation8], 1
    %5008 = vsyncpa [#allocation11], 1

</llo_original>
